<compile_context>
chip_gen: v5e
topology: v5e:2x2
jax: 0.10.0
libtpu: 0.0.40
codegen_flags: <defaults>
</compile_context>

<pallas_src>
import functools

import jax
import jax.numpy as jnp
from jax import lax
from jax.experimental import pallas as pl
from jax.experimental.pallas import tpu as pltpu


def walk_kernel(cur_ref, start_ref, tbl_ref, wblk_ref, wpre_ref, mwc_ref, mwp_ref,
                ass_ref, mss_ref, p0_ref, p1_ref, chm_ref, out_ref, *, C, P, K, N, L):
    f32 = jnp.float32
    KC = K * C

    tbl = tbl_ref[...]            # (P, K*C + K): [neighbour features | neighbour indices]
    w_blk = wblk_ref[...]         # (K*C, K) block-diagonal agent "pick" weight
    w_pre = wpre_ref[...]         # (C, 1)   agent "pre" weight
    mw_cur = mwc_ref[...]         # (C, 2)   momentum weight, cur half
    mw_pre = mwp_ref[...]         # (C, 2)   momentum weight, pre half
    a_scale = ass_ref[0:1, 0:1]   # (1, 1)   agent BN (eval) scale
    a_shift = ass_ref[0:1, 1:2]   # (1, 1)   agent BN (eval) shift
    m_scale = mss_ref[0:1, :]     # (1, 2)   momentum BN scale
    m_shift = mss_ref[1:2, :]     # (1, 2)   momentum BN shift

    # Static permutation matrices / channel masks (precomputed in the wrapper) reproducing the
    # reference's raw softmax(...).view(bn, 1, N, 2) re-interpretation of a contiguous (2, N)
    # tensor:  att[i, j] = s_nc[(2i + j) % N, (2i + j) // N]  with s_nc held as (N, 2).
    a0 = p0_ref[...]              # (N, N) row (2i)   mod N selector
    a1 = p1_ref[...]              # (N, N) row (2i+1) mod N selector
    sel0 = chm_ref[:, 0:1]        # (N, 1) 1.0 iff att0 reads channel 0
    sel1 = chm_ref[:, 1:2]        # (N, 1) 1.0 iff att1 reads channel 0
    nsel0 = 1.0 - sel0
    nsel1 = 1.0 - sel1

    iota_np = lax.broadcasted_iota(jnp.int32, (N, P), 1)
    iota_nk = lax.broadcasted_iota(jnp.int32, (N, K), 1)

    def gather_step(cur_idx):
        # One-hot of the current points -> fused gather of all K neighbour features and
        # their point indices in a single MXU matmul (exact: one-hot rows).
        oh = (cur_idx == iota_np).astype(f32)                               # (N, P)
        res = jnp.dot(oh, tbl, preferred_element_type=f32)                  # (N, KC + K)
        return res[:, :KC], res[:, KC:KC + K]

    def select_step(step, pick, pick_idx_f, pre_feat, cur_feat_prev):
        # Agent MLP: Conv2d(2C -> 1, k=1, no bias) + BN2d(1).
        logit_pick = jnp.dot(pick, w_blk, preferred_element_type=f32)       # (N, K)
        logit_pre = jnp.dot(pre_feat, w_pre, preferred_element_type=f32)    # (N, 1)
        logits = (logit_pick + logit_pre) * a_scale + a_shift               # (N, K)

        if cur_feat_prev is not None:
            # Crossover suppression (same op order as the reference).
            cur_v = cur_feat_prev - pre_feat                                # (N, C)
            n1 = jnp.sqrt(jnp.sum(cur_v * cur_v, axis=-1, keepdims=True))   # (N, 1)
            d_cols = []
            for kk in range(K):
                nb = pick[:, kk * C:(kk + 1) * C] - cur_feat_prev           # (N, C)
                dot_k = jnp.sum(nb * cur_v, axis=-1, keepdims=True)         # (N, 1)
                n2 = jnp.sqrt(jnp.sum(nb * nb, axis=-1, keepdims=True))     # (N, 1)
                div = jnp.maximum(n1 * n2, 1e-8)
                d_cols.append(jnp.clip(1.0 + dot_k / div, 0.0, 1.0))
            logits = logits * jnp.concatenate(d_cols, axis=-1)              # (N, K)

        # Straight-through "gumbel" softmax (no sampling): forward value = (y_hard - y) + y.
        lmax = jnp.max(logits, axis=-1, keepdims=True)
        ey = jnp.exp(logits - lmax)
        y = ey / jnp.sum(ey, axis=-1, keepdims=True)                        # (N, K)
        ymax = jnp.max(y, axis=-1, keepdims=True)
        first_idx = jnp.min(jnp.where(y == ymax, iota_nk, K),
                            axis=-1, keepdims=True)                         # (N, 1)
        y_hard = (iota_nk == first_idx).astype(f32)                         # (N, K)
        w_sel = (y_hard - y) + y                                            # (N, K)

        # New current feature: weighted sum of the K picked neighbours.
        cur_feat = pick[:, 0:C] * w_sel[:, 0:1]
        for kk in range(1, K):
            cur_feat = cur_feat + pick[:, kk * C:(kk + 1) * C] * w_sel[:, kk:kk + 1]
        out_ref[step] = cur_feat                                            # (N, C)

        cur_next = jnp.sum(pick_idx_f * y_hard, axis=-1,
                           keepdims=True).astype(jnp.int32)                 # (N, 1)
        return cur_feat, cur_next

    # ---- step 0 (peeled: no momentum, no crossover suppression) ----
    cur0 = cur_ref[...]                                                     # (N, 1) int32
    pre_feat0 = start_ref[...]                                              # (N, C)
    pick0, pidx0 = gather_step(cur0)
    cur_feat0, cur1 = select_step(0, pick0, pidx0, pre_feat0, None)

    # ---- steps 1 .. L-1 (sequential walk, carried state, unrolled for small L) ----
    def body(step, carry):
        cur_idx, cur_feat, pre_feat = carry

        # Momentum MLP: Conv1d(2C -> 2, k=1, no bias) + BN1d(2) + softmax over 2 channels,
        # then the reference's raw .view() re-interpretation via static permutation matmuls.
        mom = (jnp.dot(cur_feat, mw_cur, preferred_element_type=f32)
               + jnp.dot(pre_feat, mw_pre, preferred_element_type=f32))     # (N, 2)
        mom = mom * m_scale + m_shift
        mmax = jnp.max(mom, axis=-1, keepdims=True)
        e = jnp.exp(mom - mmax)
        s_nc = e / jnp.sum(e, axis=-1, keepdims=True)                       # (N, 2)
        g0 = jnp.dot(a0, s_nc, preferred_element_type=f32)                  # (N, 2)
        g1 = jnp.dot(a1, s_nc, preferred_element_type=f32)                  # (N, 2)
        att0 = g0[:, 0:1] * sel0 + g0[:, 1:2] * nsel0                       # (N, 1)
        att1 = g1[:, 0:1] * sel1 + g1[:, 1:2] * nsel1                       # (N, 1)
        pre_new = cur_feat * att0 + pre_feat * att1                         # (N, C)

        pick, pidx = gather_step(cur_idx)
        cur_feat_new, cur_next = select_step(step, pick, pidx, pre_new, cur_feat)
        return cur_next, cur_feat_new, pre_new

    if L > 1:
        lax.fori_loop(1, L, body, (cur1, cur_feat0, pre_feat0), unroll=(L <= 8))


def walk_forward(xyz, x, adj, cur, params, *, k, curve_num, curve_length):
    """Pallas port of Walk.forward.  Returns (bn, c, curve_num, curve_length)."""
    del xyz  # faithful to the reference: xyz is never actually used
    f32 = jnp.float32
    bn, c, P = x.shape
    N, L, K = curve_num, curve_length, k
    KC = K * c

    x_pc = jnp.transpose(x, (0, 2, 1)).astype(f32)           # (bn, P, C)
    adj_i = adj.astype(jnp.int32)                            # (bn, P, K)
    cur_i = cur.reshape(bn, N).astype(jnp.int32)             # (bn, N)

    # Loop-invariant neighbour table, built once in XLA (gathers are cheap there):
    #   tbl[b, p] = [x[b, adj[b,p,0], :], ..., x[b, adj[b,p,K-1], :], adj[b,p,:]]
    xn = jax.vmap(lambda xb, ab: xb[ab])(x_pc, adj_i)        # (bn, P, K, C)
    tbl = jnp.concatenate([xn.reshape(bn, P, KC), adj_i.astype(f32)],
                          axis=-1)                           # (bn, P, KC + K)

    # Starting-point features (the step-0 "pre_feature").
    start = jax.vmap(lambda xb, cb: xb[cb])(x_pc, cur_i)     # (bn, N, C)
    cur_col = cur_i.reshape(bn, N, 1)

    # 1x1 conv weights (no bias) and eval-mode BatchNorm folded to scale/shift.
    eps = 1e-5
    aw = params["agent_w"].reshape(1, 2 * c).astype(f32)
    w_pick = aw[0, :c]
    w_pre = aw[0, c:].reshape(c, 1)
    w_blk = jnp.kron(jnp.eye(K, dtype=f32), w_pick.reshape(c, 1))   # (K*C, K)

    mw = params["mom_w"].reshape(2, 2 * c).astype(f32)
    mw_cur = mw[:, :c].T                                      # (C, 2)
    mw_pre = mw[:, c:].T                                      # (C, 2)

    abn = params["agent_bn"].astype(f32)                      # (4, 1): gamma, beta, mean, var
    a_scale = abn[0, 0] / jnp.sqrt(abn[3, 0] + eps)
    a_shift = abn[1, 0] - abn[2, 0] * a_scale
    agent_ss = jnp.stack([a_scale, a_shift]).reshape(1, 2)

    mbn = params["mom_bn"].astype(f32)                        # (4, 2)
    m_scale = mbn[0] / jnp.sqrt(mbn[3] + eps)
    m_shift = mbn[1] - mbn[2] * m_scale
    mom_ss = jnp.stack([m_scale, m_shift], axis=0)            # (2, 2)

    # Static permutation constants reproducing the reference's raw
    # softmax(...).view(bn, 1, N, 2) re-interpretation of a contiguous (2, N) tensor:
    #   att[i, j] = s_nc[(2i + j) % N, (2i + j) // N]
    col = jnp.arange(N, dtype=jnp.int32)[None, :]             # (1, N)
    ridx = jnp.arange(N, dtype=jnp.int32)[:, None]            # (N, 1)
    m0 = 2 * ridx
    m1 = m0 + 1
    t0 = jnp.where(m0 >= N, m0 - N, m0)                       # (2i)   mod N
    t1 = jnp.where(m1 >= N, m1 - N, m1)                       # (2i+1) mod N
    perm0 = (col == t0).astype(f32)                           # (N, N)
    perm1 = (col == t1).astype(f32)                           # (N, N)
    chmask = jnp.concatenate([(m0 < N).astype(f32), (m1 < N).astype(f32)],
                             axis=-1)                         # (N, 2)

    # Explicit VMEM budget: double-buffered per-batch blocks + in-kernel temporaries.
    per_block = 4 * (N + N * c + P * (KC + K) + KC * K + 5 * c + 6
                     + 2 * N * N + 2 * N + L * N * c)
    temps = 4 * (2 * N * P + 2 * N * (KC + K) + 12 * N * c + 12 * N * K + 8 * N)
    vmem_limit = int(min(max(2 * per_block + temps + (4 << 20), 32 << 20), 64 << 20))

    kern = functools.partial(walk_kernel, C=c, P=P, K=K, N=N, L=L)
    out = pl.pallas_call(
        kern,
        out_shape=jax.ShapeDtypeStruct((bn, L, N, c), f32),
        grid=(bn,),
        in_specs=[
            pl.BlockSpec((None, N, 1), lambda b: (b, 0, 0)),          # cur indices
            pl.BlockSpec((None, N, c), lambda b: (b, 0, 0)),          # start features
            pl.BlockSpec((None, P, KC + K), lambda b: (b, 0, 0)),     # neighbour table
            pl.BlockSpec((KC, K), lambda b: (0, 0)),                  # agent "pick" weight
            pl.BlockSpec((c, 1), lambda b: (0, 0)),                   # agent "pre" weight
            pl.BlockSpec((c, 2), lambda b: (0, 0)),                   # momentum cur weight
            pl.BlockSpec((c, 2), lambda b: (0, 0)),                   # momentum pre weight
            pl.BlockSpec((1, 2), lambda b: (0, 0)),                   # agent BN scale/shift
            pl.BlockSpec((2, 2), lambda b: (0, 0)),                   # momentum BN scale/shift
            pl.BlockSpec((N, N), lambda b: (0, 0)),                   # view-permutation (even)
            pl.BlockSpec((N, N), lambda b: (0, 0)),                   # view-permutation (odd)
            pl.BlockSpec((N, 2), lambda b: (0, 0)),                   # channel select masks
        ],
        out_specs=pl.BlockSpec((None, L, N, c), lambda b: (b, 0, 0, 0)),
        compiler_params=pltpu.CompilerParams(
            dimension_semantics=("parallel",),
            vmem_limit_bytes=vmem_limit,
        ),
    )(cur_col, start, tbl, w_blk, w_pre, mw_cur, mw_pre, agent_ss, mom_ss,
      perm0, perm1, chmask)

    # PyTorch returns torch.cat(curves, dim=-1): (bn, c, curve_num, curve_length)
    return jnp.transpose(out, (0, 3, 2, 1))


def init_params(key, in_channel):
    k1, k2 = jax.random.split(key, 2)
    # Conv2d(in_channel*2, 1, 1, bias=False).weight  -> (1, 2C, 1, 1)
    agent_w = jax.random.normal(k1, (1, 2 * in_channel, 1, 1), jnp.float32) * 0.1
    # Conv1d(in_channel*2, 2, 1, bias=False).weight  -> (2, 2C, 1)
    mom_w = jax.random.normal(k2, (2, 2 * in_channel, 1), jnp.float32) * 0.1
    # BatchNorm (eval mode, PyTorch default init): [gamma, beta, running_mean, running_var]
    agent_bn = jnp.array([[1.0], [0.0], [0.0], [1.0]], jnp.float32)           # (4, 1)
    mom_bn = jnp.stack([jnp.ones(2), jnp.zeros(2), jnp.zeros(2), jnp.ones(2)]
                       ).astype(jnp.float32)                                   # (4, 2)
    return {"agent_w": agent_w, "agent_bn": agent_bn,
            "mom_w": mom_w, "mom_bn": mom_bn}


if __name__ == "__main__":
    bn, in_channel, tot_points = 2, 4, 16
    k, curve_num, curve_length = 8, 8, 4

    key = jax.random.PRNGKey(0)
    kp, kx, kxyz, ka, kc = jax.random.split(key, 5)

    params = init_params(kp, in_channel)
    x = jax.random.normal(kx, (bn, in_channel, tot_points), jnp.float32)
    xyz = jax.random.normal(kxyz, (bn, 3, tot_points), jnp.float32)   # unused, like the reference
    adj = jax.random.randint(ka, (bn, tot_points, k), 0, tot_points, jnp.int32)
    cur = jax.random.randint(kc, (bn, curve_num, 1), 0, tot_points, jnp.int32)

    out = walk_forward(xyz, x, adj, cur, params,
                       k=k, curve_num=curve_num, curve_length=curve_length)
    out = jax.block_until_ready(out)
    assert out.shape == (bn, in_channel, curve_num, curve_length)
    print("KERNEL_OK")
</pallas_src>

<mosaic_0001>
module attributes {stable_mosaic.version = 11 : i64} {
  func.func @walk_kernel(%arg0: i32, %arg1: memref<1x8x1xi32, #tpu.memory_space<vmem>>, %arg2: memref<1x8x4xf32, #tpu.memory_space<vmem>>, %arg3: memref<1x16x40xf32, #tpu.memory_space<vmem>>, %arg4: memref<32x8xf32, #tpu.memory_space<vmem>>, %arg5: memref<4x1xf32, #tpu.memory_space<vmem>>, %arg6: memref<4x2xf32, #tpu.memory_space<vmem>>, %arg7: memref<4x2xf32, #tpu.memory_space<vmem>>, %arg8: memref<1x2xf32, #tpu.memory_space<vmem>>, %arg9: memref<2x2xf32, #tpu.memory_space<vmem>>, %arg10: memref<8x8xf32, #tpu.memory_space<vmem>>, %arg11: memref<8x8xf32, #tpu.memory_space<vmem>>, %arg12: memref<8x2xf32, #tpu.memory_space<vmem>>, %arg13: memref<1x4x8x4xf32, #tpu.memory_space<vmem>>) attributes {dimension_semantics = [#tpu.dimension_semantics<parallel>], iteration_bounds = array<i64: 2>, scalar_prefetch = 0 : i64, scratch_operands = 0 : i64, tpu.core_type = #tpu.core_type<tc>, window_params = [{transform_indices = @transform_0, window_bounds = array<i64: 1, 8, 1>}, {transform_indices = @transform_1, window_bounds = array<i64: 1, 8, 4>}, {transform_indices = @transform_2, window_bounds = array<i64: 1, 16, 40>}, {pipeline_mode = #tpu.pipeline_mode<synchronous>, transform_indices = @transform_3, window_bounds = array<i64: 32, 8>}, {pipeline_mode = #tpu.pipeline_mode<synchronous>, transform_indices = @transform_4, window_bounds = array<i64: 4, 1>}, {pipeline_mode = #tpu.pipeline_mode<synchronous>, transform_indices = @transform_5, window_bounds = array<i64: 4, 2>}, {pipeline_mode = #tpu.pipeline_mode<synchronous>, transform_indices = @transform_6, window_bounds = array<i64: 4, 2>}, {pipeline_mode = #tpu.pipeline_mode<synchronous>, transform_indices = @transform_7, window_bounds = array<i64: 1, 2>}, {pipeline_mode = #tpu.pipeline_mode<synchronous>, transform_indices = @transform_8, window_bounds = array<i64: 2, 2>}, {pipeline_mode = #tpu.pipeline_mode<synchronous>, transform_indices = @transform_9, window_bounds = array<i64: 8, 8>}, {pipeline_mode = #tpu.pipeline_mode<synchronous>, transform_indices = @transform_10, window_bounds = array<i64: 8, 8>}, {pipeline_mode = #tpu.pipeline_mode<synchronous>, transform_indices = @transform_11, window_bounds = array<i64: 8, 2>}, {transform_indices = @transform_12, window_bounds = array<i64: 1, 4, 8, 4>}]} {
    %c0 = arith.constant 0 : index
    %c0_0 = arith.constant 0 : index
    %c0_1 = arith.constant 0 : index
    %0 = vector.load %arg3[%c0, %c0_0, %c0_1] : memref<1x16x40xf32, #tpu.memory_space<vmem>>, vector<1x16x40xf32>
    %1 = vector.shape_cast %0 : vector<1x16x40xf32> to vector<16x40xf32>
    %c0_2 = arith.constant 0 : index
    %c0_3 = arith.constant 0 : index
    %2 = vector.load %arg4[%c0_2, %c0_3] : memref<32x8xf32, #tpu.memory_space<vmem>>, vector<32x8xf32>
    %c0_4 = arith.constant 0 : index
    %c0_5 = arith.constant 0 : index
    %3 = vector.load %arg5[%c0_4, %c0_5] : memref<4x1xf32, #tpu.memory_space<vmem>>, vector<4x1xf32>
    %c0_6 = arith.constant 0 : index
    %c0_7 = arith.constant 0 : index
    %4 = vector.load %arg6[%c0_6, %c0_7] : memref<4x2xf32, #tpu.memory_space<vmem>>, vector<4x2xf32>
    %c0_8 = arith.constant 0 : index
    %c0_9 = arith.constant 0 : index
    %5 = vector.load %arg7[%c0_8, %c0_9] : memref<4x2xf32, #tpu.memory_space<vmem>>, vector<4x2xf32>
    %c0_10 = arith.constant 0 : index
    %c0_11 = arith.constant 0 : index
    %6 = vector.load %arg8[%c0_10, %c0_11] : memref<1x2xf32, #tpu.memory_space<vmem>>, vector<1x1xf32>
    %c0_12 = arith.constant 0 : index
    %c1 = arith.constant 1 : index
    %7 = vector.load %arg8[%c0_12, %c1] : memref<1x2xf32, #tpu.memory_space<vmem>>, vector<1x1xf32>
    %c0_13 = arith.constant 0 : index
    %c0_14 = arith.constant 0 : index
    %8 = vector.load %arg9[%c0_13, %c0_14] : memref<2x2xf32, #tpu.memory_space<vmem>>, vector<1x2xf32>
    %c1_15 = arith.constant 1 : index
    %c0_16 = arith.constant 0 : index
    %9 = vector.load %arg9[%c1_15, %c0_16] : memref<2x2xf32, #tpu.memory_space<vmem>>, vector<1x2xf32>
    %c0_17 = arith.constant 0 : index
    %c0_18 = arith.constant 0 : index
    %10 = vector.load %arg10[%c0_17, %c0_18] : memref<8x8xf32, #tpu.memory_space<vmem>>, vector<8x8xf32>
    %c0_19 = arith.constant 0 : index
    %c0_20 = arith.constant 0 : index
    %11 = vector.load %arg11[%c0_19, %c0_20] : memref<8x8xf32, #tpu.memory_space<vmem>>, vector<8x8xf32>
    %c0_21 = arith.constant 0 : index
    %c0_22 = arith.constant 0 : index
    %12 = vector.load %arg12[%c0_21, %c0_22] : memref<8x2xf32, #tpu.memory_space<vmem>>, vector<8x1xf32>
    %c0_23 = arith.constant 0 : index
    %c1_24 = arith.constant 1 : index
    %13 = vector.load %arg12[%c0_23, %c1_24] : memref<8x2xf32, #tpu.memory_space<vmem>>, vector<8x1xf32>
    %cst = arith.constant 1.000000e+00 : f32
    %14 = vector.broadcast %cst : f32 to vector<8x1xf32>
    %15 = arith.subf %14, %12 : vector<8x1xf32>
    %cst_25 = arith.constant 1.000000e+00 : f32
    %16 = vector.broadcast %cst_25 : f32 to vector<8x1xf32>
    %17 = arith.subf %16, %13 : vector<8x1xf32>
    %18 = tpu.iota {dimensions = array<i32: 1>} : vector<8x16xi32>
    %19 = tpu.iota {dimensions = array<i32: 1>} : vector<8x8xi32>
    %c0_26 = arith.constant 0 : index
    %c0_27 = arith.constant 0 : index
    %c0_28 = arith.constant 0 : index
    %20 = vector.load %arg1[%c0_26, %c0_27, %c0_28] : memref<1x8x1xi32, #tpu.memory_space<vmem>>, vector<1x8x1xi32>
    %21 = vector.shape_cast %20 : vector<1x8x1xi32> to vector<8x1xi32>
    %c0_29 = arith.constant 0 : index
    %c0_30 = arith.constant 0 : index
    %c0_31 = arith.constant 0 : index
    %22 = vector.load %arg2[%c0_29, %c0_30, %c0_31] : memref<1x8x4xf32, #tpu.memory_space<vmem>>, vector<1x8x4xf32>
    %23 = vector.shape_cast %22 : vector<1x8x4xf32> to vector<8x4xf32>
    %24 = vector.broadcast %21 : vector<8x1xi32> to vector<8x16xi32>
    %25 = arith.cmpi eq, %24, %18 : vector<8x16xi32>
    %26 = arith.extui %25 : vector<8x16xi1> to vector<8x16xi32>
    %27 = arith.sitofp %26 : vector<8x16xi32> to vector<8x16xf32>
    %cst_32 = arith.constant dense<0.000000e+00> : vector<8x40xf32>
    %28 = tpu.matmul %27, %1, %cst_32 {dimension_numbers = #tpu.dot_dimension_numbers<[1], [0], [0], [1], [0, 0, 1, 1], [], []>} : vector<8x16xf32>, vector<16x40xf32>, vector<8x40xf32> -> vector<8x40xf32>
    %29 = vector.extract_strided_slice %28 {offsets = [0, 0], sizes = [8, 32], strides = [1, 1]} : vector<8x40xf32> to vector<8x32xf32>
    %30 = vector.extract_strided_slice %28 {offsets = [0, 32], sizes = [8, 8], strides = [1, 1]} : vector<8x40xf32> to vector<8x8xf32>
    %cst_33 = arith.constant dense<0.000000e+00> : vector<8x8xf32>
    %31 = tpu.matmul %29, %2, %cst_33 {dimension_numbers = #tpu.dot_dimension_numbers<[1], [0], [0], [1], [0, 0, 1, 1], [], []>} : vector<8x32xf32>, vector<32x8xf32>, vector<8x8xf32> -> vector<8x8xf32>
    %cst_34 = arith.constant dense<0.000000e+00> : vector<8x1xf32>
    %32 = tpu.matmul %23, %3, %cst_34 {dimension_numbers = #tpu.dot_dimension_numbers<[1], [0], [0], [1], [0, 0, 1, 1], [], []>} : vector<8x4xf32>, vector<4x1xf32>, vector<8x1xf32> -> vector<8x1xf32>
    %33 = vector.broadcast %32 : vector<8x1xf32> to vector<8x8xf32>
    %34 = arith.addf %31, %33 : vector<8x8xf32>
    %35 = vector.broadcast %6 : vector<1x1xf32> to vector<8x8xf32>
    %36 = arith.mulf %34, %35 : vector<8x8xf32>
    %37 = vector.broadcast %7 : vector<1x1xf32> to vector<8x8xf32>
    %38 = arith.addf %36, %37 : vector<8x8xf32>
    %cst_35 = arith.constant dense<0xFF800000> : vector<8xf32>
    %39 = vector.multi_reduction <maximumf>, %38, %cst_35 [1] : vector<8x8xf32> to vector<8xf32>
    %40 = vector.shape_cast %39 : vector<8xf32> to vector<8x1xf32>
    %41 = vector.broadcast %40 : vector<8x1xf32> to vector<8x8xf32>
    %42 = arith.subf %38, %41 : vector<8x8xf32>
    %43 = math.exp %42 : vector<8x8xf32>
    %cst_36 = arith.constant dense<0.000000e+00> : vector<8xf32>
    %44 = vector.multi_reduction <add>, %43, %cst_36 [1] : vector<8x8xf32> to vector<8xf32>
    %45 = vector.shape_cast %44 : vector<8xf32> to vector<8x1xf32>
    %46 = vector.broadcast %45 : vector<8x1xf32> to vector<8x8xf32>
    %47 = arith.divf %43, %46 : vector<8x8xf32>
    %cst_37 = arith.constant dense<0xFF800000> : vector<8xf32>
    %48 = vector.multi_reduction <maximumf>, %47, %cst_37 [1] : vector<8x8xf32> to vector<8xf32>
    %49 = vector.shape_cast %48 : vector<8xf32> to vector<8x1xf32>
    %50 = vector.broadcast %49 : vector<8x1xf32> to vector<8x8xf32>
    %51 = arith.cmpf oeq, %47, %50 : vector<8x8xf32>
    %c8_i32 = arith.constant 8 : i32
    %52 = vector.broadcast %c8_i32 : i32 to vector<8x8xi32>
    %53 = arith.select %51, %19, %52 : vector<8x8xi1>, vector<8x8xi32>
    %cst_38 = arith.constant dense<2147483647> : vector<8xi32>
    %54 = vector.multi_reduction <minsi>, %53, %cst_38 [1] : vector<8x8xi32> to vector<8xi32>
    %55 = vector.shape_cast %54 : vector<8xi32> to vector<8x1xi32>
    %56 = vector.broadcast %55 : vector<8x1xi32> to vector<8x8xi32>
    %57 = arith.cmpi eq, %19, %56 : vector<8x8xi32>
    %58 = arith.extui %57 : vector<8x8xi1> to vector<8x8xi32>
    %59 = arith.sitofp %58 : vector<8x8xi32> to vector<8x8xf32>
    %60 = arith.subf %59, %47 : vector<8x8xf32>
    %61 = arith.addf %60, %47 : vector<8x8xf32>
    %62 = vector.extract_strided_slice %29 {offsets = [0, 0], sizes = [8, 4], strides = [1, 1]} : vector<8x32xf32> to vector<8x4xf32>
    %63 = vector.extract_strided_slice %61 {offsets = [0, 0], sizes = [8, 1], strides = [1, 1]} : vector<8x8xf32> to vector<8x1xf32>
    %64 = vector.broadcast %63 : vector<8x1xf32> to vector<8x4xf32>
    %65 = arith.mulf %62, %64 : vector<8x4xf32>
    %66 = vector.extract_strided_slice %29 {offsets = [0, 4], sizes = [8, 4], strides = [1, 1]} : vector<8x32xf32> to vector<8x4xf32>
    %67 = vector.extract_strided_slice %61 {offsets = [0, 1], sizes = [8, 1], strides = [1, 1]} : vector<8x8xf32> to vector<8x1xf32>
    %68 = vector.broadcast %67 : vector<8x1xf32> to vector<8x4xf32>
    %69 = arith.mulf %66, %68 : vector<8x4xf32>
    %70 = arith.addf %65, %69 : vector<8x4xf32>
    %71 = vector.extract_strided_slice %29 {offsets = [0, 8], sizes = [8, 4], strides = [1, 1]} : vector<8x32xf32> to vector<8x4xf32>
    %72 = vector.extract_strided_slice %61 {offsets = [0, 2], sizes = [8, 1], strides = [1, 1]} : vector<8x8xf32> to vector<8x1xf32>
    %73 = vector.broadcast %72 : vector<8x1xf32> to vector<8x4xf32>
    %74 = arith.mulf %71, %73 : vector<8x4xf32>
    %75 = arith.addf %70, %74 : vector<8x4xf32>
    %76 = vector.extract_strided_slice %29 {offsets = [0, 12], sizes = [8, 4], strides = [1, 1]} : vector<8x32xf32> to vector<8x4xf32>
    %77 = vector.extract_strided_slice %61 {offsets = [0, 3], sizes = [8, 1], strides = [1, 1]} : vector<8x8xf32> to vector<8x1xf32>
    %78 = vector.broadcast %77 : vector<8x1xf32> to vector<8x4xf32>
    %79 = arith.mulf %76, %78 : vector<8x4xf32>
    %80 = arith.addf %75, %79 : vector<8x4xf32>
    %81 = vector.extract_strided_slice %29 {offsets = [0, 16], sizes = [8, 4], strides = [1, 1]} : vector<8x32xf32> to vector<8x4xf32>
    %82 = vector.extract_strided_slice %61 {offsets = [0, 4], sizes = [8, 1], strides = [1, 1]} : vector<8x8xf32> to vector<8x1xf32>
    %83 = vector.broadcast %82 : vector<8x1xf32> to vector<8x4xf32>
    %84 = arith.mulf %81, %83 : vector<8x4xf32>
    %85 = arith.addf %80, %84 : vector<8x4xf32>
    %86 = vector.extract_strided_slice %29 {offsets = [0, 20], sizes = [8, 4], strides = [1, 1]} : vector<8x32xf32> to vector<8x4xf32>
    %87 = vector.extract_strided_slice %61 {offsets = [0, 5], sizes = [8, 1], strides = [1, 1]} : vector<8x8xf32> to vector<8x1xf32>
    %88 = vector.broadcast %87 : vector<8x1xf32> to vector<8x4xf32>
    %89 = arith.mulf %86, %88 : vector<8x4xf32>
    %90 = arith.addf %85, %89 : vector<8x4xf32>
    %91 = vector.extract_strided_slice %29 {offsets = [0, 24], sizes = [8, 4], strides = [1, 1]} : vector<8x32xf32> to vector<8x4xf32>
    %92 = vector.extract_strided_slice %61 {offsets = [0, 6], sizes = [8, 1], strides = [1, 1]} : vector<8x8xf32> to vector<8x1xf32>
    %93 = vector.broadcast %92 : vector<8x1xf32> to vector<8x4xf32>
    %94 = arith.mulf %91, %93 : vector<8x4xf32>
    %95 = arith.addf %90, %94 : vector<8x4xf32>
    %96 = vector.extract_strided_slice %29 {offsets = [0, 28], sizes = [8, 4], strides = [1, 1]} : vector<8x32xf32> to vector<8x4xf32>
    %97 = vector.extract_strided_slice %61 {offsets = [0, 7], sizes = [8, 1], strides = [1, 1]} : vector<8x8xf32> to vector<8x1xf32>
    %98 = vector.broadcast %97 : vector<8x1xf32> to vector<8x4xf32>
    %99 = arith.mulf %96, %98 : vector<8x4xf32>
    %100 = arith.addf %95, %99 : vector<8x4xf32>
    %c0_39 = arith.constant 0 : index
    %c0_40 = arith.constant 0 : index
    %c0_41 = arith.constant 0 : index
    %c0_42 = arith.constant 0 : index
    %101 = vector.load %arg13[%c0_39, %c0_40, %c0_41, %c0_42] : memref<1x4x8x4xf32, #tpu.memory_space<vmem>>, vector<1x1x8x4xf32>
    %102 = vector.shape_cast %101 : vector<1x1x8x4xf32> to vector<8x4xf32>
    %103 = vector.shape_cast %100 : vector<8x4xf32> to vector<1x1x8x4xf32>
    tpu.vector_store %arg13[%c0_39, %c0_40, %c0_41, %c0_42], %103 {strides = array<i32>} : memref<1x4x8x4xf32, #tpu.memory_space<vmem>>, vector<1x1x8x4xf32>,
    %104 = arith.mulf %30, %59 : vector<8x8xf32>
    %cst_43 = arith.constant dense<0.000000e+00> : vector<8xf32>
    %105 = vector.multi_reduction <add>, %104, %cst_43 [1] : vector<8x8xf32> to vector<8xf32>
    %106 = vector.shape_cast %105 : vector<8xf32> to vector<8x1xf32>
    %107 = arith.fptosi %106 : vector<8x1xf32> to vector<8x1xi32>
    %c1_i32 = arith.constant 1 : i32
    %cst_44 = arith.constant dense<0.000000e+00> : vector<8x2xf32>
    %108 = tpu.matmul %100, %4, %cst_44 {dimension_numbers = #tpu.dot_dimension_numbers<[1], [0], [0], [1], [0, 0, 1, 1], [], []>} : vector<8x4xf32>, vector<4x2xf32>, vector<8x2xf32> -> vector<8x2xf32>
    %cst_45 = arith.constant dense<0.000000e+00> : vector<8x2xf32>
    %109 = tpu.matmul %23, %5, %cst_45 {dimension_numbers = #tpu.dot_dimension_numbers<[1], [0], [0], [1], [0, 0, 1, 1], [], []>} : vector<8x4xf32>, vector<4x2xf32>, vector<8x2xf32> -> vector<8x2xf32>
    %110 = arith.addf %108, %109 : vector<8x2xf32>
    %111 = vector.broadcast %8 : vector<1x2xf32> to vector<8x2xf32>
    %112 = arith.mulf %110, %111 : vector<8x2xf32>
    %113 = vector.broadcast %9 : vector<1x2xf32> to vector<8x2xf32>
    %114 = arith.addf %112, %113 : vector<8x2xf32>
    %cst_46 = arith.constant dense<0xFF800000> : vector<8xf32>
    %115 = vector.multi_reduction <maximumf>, %114, %cst_46 [1] : vector<8x2xf32> to vector<8xf32>
    %116 = vector.shape_cast %115 : vector<8xf32> to vector<8x1xf32>
    %117 = vector.broadcast %116 : vector<8x1xf32> to vector<8x2xf32>
    %118 = arith.subf %114, %117 : vector<8x2xf32>
    %119 = math.exp %118 : vector<8x2xf32>
    %cst_47 = arith.constant dense<0.000000e+00> : vector<8xf32>
    %120 = vector.multi_reduction <add>, %119, %cst_47 [1] : vector<8x2xf32> to vector<8xf32>
    %121 = vector.shape_cast %120 : vector<8xf32> to vector<8x1xf32>
    %122 = vector.broadcast %121 : vector<8x1xf32> to vector<8x2xf32>
    %123 = arith.divf %119, %122 : vector<8x2xf32>
    %cst_48 = arith.constant dense<0.000000e+00> : vector<8x2xf32>
    %124 = tpu.matmul %10, %123, %cst_48 {dimension_numbers = #tpu.dot_dimension_numbers<[1], [0], [0], [1], [0, 0, 1, 1], [], []>} : vector<8x8xf32>, vector<8x2xf32>, vector<8x2xf32> -> vector<8x2xf32>
    %cst_49 = arith.constant dense<0.000000e+00> : vector<8x2xf32>
    %125 = tpu.matmul %11, %123, %cst_49 {dimension_numbers = #tpu.dot_dimension_numbers<[1], [0], [0], [1], [0, 0, 1, 1], [], []>} : vector<8x8xf32>, vector<8x2xf32>, vector<8x2xf32> -> vector<8x2xf32>
    %126 = vector.extract_strided_slice %124 {offsets = [0, 0], sizes = [8, 1], strides = [1, 1]} : vector<8x2xf32> to vector<8x1xf32>
    %127 = arith.mulf %126, %12 : vector<8x1xf32>
    %128 = vector.extract_strided_slice %124 {offsets = [0, 1], sizes = [8, 1], strides = [1, 1]} : vector<8x2xf32> to vector<8x1xf32>
    %129 = arith.mulf %128, %15 : vector<8x1xf32>
    %130 = arith.addf %127, %129 : vector<8x1xf32>
    %131 = vector.extract_strided_slice %125 {offsets = [0, 0], sizes = [8, 1], strides = [1, 1]} : vector<8x2xf32> to vector<8x1xf32>
    %132 = arith.mulf %131, %13 : vector<8x1xf32>
    %133 = vector.extract_strided_slice %125 {offsets = [0, 1], sizes = [8, 1], strides = [1, 1]} : vector<8x2xf32> to vector<8x1xf32>
    %134 = arith.mulf %133, %17 : vector<8x1xf32>
    %135 = arith.addf %132, %134 : vector<8x1xf32>
    %136 = vector.broadcast %130 : vector<8x1xf32> to vector<8x4xf32>
    %137 = arith.mulf %100, %136 : vector<8x4xf32>
    %138 = vector.broadcast %135 : vector<8x1xf32> to vector<8x4xf32>
    %139 = arith.mulf %23, %138 : vector<8x4xf32>
    %140 = arith.addf %137, %139 : vector<8x4xf32>
    %141 = vector.broadcast %107 : vector<8x1xi32> to vector<8x16xi32>
    %142 = arith.cmpi eq, %141, %18 : vector<8x16xi32>
    %143 = arith.extui %142 : vector<8x16xi1> to vector<8x16xi32>
    %144 = arith.sitofp %143 : vector<8x16xi32> to vector<8x16xf32>
    %cst_50 = arith.constant dense<0.000000e+00> : vector<8x40xf32>
    %145 = tpu.matmul %144, %1, %cst_50 {dimension_numbers = #tpu.dot_dimension_numbers<[1], [0], [0], [1], [0, 0, 1, 1], [], []>} : vector<8x16xf32>, vector<16x40xf32>, vector<8x40xf32> -> vector<8x40xf32>
    %146 = vector.extract_strided_slice %145 {offsets = [0, 0], sizes = [8, 32], strides = [1, 1]} : vector<8x40xf32> to vector<8x32xf32>
    %147 = vector.extract_strided_slice %145 {offsets = [0, 32], sizes = [8, 8], strides = [1, 1]} : vector<8x40xf32> to vector<8x8xf32>
    %cst_51 = arith.constant dense<0.000000e+00> : vector<8x8xf32>
    %148 = tpu.matmul %146, %2, %cst_51 {dimension_numbers = #tpu.dot_dimension_numbers<[1], [0], [0], [1], [0, 0, 1, 1], [], []>} : vector<8x32xf32>, vector<32x8xf32>, vector<8x8xf32> -> vector<8x8xf32>
    %cst_52 = arith.constant dense<0.000000e+00> : vector<8x1xf32>
    %149 = tpu.matmul %140, %3, %cst_52 {dimension_numbers = #tpu.dot_dimension_numbers<[1], [0], [0], [1], [0, 0, 1, 1], [], []>} : vector<8x4xf32>, vector<4x1xf32>, vector<8x1xf32> -> vector<8x1xf32>
    %150 = vector.broadcast %149 : vector<8x1xf32> to vector<8x8xf32>
    %151 = arith.addf %148, %150 : vector<8x8xf32>
    %152 = vector.broadcast %6 : vector<1x1xf32> to vector<8x8xf32>
    %153 = arith.mulf %151, %152 : vector<8x8xf32>
    %154 = vector.broadcast %7 : vector<1x1xf32> to vector<8x8xf32>
    %155 = arith.addf %153, %154 : vector<8x8xf32>
    %156 = arith.subf %100, %140 : vector<8x4xf32>
    %157 = arith.mulf %156, %156 : vector<8x4xf32>
    %cst_53 = arith.constant dense<0.000000e+00> : vector<8xf32>
    %158 = vector.multi_reduction <add>, %157, %cst_53 [1] : vector<8x4xf32> to vector<8xf32>
    %159 = vector.shape_cast %158 : vector<8xf32> to vector<8x1xf32>
    %160 = math.sqrt %159 : vector<8x1xf32>
    %161 = vector.extract_strided_slice %146 {offsets = [0, 0], sizes = [8, 4], strides = [1, 1]} : vector<8x32xf32> to vector<8x4xf32>
    %162 = arith.subf %161, %100 : vector<8x4xf32>
    %163 = arith.mulf %162, %156 : vector<8x4xf32>
    %cst_54 = arith.constant dense<0.000000e+00> : vector<8xf32>
    %164 = vector.multi_reduction <add>, %163, %cst_54 [1] : vector<8x4xf32> to vector<8xf32>
    %165 = vector.shape_cast %164 : vector<8xf32> to vector<8x1xf32>
    %166 = arith.mulf %162, %162 : vector<8x4xf32>
    %cst_55 = arith.constant dense<0.000000e+00> : vector<8xf32>
    %167 = vector.multi_reduction <add>, %166, %cst_55 [1] : vector<8x4xf32> to vector<8xf32>
    %168 = vector.shape_cast %167 : vector<8xf32> to vector<8x1xf32>
    %169 = math.sqrt %168 : vector<8x1xf32>
    %170 = arith.mulf %160, %169 : vector<8x1xf32>
    %cst_56 = arith.constant 9.99999993E-9 : f32
    %171 = vector.broadcast %cst_56 : f32 to vector<8x1xf32>
    %172 = arith.maximumf %170, %171 : vector<8x1xf32>
    %173 = arith.divf %165, %172 : vector<8x1xf32>
    %cst_57 = arith.constant 1.000000e+00 : f32
    %174 = vector.broadcast %cst_57 : f32 to vector<8x1xf32>
    %175 = arith.addf %174, %173 : vector<8x1xf32>
    %cst_58 = arith.constant 0.000000e+00 : f32
    %cst_59 = arith.constant 1.000000e+00 : f32
    %176 = vector.broadcast %cst_58 : f32 to vector<8x1xf32>
    %177 = arith.maximumf %176, %175 : vector<8x1xf32>
    %178 = vector.broadcast %cst_59 : f32 to vector<8x1xf32>
    %179 = arith.minimumf %178, %177 : vector<8x1xf32>
    %180 = vector.extract_strided_slice %146 {offsets = [0, 4], sizes = [8, 4], strides = [1, 1]} : vector<8x32xf32> to vector<8x4xf32>
    %181 = arith.subf %180, %100 : vector<8x4xf32>
    %182 = arith.mulf %181, %156 : vector<8x4xf32>
    %cst_60 = arith.constant dense<0.000000e+00> : vector<8xf32>
    %183 = vector.multi_reduction <add>, %182, %cst_60 [1] : vector<8x4xf32> to vector<8xf32>
    %184 = vector.shape_cast %183 : vector<8xf32> to vector<8x1xf32>
    %185 = arith.mulf %181, %181 : vector<8x4xf32>
    %cst_61 = arith.constant dense<0.000000e+00> : vector<8xf32>
    %186 = vector.multi_reduction <add>, %185, %cst_61 [1] : vector<8x4xf32> to vector<8xf32>
    %187 = vector.shape_cast %186 : vector<8xf32> to vector<8x1xf32>
    %188 = math.sqrt %187 : vector<8x1xf32>
    %189 = arith.mulf %160, %188 : vector<8x1xf32>
    %cst_62 = arith.constant 9.99999993E-9 : f32
    %190 = vector.broadcast %cst_62 : f32 to vector<8x1xf32>
    %191 = arith.maximumf %189, %190 : vector<8x1xf32>
    %192 = arith.divf %184, %191 : vector<8x1xf32>
    %cst_63 = arith.constant 1.000000e+00 : f32
    %193 = vector.broadcast %cst_63 : f32 to vector<8x1xf32>
    %194 = arith.addf %193, %192 : vector<8x1xf32>
    %cst_64 = arith.constant 0.000000e+00 : f32
    %cst_65 = arith.constant 1.000000e+00 : f32
    %195 = vector.broadcast %cst_64 : f32 to vector<8x1xf32>
    %196 = arith.maximumf %195, %194 : vector<8x1xf32>
    %197 = vector.broadcast %cst_65 : f32 to vector<8x1xf32>
    %198 = arith.minimumf %197, %196 : vector<8x1xf32>
    %199 = vector.extract_strided_slice %146 {offsets = [0, 8], sizes = [8, 4], strides = [1, 1]} : vector<8x32xf32> to vector<8x4xf32>
    %200 = arith.subf %199, %100 : vector<8x4xf32>
    %201 = arith.mulf %200, %156 : vector<8x4xf32>
    %cst_66 = arith.constant dense<0.000000e+00> : vector<8xf32>
    %202 = vector.multi_reduction <add>, %201, %cst_66 [1] : vector<8x4xf32> to vector<8xf32>
    %203 = vector.shape_cast %202 : vector<8xf32> to vector<8x1xf32>
    %204 = arith.mulf %200, %200 : vector<8x4xf32>
    %cst_67 = arith.constant dense<0.000000e+00> : vector<8xf32>
    %205 = vector.multi_reduction <add>, %204, %cst_67 [1] : vector<8x4xf32> to vector<8xf32>
    %206 = vector.shape_cast %205 : vector<8xf32> to vector<8x1xf32>
    %207 = math.sqrt %206 : vector<8x1xf32>
    %208 = arith.mulf %160, %207 : vector<8x1xf32>
    %cst_68 = arith.constant 9.99999993E-9 : f32
    %209 = vector.broadcast %cst_68 : f32 to vector<8x1xf32>
    %210 = arith.maximumf %208, %209 : vector<8x1xf32>
    %211 = arith.divf %203, %210 : vector<8x1xf32>
    %cst_69 = arith.constant 1.000000e+00 : f32
    %212 = vector.broadcast %cst_69 : f32 to vector<8x1xf32>
    %213 = arith.addf %212, %211 : vector<8x1xf32>
    %cst_70 = arith.constant 0.000000e+00 : f32
    %cst_71 = arith.constant 1.000000e+00 : f32
    %214 = vector.broadcast %cst_70 : f32 to vector<8x1xf32>
    %215 = arith.maximumf %214, %213 : vector<8x1xf32>
    %216 = vector.broadcast %cst_71 : f32 to vector<8x1xf32>
    %217 = arith.minimumf %216, %215 : vector<8x1xf32>
    %218 = vector.extract_strided_slice %146 {offsets = [0, 12], sizes = [8, 4], strides = [1, 1]} : vector<8x32xf32> to vector<8x4xf32>
    %219 = arith.subf %218, %100 : vector<8x4xf32>
    %220 = arith.mulf %219, %156 : vector<8x4xf32>
    %cst_72 = arith.constant dense<0.000000e+00> : vector<8xf32>
    %221 = vector.multi_reduction <add>, %220, %cst_72 [1] : vector<8x4xf32> to vector<8xf32>
    %222 = vector.shape_cast %221 : vector<8xf32> to vector<8x1xf32>
    %223 = arith.mulf %219, %219 : vector<8x4xf32>
    %cst_73 = arith.constant dense<0.000000e+00> : vector<8xf32>
    %224 = vector.multi_reduction <add>, %223, %cst_73 [1] : vector<8x4xf32> to vector<8xf32>
    %225 = vector.shape_cast %224 : vector<8xf32> to vector<8x1xf32>
    %226 = math.sqrt %225 : vector<8x1xf32>
    %227 = arith.mulf %160, %226 : vector<8x1xf32>
    %cst_74 = arith.constant 9.99999993E-9 : f32
    %228 = vector.broadcast %cst_74 : f32 to vector<8x1xf32>
    %229 = arith.maximumf %227, %228 : vector<8x1xf32>
    %230 = arith.divf %222, %229 : vector<8x1xf32>
    %cst_75 = arith.constant 1.000000e+00 : f32
    %231 = vector.broadcast %cst_75 : f32 to vector<8x1xf32>
    %232 = arith.addf %231, %230 : vector<8x1xf32>
    %cst_76 = arith.constant 0.000000e+00 : f32
    %cst_77 = arith.constant 1.000000e+00 : f32
    %233 = vector.broadcast %cst_76 : f32 to vector<8x1xf32>
    %234 = arith.maximumf %233, %232 : vector<8x1xf32>
    %235 = vector.broadcast %cst_77 : f32 to vector<8x1xf32>
    %236 = arith.minimumf %235, %234 : vector<8x1xf32>
    %237 = vector.extract_strided_slice %146 {offsets = [0, 16], sizes = [8, 4], strides = [1, 1]} : vector<8x32xf32> to vector<8x4xf32>
    %238 = arith.subf %237, %100 : vector<8x4xf32>
    %239 = arith.mulf %238, %156 : vector<8x4xf32>
    %cst_78 = arith.constant dense<0.000000e+00> : vector<8xf32>
    %240 = vector.multi_reduction <add>, %239, %cst_78 [1] : vector<8x4xf32> to vector<8xf32>
    %241 = vector.shape_cast %240 : vector<8xf32> to vector<8x1xf32>
    %242 = arith.mulf %238, %238 : vector<8x4xf32>
    %cst_79 = arith.constant dense<0.000000e+00> : vector<8xf32>
    %243 = vector.multi_reduction <add>, %242, %cst_79 [1] : vector<8x4xf32> to vector<8xf32>
    %244 = vector.shape_cast %243 : vector<8xf32> to vector<8x1xf32>
    %245 = math.sqrt %244 : vector<8x1xf32>
    %246 = arith.mulf %160, %245 : vector<8x1xf32>
    %cst_80 = arith.constant 9.99999993E-9 : f32
    %247 = vector.broadcast %cst_80 : f32 to vector<8x1xf32>
    %248 = arith.maximumf %246, %247 : vector<8x1xf32>
    %249 = arith.divf %241, %248 : vector<8x1xf32>
    %cst_81 = arith.constant 1.000000e+00 : f32
    %250 = vector.broadcast %cst_81 : f32 to vector<8x1xf32>
    %251 = arith.addf %250, %249 : vector<8x1xf32>
    %cst_82 = arith.constant 0.000000e+00 : f32
    %cst_83 = arith.constant 1.000000e+00 : f32
    %252 = vector.broadcast %cst_82 : f32 to vector<8x1xf32>
    %253 = arith.maximumf %252, %251 : vector<8x1xf32>
    %254 = vector.broadcast %cst_83 : f32 to vector<8x1xf32>
    %255 = arith.minimumf %254, %253 : vector<8x1xf32>
    %256 = vector.extract_strided_slice %146 {offsets = [0, 20], sizes = [8, 4], strides = [1, 1]} : vector<8x32xf32> to vector<8x4xf32>
    %257 = arith.subf %256, %100 : vector<8x4xf32>
    %258 = arith.mulf %257, %156 : vector<8x4xf32>
    %cst_84 = arith.constant dense<0.000000e+00> : vector<8xf32>
    %259 = vector.multi_reduction <add>, %258, %cst_84 [1] : vector<8x4xf32> to vector<8xf32>
    %260 = vector.shape_cast %259 : vector<8xf32> to vector<8x1xf32>
    %261 = arith.mulf %257, %257 : vector<8x4xf32>
    %cst_85 = arith.constant dense<0.000000e+00> : vector<8xf32>
    %262 = vector.multi_reduction <add>, %261, %cst_85 [1] : vector<8x4xf32> to vector<8xf32>
    %263 = vector.shape_cast %262 : vector<8xf32> to vector<8x1xf32>
    %264 = math.sqrt %263 : vector<8x1xf32>
    %265 = arith.mulf %160, %264 : vector<8x1xf32>
    %cst_86 = arith.constant 9.99999993E-9 : f32
    %266 = vector.broadcast %cst_86 : f32 to vector<8x1xf32>
    %267 = arith.maximumf %265, %266 : vector<8x1xf32>
    %268 = arith.divf %260, %267 : vector<8x1xf32>
    %cst_87 = arith.constant 1.000000e+00 : f32
    %269 = vector.broadcast %cst_87 : f32 to vector<8x1xf32>
    %270 = arith.addf %269, %268 : vector<8x1xf32>
    %cst_88 = arith.constant 0.000000e+00 : f32
    %cst_89 = arith.constant 1.000000e+00 : f32
    %271 = vector.broadcast %cst_88 : f32 to vector<8x1xf32>
    %272 = arith.maximumf %271, %270 : vector<8x1xf32>
    %273 = vector.broadcast %cst_89 : f32 to vector<8x1xf32>
    %274 = arith.minimumf %273, %272 : vector<8x1xf32>
    %275 = vector.extract_strided_slice %146 {offsets = [0, 24], sizes = [8, 4], strides = [1, 1]} : vector<8x32xf32> to vector<8x4xf32>
    %276 = arith.subf %275, %100 : vector<8x4xf32>
    %277 = arith.mulf %276, %156 : vector<8x4xf32>
    %cst_90 = arith.constant dense<0.000000e+00> : vector<8xf32>
    %278 = vector.multi_reduction <add>, %277, %cst_90 [1] : vector<8x4xf32> to vector<8xf32>
    %279 = vector.shape_cast %278 : vector<8xf32> to vector<8x1xf32>
    %280 = arith.mulf %276, %276 : vector<8x4xf32>
    %cst_91 = arith.constant dense<0.000000e+00> : vector<8xf32>
    %281 = vector.multi_reduction <add>, %280, %cst_91 [1] : vector<8x4xf32> to vector<8xf32>
    %282 = vector.shape_cast %281 : vector<8xf32> to vector<8x1xf32>
    %283 = math.sqrt %282 : vector<8x1xf32>
    %284 = arith.mulf %160, %283 : vector<8x1xf32>
    %cst_92 = arith.constant 9.99999993E-9 : f32
    %285 = vector.broadcast %cst_92 : f32 to vector<8x1xf32>
    %286 = arith.maximumf %284, %285 : vector<8x1xf32>
    %287 = arith.divf %279, %286 : vector<8x1xf32>
    %cst_93 = arith.constant 1.000000e+00 : f32
    %288 = vector.broadcast %cst_93 : f32 to vector<8x1xf32>
    %289 = arith.addf %288, %287 : vector<8x1xf32>
    %cst_94 = arith.constant 0.000000e+00 : f32
    %cst_95 = arith.constant 1.000000e+00 : f32
    %290 = vector.broadcast %cst_94 : f32 to vector<8x1xf32>
    %291 = arith.maximumf %290, %289 : vector<8x1xf32>
    %292 = vector.broadcast %cst_95 : f32 to vector<8x1xf32>
    %293 = arith.minimumf %292, %291 : vector<8x1xf32>
    %294 = vector.extract_strided_slice %146 {offsets = [0, 28], sizes = [8, 4], strides = [1, 1]} : vector<8x32xf32> to vector<8x4xf32>
    %295 = arith.subf %294, %100 : vector<8x4xf32>
    %296 = arith.mulf %295, %156 : vector<8x4xf32>
    %cst_96 = arith.constant dense<0.000000e+00> : vector<8xf32>
    %297 = vector.multi_reduction <add>, %296, %cst_96 [1] : vector<8x4xf32> to vector<8xf32>
    %298 = vector.shape_cast %297 : vector<8xf32> to vector<8x1xf32>
    %299 = arith.mulf %295, %295 : vector<8x4xf32>
    %cst_97 = arith.constant dense<0.000000e+00> : vector<8xf32>
    %300 = vector.multi_reduction <add>, %299, %cst_97 [1] : vector<8x4xf32> to vector<8xf32>
    %301 = vector.shape_cast %300 : vector<8xf32> to vector<8x1xf32>
    %302 = math.sqrt %301 : vector<8x1xf32>
    %303 = arith.mulf %160, %302 : vector<8x1xf32>
    %cst_98 = arith.constant 9.99999993E-9 : f32
    %304 = vector.broadcast %cst_98 : f32 to vector<8x1xf32>
    %305 = arith.maximumf %303, %304 : vector<8x1xf32>
    %306 = arith.divf %298, %305 : vector<8x1xf32>
    %cst_99 = arith.constant 1.000000e+00 : f32
    %307 = vector.broadcast %cst_99 : f32 to vector<8x1xf32>
    %308 = arith.addf %307, %306 : vector<8x1xf32>
    %cst_100 = arith.constant 0.000000e+00 : f32
    %cst_101 = arith.constant 1.000000e+00 : f32
    %309 = vector.broadcast %cst_100 : f32 to vector<8x1xf32>
    %310 = arith.maximumf %309, %308 : vector<8x1xf32>
    %311 = vector.broadcast %cst_101 : f32 to vector<8x1xf32>
    %312 = arith.minimumf %311, %310 : vector<8x1xf32>
    %313 = tpu.concatenate %179, %198, %217, %236, %255, %274, %293, %312 in 1 : vector<8x1xf32>, vector<8x1xf32>, vector<8x1xf32>, vector<8x1xf32>, vector<8x1xf32>, vector<8x1xf32>, vector<8x1xf32>, vector<8x1xf32> -> vector<8x8xf32>
    %314 = arith.mulf %155, %313 : vector<8x8xf32>
    %cst_102 = arith.constant dense<0xFF800000> : vector<8xf32>
    %315 = vector.multi_reduction <maximumf>, %314, %cst_102 [1] : vector<8x8xf32> to vector<8xf32>
    %316 = vector.shape_cast %315 : vector<8xf32> to vector<8x1xf32>
    %317 = vector.broadcast %316 : vector<8x1xf32> to vector<8x8xf32>
    %318 = arith.subf %314, %317 : vector<8x8xf32>
    %319 = math.exp %318 : vector<8x8xf32>
    %cst_103 = arith.constant dense<0.000000e+00> : vector<8xf32>
    %320 = vector.multi_reduction <add>, %319, %cst_103 [1] : vector<8x8xf32> to vector<8xf32>
    %321 = vector.shape_cast %320 : vector<8xf32> to vector<8x1xf32>
    %322 = vector.broadcast %321 : vector<8x1xf32> to vector<8x8xf32>
    %323 = arith.divf %319, %322 : vector<8x8xf32>
    %cst_104 = arith.constant dense<0xFF800000> : vector<8xf32>
    %324 = vector.multi_reduction <maximumf>, %323, %cst_104 [1] : vector<8x8xf32> to vector<8xf32>
    %325 = vector.shape_cast %324 : vector<8xf32> to vector<8x1xf32>
    %326 = vector.broadcast %325 : vector<8x1xf32> to vector<8x8xf32>
    %327 = arith.cmpf oeq, %323, %326 : vector<8x8xf32>
    %c8_i32_105 = arith.constant 8 : i32
    %328 = vector.broadcast %c8_i32_105 : i32 to vector<8x8xi32>
    %329 = arith.select %327, %19, %328 : vector<8x8xi1>, vector<8x8xi32>
    %cst_106 = arith.constant dense<2147483647> : vector<8xi32>
    %330 = vector.multi_reduction <minsi>, %329, %cst_106 [1] : vector<8x8xi32> to vector<8xi32>
    %331 = vector.shape_cast %330 : vector<8xi32> to vector<8x1xi32>
    %332 = vector.broadcast %331 : vector<8x1xi32> to vector<8x8xi32>
    %333 = arith.cmpi eq, %19, %332 : vector<8x8xi32>
    %334 = arith.extui %333 : vector<8x8xi1> to vector<8x8xi32>
    %335 = arith.sitofp %334 : vector<8x8xi32> to vector<8x8xf32>
    %336 = arith.subf %335, %323 : vector<8x8xf32>
    %337 = arith.addf %336, %323 : vector<8x8xf32>
    %338 = vector.extract_strided_slice %146 {offsets = [0, 0], sizes = [8, 4], strides = [1, 1]} : vector<8x32xf32> to vector<8x4xf32>
    %339 = vector.extract_strided_slice %337 {offsets = [0, 0], sizes = [8, 1], strides = [1, 1]} : vector<8x8xf32> to vector<8x1xf32>
    %340 = vector.broadcast %339 : vector<8x1xf32> to vector<8x4xf32>
    %341 = arith.mulf %338, %340 : vector<8x4xf32>
    %342 = vector.extract_strided_slice %146 {offsets = [0, 4], sizes = [8, 4], strides = [1, 1]} : vector<8x32xf32> to vector<8x4xf32>
    %343 = vector.extract_strided_slice %337 {offsets = [0, 1], sizes = [8, 1], strides = [1, 1]} : vector<8x8xf32> to vector<8x1xf32>
    %344 = vector.broadcast %343 : vector<8x1xf32> to vector<8x4xf32>
    %345 = arith.mulf %342, %344 : vector<8x4xf32>
    %346 = arith.addf %341, %345 : vector<8x4xf32>
    %347 = vector.extract_strided_slice %146 {offsets = [0, 8], sizes = [8, 4], strides = [1, 1]} : vector<8x32xf32> to vector<8x4xf32>
    %348 = vector.extract_strided_slice %337 {offsets = [0, 2], sizes = [8, 1], strides = [1, 1]} : vector<8x8xf32> to vector<8x1xf32>
    %349 = vector.broadcast %348 : vector<8x1xf32> to vector<8x4xf32>
    %350 = arith.mulf %347, %349 : vector<8x4xf32>
    %351 = arith.addf %346, %350 : vector<8x4xf32>
    %352 = vector.extract_strided_slice %146 {offsets = [0, 12], sizes = [8, 4], strides = [1, 1]} : vector<8x32xf32> to vector<8x4xf32>
    %353 = vector.extract_strided_slice %337 {offsets = [0, 3], sizes = [8, 1], strides = [1, 1]} : vector<8x8xf32> to vector<8x1xf32>
    %354 = vector.broadcast %353 : vector<8x1xf32> to vector<8x4xf32>
    %355 = arith.mulf %352, %354 : vector<8x4xf32>
    %356 = arith.addf %351, %355 : vector<8x4xf32>
    %357 = vector.extract_strided_slice %146 {offsets = [0, 16], sizes = [8, 4], strides = [1, 1]} : vector<8x32xf32> to vector<8x4xf32>
    %358 = vector.extract_strided_slice %337 {offsets = [0, 4], sizes = [8, 1], strides = [1, 1]} : vector<8x8xf32> to vector<8x1xf32>
    %359 = vector.broadcast %358 : vector<8x1xf32> to vector<8x4xf32>
    %360 = arith.mulf %357, %359 : vector<8x4xf32>
    %361 = arith.addf %356, %360 : vector<8x4xf32>
    %362 = vector.extract_strided_slice %146 {offsets = [0, 20], sizes = [8, 4], strides = [1, 1]} : vector<8x32xf32> to vector<8x4xf32>
    %363 = vector.extract_strided_slice %337 {offsets = [0, 5], sizes = [8, 1], strides = [1, 1]} : vector<8x8xf32> to vector<8x1xf32>
    %364 = vector.broadcast %363 : vector<8x1xf32> to vector<8x4xf32>
    %365 = arith.mulf %362, %364 : vector<8x4xf32>
    %366 = arith.addf %361, %365 : vector<8x4xf32>
    %367 = vector.extract_strided_slice %146 {offsets = [0, 24], sizes = [8, 4], strides = [1, 1]} : vector<8x32xf32> to vector<8x4xf32>
    %368 = vector.extract_strided_slice %337 {offsets = [0, 6], sizes = [8, 1], strides = [1, 1]} : vector<8x8xf32> to vector<8x1xf32>
    %369 = vector.broadcast %368 : vector<8x1xf32> to vector<8x4xf32>
    %370 = arith.mulf %367, %369 : vector<8x4xf32>
    %371 = arith.addf %366, %370 : vector<8x4xf32>
    %372 = vector.extract_strided_slice %146 {offsets = [0, 28], sizes = [8, 4], strides = [1, 1]} : vector<8x32xf32> to vector<8x4xf32>
    %373 = vector.extract_strided_slice %337 {offsets = [0, 7], sizes = [8, 1], strides = [1, 1]} : vector<8x8xf32> to vector<8x1xf32>
    %374 = vector.broadcast %373 : vector<8x1xf32> to vector<8x4xf32>
    %375 = arith.mulf %372, %374 : vector<8x4xf32>
    %376 = arith.addf %371, %375 : vector<8x4xf32>
    %c0_107 = arith.constant 0 : index
    %377 = arith.index_cast %c1_i32 : i32 to index
    %c0_108 = arith.constant 0 : index
    %c0_109 = arith.constant 0 : index
    %378 = vector.load %arg13[%c0_107, %377, %c0_108, %c0_109] : memref<1x4x8x4xf32, #tpu.memory_space<vmem>>, vector<1x1x8x4xf32>
    %379 = vector.shape_cast %378 : vector<1x1x8x4xf32> to vector<8x4xf32>
    %380 = vector.shape_cast %376 : vector<8x4xf32> to vector<1x1x8x4xf32>
    tpu.vector_store %arg13[%c0_107, %377, %c0_108, %c0_109], %380 {strides = array<i32>} : memref<1x4x8x4xf32, #tpu.memory_space<vmem>>, vector<1x1x8x4xf32>,
    %381 = arith.mulf %147, %335 : vector<8x8xf32>
    %cst_110 = arith.constant dense<0.000000e+00> : vector<8xf32>
    %382 = vector.multi_reduction <add>, %381, %cst_110 [1] : vector<8x8xf32> to vector<8xf32>
    %383 = vector.shape_cast %382 : vector<8xf32> to vector<8x1xf32>
    %384 = arith.fptosi %383 : vector<8x1xf32> to vector<8x1xi32>
    %c2_i32 = arith.constant 2 : i32
    %cst_111 = arith.constant dense<0.000000e+00> : vector<8x2xf32>
    %385 = tpu.matmul %376, %4, %cst_111 {dimension_numbers = #tpu.dot_dimension_numbers<[1], [0], [0], [1], [0, 0, 1, 1], [], []>} : vector<8x4xf32>, vector<4x2xf32>, vector<8x2xf32> -> vector<8x2xf32>
    %cst_112 = arith.constant dense<0.000000e+00> : vector<8x2xf32>
    %386 = tpu.matmul %140, %5, %cst_112 {dimension_numbers = #tpu.dot_dimension_numbers<[1], [0], [0], [1], [0, 0, 1, 1], [], []>} : vector<8x4xf32>, vector<4x2xf32>, vector<8x2xf32> -> vector<8x2xf32>
    %387 = arith.addf %385, %386 : vector<8x2xf32>
    %388 = vector.broadcast %8 : vector<1x2xf32> to vector<8x2xf32>
    %389 = arith.mulf %387, %388 : vector<8x2xf32>
    %390 = vector.broadcast %9 : vector<1x2xf32> to vector<8x2xf32>
    %391 = arith.addf %389, %390 : vector<8x2xf32>
    %cst_113 = arith.constant dense<0xFF800000> : vector<8xf32>
    %392 = vector.multi_reduction <maximumf>, %391, %cst_113 [1] : vector<8x2xf32> to vector<8xf32>
    %393 = vector.shape_cast %392 : vector<8xf32> to vector<8x1xf32>
    %394 = vector.broadcast %393 : vector<8x1xf32> to vector<8x2xf32>
    %395 = arith.subf %391, %394 : vector<8x2xf32>
    %396 = math.exp %395 : vector<8x2xf32>
    %cst_114 = arith.constant dense<0.000000e+00> : vector<8xf32>
    %397 = vector.multi_reduction <add>, %396, %cst_114 [1] : vector<8x2xf32> to vector<8xf32>
    %398 = vector.shape_cast %397 : vector<8xf32> to vector<8x1xf32>
    %399 = vector.broadcast %398 : vector<8x1xf32> to vector<8x2xf32>
    %400 = arith.divf %396, %399 : vector<8x2xf32>
    %cst_115 = arith.constant dense<0.000000e+00> : vector<8x2xf32>
    %401 = tpu.matmul %10, %400, %cst_115 {dimension_numbers = #tpu.dot_dimension_numbers<[1], [0], [0], [1], [0, 0, 1, 1], [], []>} : vector<8x8xf32>, vector<8x2xf32>, vector<8x2xf32> -> vector<8x2xf32>
    %cst_116 = arith.constant dense<0.000000e+00> : vector<8x2xf32>
    %402 = tpu.matmul %11, %400, %cst_116 {dimension_numbers = #tpu.dot_dimension_numbers<[1], [0], [0], [1], [0, 0, 1, 1], [], []>} : vector<8x8xf32>, vector<8x2xf32>, vector<8x2xf32> -> vector<8x2xf32>
    %403 = vector.extract_strided_slice %401 {offsets = [0, 0], sizes = [8, 1], strides = [1, 1]} : vector<8x2xf32> to vector<8x1xf32>
    %404 = arith.mulf %403, %12 : vector<8x1xf32>
    %405 = vector.extract_strided_slice %401 {offsets = [0, 1], sizes = [8, 1], strides = [1, 1]} : vector<8x2xf32> to vector<8x1xf32>
    %406 = arith.mulf %405, %15 : vector<8x1xf32>
    %407 = arith.addf %404, %406 : vector<8x1xf32>
    %408 = vector.extract_strided_slice %402 {offsets = [0, 0], sizes = [8, 1], strides = [1, 1]} : vector<8x2xf32> to vector<8x1xf32>
    %409 = arith.mulf %408, %13 : vector<8x1xf32>
    %410 = vector.extract_strided_slice %402 {offsets = [0, 1], sizes = [8, 1], strides = [1, 1]} : vector<8x2xf32> to vector<8x1xf32>
    %411 = arith.mulf %410, %17 : vector<8x1xf32>
    %412 = arith.addf %409, %411 : vector<8x1xf32>
    %413 = vector.broadcast %407 : vector<8x1xf32> to vector<8x4xf32>
    %414 = arith.mulf %376, %413 : vector<8x4xf32>
    %415 = vector.broadcast %412 : vector<8x1xf32> to vector<8x4xf32>
    %416 = arith.mulf %140, %415 : vector<8x4xf32>
    %417 = arith.addf %414, %416 : vector<8x4xf32>
    %418 = vector.broadcast %384 : vector<8x1xi32> to vector<8x16xi32>
    %419 = arith.cmpi eq, %418, %18 : vector<8x16xi32>
    %420 = arith.extui %419 : vector<8x16xi1> to vector<8x16xi32>
    %421 = arith.sitofp %420 : vector<8x16xi32> to vector<8x16xf32>
    %cst_117 = arith.constant dense<0.000000e+00> : vector<8x40xf32>
    %422 = tpu.matmul %421, %1, %cst_117 {dimension_numbers = #tpu.dot_dimension_numbers<[1], [0], [0], [1], [0, 0, 1, 1], [], []>} : vector<8x16xf32>, vector<16x40xf32>, vector<8x40xf32> -> vector<8x40xf32>
    %423 = vector.extract_strided_slice %422 {offsets = [0, 0], sizes = [8, 32], strides = [1, 1]} : vector<8x40xf32> to vector<8x32xf32>
    %424 = vector.extract_strided_slice %422 {offsets = [0, 32], sizes = [8, 8], strides = [1, 1]} : vector<8x40xf32> to vector<8x8xf32>
    %cst_118 = arith.constant dense<0.000000e+00> : vector<8x8xf32>
    %425 = tpu.matmul %423, %2, %cst_118 {dimension_numbers = #tpu.dot_dimension_numbers<[1], [0], [0], [1], [0, 0, 1, 1], [], []>} : vector<8x32xf32>, vector<32x8xf32>, vector<8x8xf32> -> vector<8x8xf32>
    %cst_119 = arith.constant dense<0.000000e+00> : vector<8x1xf32>
    %426 = tpu.matmul %417, %3, %cst_119 {dimension_numbers = #tpu.dot_dimension_numbers<[1], [0], [0], [1], [0, 0, 1, 1], [], []>} : vector<8x4xf32>, vector<4x1xf32>, vector<8x1xf32> -> vector<8x1xf32>
    %427 = vector.broadcast %426 : vector<8x1xf32> to vector<8x8xf32>
    %428 = arith.addf %425, %427 : vector<8x8xf32>
    %429 = vector.broadcast %6 : vector<1x1xf32> to vector<8x8xf32>
    %430 = arith.mulf %428, %429 : vector<8x8xf32>
    %431 = vector.broadcast %7 : vector<1x1xf32> to vector<8x8xf32>
    %432 = arith.addf %430, %431 : vector<8x8xf32>
    %433 = arith.subf %376, %417 : vector<8x4xf32>
    %434 = arith.mulf %433, %433 : vector<8x4xf32>
    %cst_120 = arith.constant dense<0.000000e+00> : vector<8xf32>
    %435 = vector.multi_reduction <add>, %434, %cst_120 [1] : vector<8x4xf32> to vector<8xf32>
    %436 = vector.shape_cast %435 : vector<8xf32> to vector<8x1xf32>
    %437 = math.sqrt %436 : vector<8x1xf32>
    %438 = vector.extract_strided_slice %423 {offsets = [0, 0], sizes = [8, 4], strides = [1, 1]} : vector<8x32xf32> to vector<8x4xf32>
    %439 = arith.subf %438, %376 : vector<8x4xf32>
    %440 = arith.mulf %439, %433 : vector<8x4xf32>
    %cst_121 = arith.constant dense<0.000000e+00> : vector<8xf32>
    %441 = vector.multi_reduction <add>, %440, %cst_121 [1] : vector<8x4xf32> to vector<8xf32>
    %442 = vector.shape_cast %441 : vector<8xf32> to vector<8x1xf32>
    %443 = arith.mulf %439, %439 : vector<8x4xf32>
    %cst_122 = arith.constant dense<0.000000e+00> : vector<8xf32>
    %444 = vector.multi_reduction <add>, %443, %cst_122 [1] : vector<8x4xf32> to vector<8xf32>
    %445 = vector.shape_cast %444 : vector<8xf32> to vector<8x1xf32>
    %446 = math.sqrt %445 : vector<8x1xf32>
    %447 = arith.mulf %437, %446 : vector<8x1xf32>
    %cst_123 = arith.constant 9.99999993E-9 : f32
    %448 = vector.broadcast %cst_123 : f32 to vector<8x1xf32>
    %449 = arith.maximumf %447, %448 : vector<8x1xf32>
    %450 = arith.divf %442, %449 : vector<8x1xf32>
    %cst_124 = arith.constant 1.000000e+00 : f32
    %451 = vector.broadcast %cst_124 : f32 to vector<8x1xf32>
    %452 = arith.addf %451, %450 : vector<8x1xf32>
    %cst_125 = arith.constant 0.000000e+00 : f32
    %cst_126 = arith.constant 1.000000e+00 : f32
    %453 = vector.broadcast %cst_125 : f32 to vector<8x1xf32>
    %454 = arith.maximumf %453, %452 : vector<8x1xf32>
    %455 = vector.broadcast %cst_126 : f32 to vector<8x1xf32>
    %456 = arith.minimumf %455, %454 : vector<8x1xf32>
    %457 = vector.extract_strided_slice %423 {offsets = [0, 4], sizes = [8, 4], strides = [1, 1]} : vector<8x32xf32> to vector<8x4xf32>
    %458 = arith.subf %457, %376 : vector<8x4xf32>
    %459 = arith.mulf %458, %433 : vector<8x4xf32>
    %cst_127 = arith.constant dense<0.000000e+00> : vector<8xf32>
    %460 = vector.multi_reduction <add>, %459, %cst_127 [1] : vector<8x4xf32> to vector<8xf32>
    %461 = vector.shape_cast %460 : vector<8xf32> to vector<8x1xf32>
    %462 = arith.mulf %458, %458 : vector<8x4xf32>
    %cst_128 = arith.constant dense<0.000000e+00> : vector<8xf32>
    %463 = vector.multi_reduction <add>, %462, %cst_128 [1] : vector<8x4xf32> to vector<8xf32>
    %464 = vector.shape_cast %463 : vector<8xf32> to vector<8x1xf32>
    %465 = math.sqrt %464 : vector<8x1xf32>
    %466 = arith.mulf %437, %465 : vector<8x1xf32>
    %cst_129 = arith.constant 9.99999993E-9 : f32
    %467 = vector.broadcast %cst_129 : f32 to vector<8x1xf32>
    %468 = arith.maximumf %466, %467 : vector<8x1xf32>
    %469 = arith.divf %461, %468 : vector<8x1xf32>
    %cst_130 = arith.constant 1.000000e+00 : f32
    %470 = vector.broadcast %cst_130 : f32 to vector<8x1xf32>
    %471 = arith.addf %470, %469 : vector<8x1xf32>
    %cst_131 = arith.constant 0.000000e+00 : f32
    %cst_132 = arith.constant 1.000000e+00 : f32
    %472 = vector.broadcast %cst_131 : f32 to vector<8x1xf32>
    %473 = arith.maximumf %472, %471 : vector<8x1xf32>
    %474 = vector.broadcast %cst_132 : f32 to vector<8x1xf32>
    %475 = arith.minimumf %474, %473 : vector<8x1xf32>
    %476 = vector.extract_strided_slice %423 {offsets = [0, 8], sizes = [8, 4], strides = [1, 1]} : vector<8x32xf32> to vector<8x4xf32>
    %477 = arith.subf %476, %376 : vector<8x4xf32>
    %478 = arith.mulf %477, %433 : vector<8x4xf32>
    %cst_133 = arith.constant dense<0.000000e+00> : vector<8xf32>
    %479 = vector.multi_reduction <add>, %478, %cst_133 [1] : vector<8x4xf32> to vector<8xf32>
    %480 = vector.shape_cast %479 : vector<8xf32> to vector<8x1xf32>
    %481 = arith.mulf %477, %477 : vector<8x4xf32>
    %cst_134 = arith.constant dense<0.000000e+00> : vector<8xf32>
    %482 = vector.multi_reduction <add>, %481, %cst_134 [1] : vector<8x4xf32> to vector<8xf32>
    %483 = vector.shape_cast %482 : vector<8xf32> to vector<8x1xf32>
    %484 = math.sqrt %483 : vector<8x1xf32>
    %485 = arith.mulf %437, %484 : vector<8x1xf32>
    %cst_135 = arith.constant 9.99999993E-9 : f32
    %486 = vector.broadcast %cst_135 : f32 to vector<8x1xf32>
    %487 = arith.maximumf %485, %486 : vector<8x1xf32>
    %488 = arith.divf %480, %487 : vector<8x1xf32>
    %cst_136 = arith.constant 1.000000e+00 : f32
    %489 = vector.broadcast %cst_136 : f32 to vector<8x1xf32>
    %490 = arith.addf %489, %488 : vector<8x1xf32>
    %cst_137 = arith.constant 0.000000e+00 : f32
    %cst_138 = arith.constant 1.000000e+00 : f32
    %491 = vector.broadcast %cst_137 : f32 to vector<8x1xf32>
    %492 = arith.maximumf %491, %490 : vector<8x1xf32>
    %493 = vector.broadcast %cst_138 : f32 to vector<8x1xf32>
    %494 = arith.minimumf %493, %492 : vector<8x1xf32>
    %495 = vector.extract_strided_slice %423 {offsets = [0, 12], sizes = [8, 4], strides = [1, 1]} : vector<8x32xf32> to vector<8x4xf32>
    %496 = arith.subf %495, %376 : vector<8x4xf32>
    %497 = arith.mulf %496, %433 : vector<8x4xf32>
    %cst_139 = arith.constant dense<0.000000e+00> : vector<8xf32>
    %498 = vector.multi_reduction <add>, %497, %cst_139 [1] : vector<8x4xf32> to vector<8xf32>
    %499 = vector.shape_cast %498 : vector<8xf32> to vector<8x1xf32>
    %500 = arith.mulf %496, %496 : vector<8x4xf32>
    %cst_140 = arith.constant dense<0.000000e+00> : vector<8xf32>
    %501 = vector.multi_reduction <add>, %500, %cst_140 [1] : vector<8x4xf32> to vector<8xf32>
    %502 = vector.shape_cast %501 : vector<8xf32> to vector<8x1xf32>
    %503 = math.sqrt %502 : vector<8x1xf32>
    %504 = arith.mulf %437, %503 : vector<8x1xf32>
    %cst_141 = arith.constant 9.99999993E-9 : f32
    %505 = vector.broadcast %cst_141 : f32 to vector<8x1xf32>
    %506 = arith.maximumf %504, %505 : vector<8x1xf32>
    %507 = arith.divf %499, %506 : vector<8x1xf32>
    %cst_142 = arith.constant 1.000000e+00 : f32
    %508 = vector.broadcast %cst_142 : f32 to vector<8x1xf32>
    %509 = arith.addf %508, %507 : vector<8x1xf32>
    %cst_143 = arith.constant 0.000000e+00 : f32
    %cst_144 = arith.constant 1.000000e+00 : f32
    %510 = vector.broadcast %cst_143 : f32 to vector<8x1xf32>
    %511 = arith.maximumf %510, %509 : vector<8x1xf32>
    %512 = vector.broadcast %cst_144 : f32 to vector<8x1xf32>
    %513 = arith.minimumf %512, %511 : vector<8x1xf32>
    %514 = vector.extract_strided_slice %423 {offsets = [0, 16], sizes = [8, 4], strides = [1, 1]} : vector<8x32xf32> to vector<8x4xf32>
    %515 = arith.subf %514, %376 : vector<8x4xf32>
    %516 = arith.mulf %515, %433 : vector<8x4xf32>
    %cst_145 = arith.constant dense<0.000000e+00> : vector<8xf32>
    %517 = vector.multi_reduction <add>, %516, %cst_145 [1] : vector<8x4xf32> to vector<8xf32>
    %518 = vector.shape_cast %517 : vector<8xf32> to vector<8x1xf32>
    %519 = arith.mulf %515, %515 : vector<8x4xf32>
    %cst_146 = arith.constant dense<0.000000e+00> : vector<8xf32>
    %520 = vector.multi_reduction <add>, %519, %cst_146 [1] : vector<8x4xf32> to vector<8xf32>
    %521 = vector.shape_cast %520 : vector<8xf32> to vector<8x1xf32>
    %522 = math.sqrt %521 : vector<8x1xf32>
    %523 = arith.mulf %437, %522 : vector<8x1xf32>
    %cst_147 = arith.constant 9.99999993E-9 : f32
    %524 = vector.broadcast %cst_147 : f32 to vector<8x1xf32>
    %525 = arith.maximumf %523, %524 : vector<8x1xf32>
    %526 = arith.divf %518, %525 : vector<8x1xf32>
    %cst_148 = arith.constant 1.000000e+00 : f32
    %527 = vector.broadcast %cst_148 : f32 to vector<8x1xf32>
    %528 = arith.addf %527, %526 : vector<8x1xf32>
    %cst_149 = arith.constant 0.000000e+00 : f32
    %cst_150 = arith.constant 1.000000e+00 : f32
    %529 = vector.broadcast %cst_149 : f32 to vector<8x1xf32>
    %530 = arith.maximumf %529, %528 : vector<8x1xf32>
    %531 = vector.broadcast %cst_150 : f32 to vector<8x1xf32>
    %532 = arith.minimumf %531, %530 : vector<8x1xf32>
    %533 = vector.extract_strided_slice %423 {offsets = [0, 20], sizes = [8, 4], strides = [1, 1]} : vector<8x32xf32> to vector<8x4xf32>
    %534 = arith.subf %533, %376 : vector<8x4xf32>
    %535 = arith.mulf %534, %433 : vector<8x4xf32>
    %cst_151 = arith.constant dense<0.000000e+00> : vector<8xf32>
    %536 = vector.multi_reduction <add>, %535, %cst_151 [1] : vector<8x4xf32> to vector<8xf32>
    %537 = vector.shape_cast %536 : vector<8xf32> to vector<8x1xf32>
    %538 = arith.mulf %534, %534 : vector<8x4xf32>
    %cst_152 = arith.constant dense<0.000000e+00> : vector<8xf32>
    %539 = vector.multi_reduction <add>, %538, %cst_152 [1] : vector<8x4xf32> to vector<8xf32>
    %540 = vector.shape_cast %539 : vector<8xf32> to vector<8x1xf32>
    %541 = math.sqrt %540 : vector<8x1xf32>
    %542 = arith.mulf %437, %541 : vector<8x1xf32>
    %cst_153 = arith.constant 9.99999993E-9 : f32
    %543 = vector.broadcast %cst_153 : f32 to vector<8x1xf32>
    %544 = arith.maximumf %542, %543 : vector<8x1xf32>
    %545 = arith.divf %537, %544 : vector<8x1xf32>
    %cst_154 = arith.constant 1.000000e+00 : f32
    %546 = vector.broadcast %cst_154 : f32 to vector<8x1xf32>
    %547 = arith.addf %546, %545 : vector<8x1xf32>
    %cst_155 = arith.constant 0.000000e+00 : f32
    %cst_156 = arith.constant 1.000000e+00 : f32
    %548 = vector.broadcast %cst_155 : f32 to vector<8x1xf32>
    %549 = arith.maximumf %548, %547 : vector<8x1xf32>
    %550 = vector.broadcast %cst_156 : f32 to vector<8x1xf32>
    %551 = arith.minimumf %550, %549 : vector<8x1xf32>
    %552 = vector.extract_strided_slice %423 {offsets = [0, 24], sizes = [8, 4], strides = [1, 1]} : vector<8x32xf32> to vector<8x4xf32>
    %553 = arith.subf %552, %376 : vector<8x4xf32>
    %554 = arith.mulf %553, %433 : vector<8x4xf32>
    %cst_157 = arith.constant dense<0.000000e+00> : vector<8xf32>
    %555 = vector.multi_reduction <add>, %554, %cst_157 [1] : vector<8x4xf32> to vector<8xf32>
    %556 = vector.shape_cast %555 : vector<8xf32> to vector<8x1xf32>
    %557 = arith.mulf %553, %553 : vector<8x4xf32>
    %cst_158 = arith.constant dense<0.000000e+00> : vector<8xf32>
    %558 = vector.multi_reduction <add>, %557, %cst_158 [1] : vector<8x4xf32> to vector<8xf32>
    %559 = vector.shape_cast %558 : vector<8xf32> to vector<8x1xf32>
    %560 = math.sqrt %559 : vector<8x1xf32>
    %561 = arith.mulf %437, %560 : vector<8x1xf32>
    %cst_159 = arith.constant 9.99999993E-9 : f32
    %562 = vector.broadcast %cst_159 : f32 to vector<8x1xf32>
    %563 = arith.maximumf %561, %562 : vector<8x1xf32>
    %564 = arith.divf %556, %563 : vector<8x1xf32>
    %cst_160 = arith.constant 1.000000e+00 : f32
    %565 = vector.broadcast %cst_160 : f32 to vector<8x1xf32>
    %566 = arith.addf %565, %564 : vector<8x1xf32>
    %cst_161 = arith.constant 0.000000e+00 : f32
    %cst_162 = arith.constant 1.000000e+00 : f32
    %567 = vector.broadcast %cst_161 : f32 to vector<8x1xf32>
    %568 = arith.maximumf %567, %566 : vector<8x1xf32>
    %569 = vector.broadcast %cst_162 : f32 to vector<8x1xf32>
    %570 = arith.minimumf %569, %568 : vector<8x1xf32>
    %571 = vector.extract_strided_slice %423 {offsets = [0, 28], sizes = [8, 4], strides = [1, 1]} : vector<8x32xf32> to vector<8x4xf32>
    %572 = arith.subf %571, %376 : vector<8x4xf32>
    %573 = arith.mulf %572, %433 : vector<8x4xf32>
    %cst_163 = arith.constant dense<0.000000e+00> : vector<8xf32>
    %574 = vector.multi_reduction <add>, %573, %cst_163 [1] : vector<8x4xf32> to vector<8xf32>
    %575 = vector.shape_cast %574 : vector<8xf32> to vector<8x1xf32>
    %576 = arith.mulf %572, %572 : vector<8x4xf32>
    %cst_164 = arith.constant dense<0.000000e+00> : vector<8xf32>
    %577 = vector.multi_reduction <add>, %576, %cst_164 [1] : vector<8x4xf32> to vector<8xf32>
    %578 = vector.shape_cast %577 : vector<8xf32> to vector<8x1xf32>
    %579 = math.sqrt %578 : vector<8x1xf32>
    %580 = arith.mulf %437, %579 : vector<8x1xf32>
    %cst_165 = arith.constant 9.99999993E-9 : f32
    %581 = vector.broadcast %cst_165 : f32 to vector<8x1xf32>
    %582 = arith.maximumf %580, %581 : vector<8x1xf32>
    %583 = arith.divf %575, %582 : vector<8x1xf32>
    %cst_166 = arith.constant 1.000000e+00 : f32
    %584 = vector.broadcast %cst_166 : f32 to vector<8x1xf32>
    %585 = arith.addf %584, %583 : vector<8x1xf32>
    %cst_167 = arith.constant 0.000000e+00 : f32
    %cst_168 = arith.constant 1.000000e+00 : f32
    %586 = vector.broadcast %cst_167 : f32 to vector<8x1xf32>
    %587 = arith.maximumf %586, %585 : vector<8x1xf32>
    %588 = vector.broadcast %cst_168 : f32 to vector<8x1xf32>
    %589 = arith.minimumf %588, %587 : vector<8x1xf32>
    %590 = tpu.concatenate %456, %475, %494, %513, %532, %551, %570, %589 in 1 : vector<8x1xf32>, vector<8x1xf32>, vector<8x1xf32>, vector<8x1xf32>, vector<8x1xf32>, vector<8x1xf32>, vector<8x1xf32>, vector<8x1xf32> -> vector<8x8xf32>
    %591 = arith.mulf %432, %590 : vector<8x8xf32>
    %cst_169 = arith.constant dense<0xFF800000> : vector<8xf32>
    %592 = vector.multi_reduction <maximumf>, %591, %cst_169 [1] : vector<8x8xf32> to vector<8xf32>
    %593 = vector.shape_cast %592 : vector<8xf32> to vector<8x1xf32>
    %594 = vector.broadcast %593 : vector<8x1xf32> to vector<8x8xf32>
    %595 = arith.subf %591, %594 : vector<8x8xf32>
    %596 = math.exp %595 : vector<8x8xf32>
    %cst_170 = arith.constant dense<0.000000e+00> : vector<8xf32>
    %597 = vector.multi_reduction <add>, %596, %cst_170 [1] : vector<8x8xf32> to vector<8xf32>
    %598 = vector.shape_cast %597 : vector<8xf32> to vector<8x1xf32>
    %599 = vector.broadcast %598 : vector<8x1xf32> to vector<8x8xf32>
    %600 = arith.divf %596, %599 : vector<8x8xf32>
    %cst_171 = arith.constant dense<0xFF800000> : vector<8xf32>
    %601 = vector.multi_reduction <maximumf>, %600, %cst_171 [1] : vector<8x8xf32> to vector<8xf32>
    %602 = vector.shape_cast %601 : vector<8xf32> to vector<8x1xf32>
    %603 = vector.broadcast %602 : vector<8x1xf32> to vector<8x8xf32>
    %604 = arith.cmpf oeq, %600, %603 : vector<8x8xf32>
    %c8_i32_172 = arith.constant 8 : i32
    %605 = vector.broadcast %c8_i32_172 : i32 to vector<8x8xi32>
    %606 = arith.select %604, %19, %605 : vector<8x8xi1>, vector<8x8xi32>
    %cst_173 = arith.constant dense<2147483647> : vector<8xi32>
    %607 = vector.multi_reduction <minsi>, %606, %cst_173 [1] : vector<8x8xi32> to vector<8xi32>
    %608 = vector.shape_cast %607 : vector<8xi32> to vector<8x1xi32>
    %609 = vector.broadcast %608 : vector<8x1xi32> to vector<8x8xi32>
    %610 = arith.cmpi eq, %19, %609 : vector<8x8xi32>
    %611 = arith.extui %610 : vector<8x8xi1> to vector<8x8xi32>
    %612 = arith.sitofp %611 : vector<8x8xi32> to vector<8x8xf32>
    %613 = arith.subf %612, %600 : vector<8x8xf32>
    %614 = arith.addf %613, %600 : vector<8x8xf32>
    %615 = vector.extract_strided_slice %423 {offsets = [0, 0], sizes = [8, 4], strides = [1, 1]} : vector<8x32xf32> to vector<8x4xf32>
    %616 = vector.extract_strided_slice %614 {offsets = [0, 0], sizes = [8, 1], strides = [1, 1]} : vector<8x8xf32> to vector<8x1xf32>
    %617 = vector.broadcast %616 : vector<8x1xf32> to vector<8x4xf32>
    %618 = arith.mulf %615, %617 : vector<8x4xf32>
    %619 = vector.extract_strided_slice %423 {offsets = [0, 4], sizes = [8, 4], strides = [1, 1]} : vector<8x32xf32> to vector<8x4xf32>
    %620 = vector.extract_strided_slice %614 {offsets = [0, 1], sizes = [8, 1], strides = [1, 1]} : vector<8x8xf32> to vector<8x1xf32>
    %621 = vector.broadcast %620 : vector<8x1xf32> to vector<8x4xf32>
    %622 = arith.mulf %619, %621 : vector<8x4xf32>
    %623 = arith.addf %618, %622 : vector<8x4xf32>
    %624 = vector.extract_strided_slice %423 {offsets = [0, 8], sizes = [8, 4], strides = [1, 1]} : vector<8x32xf32> to vector<8x4xf32>
    %625 = vector.extract_strided_slice %614 {offsets = [0, 2], sizes = [8, 1], strides = [1, 1]} : vector<8x8xf32> to vector<8x1xf32>
    %626 = vector.broadcast %625 : vector<8x1xf32> to vector<8x4xf32>
    %627 = arith.mulf %624, %626 : vector<8x4xf32>
    %628 = arith.addf %623, %627 : vector<8x4xf32>
    %629 = vector.extract_strided_slice %423 {offsets = [0, 12], sizes = [8, 4], strides = [1, 1]} : vector<8x32xf32> to vector<8x4xf32>
    %630 = vector.extract_strided_slice %614 {offsets = [0, 3], sizes = [8, 1], strides = [1, 1]} : vector<8x8xf32> to vector<8x1xf32>
    %631 = vector.broadcast %630 : vector<8x1xf32> to vector<8x4xf32>
    %632 = arith.mulf %629, %631 : vector<8x4xf32>
    %633 = arith.addf %628, %632 : vector<8x4xf32>
    %634 = vector.extract_strided_slice %423 {offsets = [0, 16], sizes = [8, 4], strides = [1, 1]} : vector<8x32xf32> to vector<8x4xf32>
    %635 = vector.extract_strided_slice %614 {offsets = [0, 4], sizes = [8, 1], strides = [1, 1]} : vector<8x8xf32> to vector<8x1xf32>
    %636 = vector.broadcast %635 : vector<8x1xf32> to vector<8x4xf32>
    %637 = arith.mulf %634, %636 : vector<8x4xf32>
    %638 = arith.addf %633, %637 : vector<8x4xf32>
    %639 = vector.extract_strided_slice %423 {offsets = [0, 20], sizes = [8, 4], strides = [1, 1]} : vector<8x32xf32> to vector<8x4xf32>
    %640 = vector.extract_strided_slice %614 {offsets = [0, 5], sizes = [8, 1], strides = [1, 1]} : vector<8x8xf32> to vector<8x1xf32>
    %641 = vector.broadcast %640 : vector<8x1xf32> to vector<8x4xf32>
    %642 = arith.mulf %639, %641 : vector<8x4xf32>
    %643 = arith.addf %638, %642 : vector<8x4xf32>
    %644 = vector.extract_strided_slice %423 {offsets = [0, 24], sizes = [8, 4], strides = [1, 1]} : vector<8x32xf32> to vector<8x4xf32>
    %645 = vector.extract_strided_slice %614 {offsets = [0, 6], sizes = [8, 1], strides = [1, 1]} : vector<8x8xf32> to vector<8x1xf32>
    %646 = vector.broadcast %645 : vector<8x1xf32> to vector<8x4xf32>
    %647 = arith.mulf %644, %646 : vector<8x4xf32>
    %648 = arith.addf %643, %647 : vector<8x4xf32>
    %649 = vector.extract_strided_slice %423 {offsets = [0, 28], sizes = [8, 4], strides = [1, 1]} : vector<8x32xf32> to vector<8x4xf32>
    %650 = vector.extract_strided_slice %614 {offsets = [0, 7], sizes = [8, 1], strides = [1, 1]} : vector<8x8xf32> to vector<8x1xf32>
    %651 = vector.broadcast %650 : vector<8x1xf32> to vector<8x4xf32>
    %652 = arith.mulf %649, %651 : vector<8x4xf32>
    %653 = arith.addf %648, %652 : vector<8x4xf32>
    %c0_174 = arith.constant 0 : index
    %654 = arith.index_cast %c2_i32 : i32 to index
    %c0_175 = arith.constant 0 : index
    %c0_176 = arith.constant 0 : index
    %655 = vector.load %arg13[%c0_174, %654, %c0_175, %c0_176] : memref<1x4x8x4xf32, #tpu.memory_space<vmem>>, vector<1x1x8x4xf32>
    %656 = vector.shape_cast %655 : vector<1x1x8x4xf32> to vector<8x4xf32>
    %657 = vector.shape_cast %653 : vector<8x4xf32> to vector<1x1x8x4xf32>
    tpu.vector_store %arg13[%c0_174, %654, %c0_175, %c0_176], %657 {strides = array<i32>} : memref<1x4x8x4xf32, #tpu.memory_space<vmem>>, vector<1x1x8x4xf32>,
    %658 = arith.mulf %424, %612 : vector<8x8xf32>
    %cst_177 = arith.constant dense<0.000000e+00> : vector<8xf32>
    %659 = vector.multi_reduction <add>, %658, %cst_177 [1] : vector<8x8xf32> to vector<8xf32>
    %660 = vector.shape_cast %659 : vector<8xf32> to vector<8x1xf32>
    %661 = arith.fptosi %660 : vector<8x1xf32> to vector<8x1xi32>
    %c3_i32 = arith.constant 3 : i32
    %cst_178 = arith.constant dense<0.000000e+00> : vector<8x2xf32>
    %662 = tpu.matmul %653, %4, %cst_178 {dimension_numbers = #tpu.dot_dimension_numbers<[1], [0], [0], [1], [0, 0, 1, 1], [], []>} : vector<8x4xf32>, vector<4x2xf32>, vector<8x2xf32> -> vector<8x2xf32>
    %cst_179 = arith.constant dense<0.000000e+00> : vector<8x2xf32>
    %663 = tpu.matmul %417, %5, %cst_179 {dimension_numbers = #tpu.dot_dimension_numbers<[1], [0], [0], [1], [0, 0, 1, 1], [], []>} : vector<8x4xf32>, vector<4x2xf32>, vector<8x2xf32> -> vector<8x2xf32>
    %664 = arith.addf %662, %663 : vector<8x2xf32>
    %665 = vector.broadcast %8 : vector<1x2xf32> to vector<8x2xf32>
    %666 = arith.mulf %664, %665 : vector<8x2xf32>
    %667 = vector.broadcast %9 : vector<1x2xf32> to vector<8x2xf32>
    %668 = arith.addf %666, %667 : vector<8x2xf32>
    %cst_180 = arith.constant dense<0xFF800000> : vector<8xf32>
    %669 = vector.multi_reduction <maximumf>, %668, %cst_180 [1] : vector<8x2xf32> to vector<8xf32>
    %670 = vector.shape_cast %669 : vector<8xf32> to vector<8x1xf32>
    %671 = vector.broadcast %670 : vector<8x1xf32> to vector<8x2xf32>
    %672 = arith.subf %668, %671 : vector<8x2xf32>
    %673 = math.exp %672 : vector<8x2xf32>
    %cst_181 = arith.constant dense<0.000000e+00> : vector<8xf32>
    %674 = vector.multi_reduction <add>, %673, %cst_181 [1] : vector<8x2xf32> to vector<8xf32>
    %675 = vector.shape_cast %674 : vector<8xf32> to vector<8x1xf32>
    %676 = vector.broadcast %675 : vector<8x1xf32> to vector<8x2xf32>
    %677 = arith.divf %673, %676 : vector<8x2xf32>
    %cst_182 = arith.constant dense<0.000000e+00> : vector<8x2xf32>
    %678 = tpu.matmul %10, %677, %cst_182 {dimension_numbers = #tpu.dot_dimension_numbers<[1], [0], [0], [1], [0, 0, 1, 1], [], []>} : vector<8x8xf32>, vector<8x2xf32>, vector<8x2xf32> -> vector<8x2xf32>
    %cst_183 = arith.constant dense<0.000000e+00> : vector<8x2xf32>
    %679 = tpu.matmul %11, %677, %cst_183 {dimension_numbers = #tpu.dot_dimension_numbers<[1], [0], [0], [1], [0, 0, 1, 1], [], []>} : vector<8x8xf32>, vector<8x2xf32>, vector<8x2xf32> -> vector<8x2xf32>
    %680 = vector.extract_strided_slice %678 {offsets = [0, 0], sizes = [8, 1], strides = [1, 1]} : vector<8x2xf32> to vector<8x1xf32>
    %681 = arith.mulf %680, %12 : vector<8x1xf32>
    %682 = vector.extract_strided_slice %678 {offsets = [0, 1], sizes = [8, 1], strides = [1, 1]} : vector<8x2xf32> to vector<8x1xf32>
    %683 = arith.mulf %682, %15 : vector<8x1xf32>
    %684 = arith.addf %681, %683 : vector<8x1xf32>
    %685 = vector.extract_strided_slice %679 {offsets = [0, 0], sizes = [8, 1], strides = [1, 1]} : vector<8x2xf32> to vector<8x1xf32>
    %686 = arith.mulf %685, %13 : vector<8x1xf32>
    %687 = vector.extract_strided_slice %679 {offsets = [0, 1], sizes = [8, 1], strides = [1, 1]} : vector<8x2xf32> to vector<8x1xf32>
    %688 = arith.mulf %687, %17 : vector<8x1xf32>
    %689 = arith.addf %686, %688 : vector<8x1xf32>
    %690 = vector.broadcast %684 : vector<8x1xf32> to vector<8x4xf32>
    %691 = arith.mulf %653, %690 : vector<8x4xf32>
    %692 = vector.broadcast %689 : vector<8x1xf32> to vector<8x4xf32>
    %693 = arith.mulf %417, %692 : vector<8x4xf32>
    %694 = arith.addf %691, %693 : vector<8x4xf32>
    %695 = vector.broadcast %661 : vector<8x1xi32> to vector<8x16xi32>
    %696 = arith.cmpi eq, %695, %18 : vector<8x16xi32>
    %697 = arith.extui %696 : vector<8x16xi1> to vector<8x16xi32>
    %698 = arith.sitofp %697 : vector<8x16xi32> to vector<8x16xf32>
    %cst_184 = arith.constant dense<0.000000e+00> : vector<8x40xf32>
    %699 = tpu.matmul %698, %1, %cst_184 {dimension_numbers = #tpu.dot_dimension_numbers<[1], [0], [0], [1], [0, 0, 1, 1], [], []>} : vector<8x16xf32>, vector<16x40xf32>, vector<8x40xf32> -> vector<8x40xf32>
    %700 = vector.extract_strided_slice %699 {offsets = [0, 0], sizes = [8, 32], strides = [1, 1]} : vector<8x40xf32> to vector<8x32xf32>
    %701 = vector.extract_strided_slice %699 {offsets = [0, 32], sizes = [8, 8], strides = [1, 1]} : vector<8x40xf32> to vector<8x8xf32>
    %cst_185 = arith.constant dense<0.000000e+00> : vector<8x8xf32>
    %702 = tpu.matmul %700, %2, %cst_185 {dimension_numbers = #tpu.dot_dimension_numbers<[1], [0], [0], [1], [0, 0, 1, 1], [], []>} : vector<8x32xf32>, vector<32x8xf32>, vector<8x8xf32> -> vector<8x8xf32>
    %cst_186 = arith.constant dense<0.000000e+00> : vector<8x1xf32>
    %703 = tpu.matmul %694, %3, %cst_186 {dimension_numbers = #tpu.dot_dimension_numbers<[1], [0], [0], [1], [0, 0, 1, 1], [], []>} : vector<8x4xf32>, vector<4x1xf32>, vector<8x1xf32> -> vector<8x1xf32>
    %704 = vector.broadcast %703 : vector<8x1xf32> to vector<8x8xf32>
    %705 = arith.addf %702, %704 : vector<8x8xf32>
    %706 = vector.broadcast %6 : vector<1x1xf32> to vector<8x8xf32>
    %707 = arith.mulf %705, %706 : vector<8x8xf32>
    %708 = vector.broadcast %7 : vector<1x1xf32> to vector<8x8xf32>
    %709 = arith.addf %707, %708 : vector<8x8xf32>
    %710 = arith.subf %653, %694 : vector<8x4xf32>
    %711 = arith.mulf %710, %710 : vector<8x4xf32>
    %cst_187 = arith.constant dense<0.000000e+00> : vector<8xf32>
    %712 = vector.multi_reduction <add>, %711, %cst_187 [1] : vector<8x4xf32> to vector<8xf32>
    %713 = vector.shape_cast %712 : vector<8xf32> to vector<8x1xf32>
    %714 = math.sqrt %713 : vector<8x1xf32>
    %715 = vector.extract_strided_slice %700 {offsets = [0, 0], sizes = [8, 4], strides = [1, 1]} : vector<8x32xf32> to vector<8x4xf32>
    %716 = arith.subf %715, %653 : vector<8x4xf32>
    %717 = arith.mulf %716, %710 : vector<8x4xf32>
    %cst_188 = arith.constant dense<0.000000e+00> : vector<8xf32>
    %718 = vector.multi_reduction <add>, %717, %cst_188 [1] : vector<8x4xf32> to vector<8xf32>
    %719 = vector.shape_cast %718 : vector<8xf32> to vector<8x1xf32>
    %720 = arith.mulf %716, %716 : vector<8x4xf32>
    %cst_189 = arith.constant dense<0.000000e+00> : vector<8xf32>
    %721 = vector.multi_reduction <add>, %720, %cst_189 [1] : vector<8x4xf32> to vector<8xf32>
    %722 = vector.shape_cast %721 : vector<8xf32> to vector<8x1xf32>
    %723 = math.sqrt %722 : vector<8x1xf32>
    %724 = arith.mulf %714, %723 : vector<8x1xf32>
    %cst_190 = arith.constant 9.99999993E-9 : f32
    %725 = vector.broadcast %cst_190 : f32 to vector<8x1xf32>
    %726 = arith.maximumf %724, %725 : vector<8x1xf32>
    %727 = arith.divf %719, %726 : vector<8x1xf32>
    %cst_191 = arith.constant 1.000000e+00 : f32
    %728 = vector.broadcast %cst_191 : f32 to vector<8x1xf32>
    %729 = arith.addf %728, %727 : vector<8x1xf32>
    %cst_192 = arith.constant 0.000000e+00 : f32
    %cst_193 = arith.constant 1.000000e+00 : f32
    %730 = vector.broadcast %cst_192 : f32 to vector<8x1xf32>
    %731 = arith.maximumf %730, %729 : vector<8x1xf32>
    %732 = vector.broadcast %cst_193 : f32 to vector<8x1xf32>
    %733 = arith.minimumf %732, %731 : vector<8x1xf32>
    %734 = vector.extract_strided_slice %700 {offsets = [0, 4], sizes = [8, 4], strides = [1, 1]} : vector<8x32xf32> to vector<8x4xf32>
    %735 = arith.subf %734, %653 : vector<8x4xf32>
    %736 = arith.mulf %735, %710 : vector<8x4xf32>
    %cst_194 = arith.constant dense<0.000000e+00> : vector<8xf32>
    %737 = vector.multi_reduction <add>, %736, %cst_194 [1] : vector<8x4xf32> to vector<8xf32>
    %738 = vector.shape_cast %737 : vector<8xf32> to vector<8x1xf32>
    %739 = arith.mulf %735, %735 : vector<8x4xf32>
    %cst_195 = arith.constant dense<0.000000e+00> : vector<8xf32>
    %740 = vector.multi_reduction <add>, %739, %cst_195 [1] : vector<8x4xf32> to vector<8xf32>
    %741 = vector.shape_cast %740 : vector<8xf32> to vector<8x1xf32>
    %742 = math.sqrt %741 : vector<8x1xf32>
    %743 = arith.mulf %714, %742 : vector<8x1xf32>
    %cst_196 = arith.constant 9.99999993E-9 : f32
    %744 = vector.broadcast %cst_196 : f32 to vector<8x1xf32>
    %745 = arith.maximumf %743, %744 : vector<8x1xf32>
    %746 = arith.divf %738, %745 : vector<8x1xf32>
    %cst_197 = arith.constant 1.000000e+00 : f32
    %747 = vector.broadcast %cst_197 : f32 to vector<8x1xf32>
    %748 = arith.addf %747, %746 : vector<8x1xf32>
    %cst_198 = arith.constant 0.000000e+00 : f32
    %cst_199 = arith.constant 1.000000e+00 : f32
    %749 = vector.broadcast %cst_198 : f32 to vector<8x1xf32>
    %750 = arith.maximumf %749, %748 : vector<8x1xf32>
    %751 = vector.broadcast %cst_199 : f32 to vector<8x1xf32>
    %752 = arith.minimumf %751, %750 : vector<8x1xf32>
    %753 = vector.extract_strided_slice %700 {offsets = [0, 8], sizes = [8, 4], strides = [1, 1]} : vector<8x32xf32> to vector<8x4xf32>
    %754 = arith.subf %753, %653 : vector<8x4xf32>
    %755 = arith.mulf %754, %710 : vector<8x4xf32>
    %cst_200 = arith.constant dense<0.000000e+00> : vector<8xf32>
    %756 = vector.multi_reduction <add>, %755, %cst_200 [1] : vector<8x4xf32> to vector<8xf32>
    %757 = vector.shape_cast %756 : vector<8xf32> to vector<8x1xf32>
    %758 = arith.mulf %754, %754 : vector<8x4xf32>
    %cst_201 = arith.constant dense<0.000000e+00> : vector<8xf32>
    %759 = vector.multi_reduction <add>, %758, %cst_201 [1] : vector<8x4xf32> to vector<8xf32>
    %760 = vector.shape_cast %759 : vector<8xf32> to vector<8x1xf32>
    %761 = math.sqrt %760 : vector<8x1xf32>
    %762 = arith.mulf %714, %761 : vector<8x1xf32>
    %cst_202 = arith.constant 9.99999993E-9 : f32
    %763 = vector.broadcast %cst_202 : f32 to vector<8x1xf32>
    %764 = arith.maximumf %762, %763 : vector<8x1xf32>
    %765 = arith.divf %757, %764 : vector<8x1xf32>
    %cst_203 = arith.constant 1.000000e+00 : f32
    %766 = vector.broadcast %cst_203 : f32 to vector<8x1xf32>
    %767 = arith.addf %766, %765 : vector<8x1xf32>
    %cst_204 = arith.constant 0.000000e+00 : f32
    %cst_205 = arith.constant 1.000000e+00 : f32
    %768 = vector.broadcast %cst_204 : f32 to vector<8x1xf32>
    %769 = arith.maximumf %768, %767 : vector<8x1xf32>
    %770 = vector.broadcast %cst_205 : f32 to vector<8x1xf32>
    %771 = arith.minimumf %770, %769 : vector<8x1xf32>
    %772 = vector.extract_strided_slice %700 {offsets = [0, 12], sizes = [8, 4], strides = [1, 1]} : vector<8x32xf32> to vector<8x4xf32>
    %773 = arith.subf %772, %653 : vector<8x4xf32>
    %774 = arith.mulf %773, %710 : vector<8x4xf32>
    %cst_206 = arith.constant dense<0.000000e+00> : vector<8xf32>
    %775 = vector.multi_reduction <add>, %774, %cst_206 [1] : vector<8x4xf32> to vector<8xf32>
    %776 = vector.shape_cast %775 : vector<8xf32> to vector<8x1xf32>
    %777 = arith.mulf %773, %773 : vector<8x4xf32>
    %cst_207 = arith.constant dense<0.000000e+00> : vector<8xf32>
    %778 = vector.multi_reduction <add>, %777, %cst_207 [1] : vector<8x4xf32> to vector<8xf32>
    %779 = vector.shape_cast %778 : vector<8xf32> to vector<8x1xf32>
    %780 = math.sqrt %779 : vector<8x1xf32>
    %781 = arith.mulf %714, %780 : vector<8x1xf32>
    %cst_208 = arith.constant 9.99999993E-9 : f32
    %782 = vector.broadcast %cst_208 : f32 to vector<8x1xf32>
    %783 = arith.maximumf %781, %782 : vector<8x1xf32>
    %784 = arith.divf %776, %783 : vector<8x1xf32>
    %cst_209 = arith.constant 1.000000e+00 : f32
    %785 = vector.broadcast %cst_209 : f32 to vector<8x1xf32>
    %786 = arith.addf %785, %784 : vector<8x1xf32>
    %cst_210 = arith.constant 0.000000e+00 : f32
    %cst_211 = arith.constant 1.000000e+00 : f32
    %787 = vector.broadcast %cst_210 : f32 to vector<8x1xf32>
    %788 = arith.maximumf %787, %786 : vector<8x1xf32>
    %789 = vector.broadcast %cst_211 : f32 to vector<8x1xf32>
    %790 = arith.minimumf %789, %788 : vector<8x1xf32>
    %791 = vector.extract_strided_slice %700 {offsets = [0, 16], sizes = [8, 4], strides = [1, 1]} : vector<8x32xf32> to vector<8x4xf32>
    %792 = arith.subf %791, %653 : vector<8x4xf32>
    %793 = arith.mulf %792, %710 : vector<8x4xf32>
    %cst_212 = arith.constant dense<0.000000e+00> : vector<8xf32>
    %794 = vector.multi_reduction <add>, %793, %cst_212 [1] : vector<8x4xf32> to vector<8xf32>
    %795 = vector.shape_cast %794 : vector<8xf32> to vector<8x1xf32>
    %796 = arith.mulf %792, %792 : vector<8x4xf32>
    %cst_213 = arith.constant dense<0.000000e+00> : vector<8xf32>
    %797 = vector.multi_reduction <add>, %796, %cst_213 [1] : vector<8x4xf32> to vector<8xf32>
    %798 = vector.shape_cast %797 : vector<8xf32> to vector<8x1xf32>
    %799 = math.sqrt %798 : vector<8x1xf32>
    %800 = arith.mulf %714, %799 : vector<8x1xf32>
    %cst_214 = arith.constant 9.99999993E-9 : f32
    %801 = vector.broadcast %cst_214 : f32 to vector<8x1xf32>
    %802 = arith.maximumf %800, %801 : vector<8x1xf32>
    %803 = arith.divf %795, %802 : vector<8x1xf32>
    %cst_215 = arith.constant 1.000000e+00 : f32
    %804 = vector.broadcast %cst_215 : f32 to vector<8x1xf32>
    %805 = arith.addf %804, %803 : vector<8x1xf32>
    %cst_216 = arith.constant 0.000000e+00 : f32
    %cst_217 = arith.constant 1.000000e+00 : f32
    %806 = vector.broadcast %cst_216 : f32 to vector<8x1xf32>
    %807 = arith.maximumf %806, %805 : vector<8x1xf32>
    %808 = vector.broadcast %cst_217 : f32 to vector<8x1xf32>
    %809 = arith.minimumf %808, %807 : vector<8x1xf32>
    %810 = vector.extract_strided_slice %700 {offsets = [0, 20], sizes = [8, 4], strides = [1, 1]} : vector<8x32xf32> to vector<8x4xf32>
    %811 = arith.subf %810, %653 : vector<8x4xf32>
    %812 = arith.mulf %811, %710 : vector<8x4xf32>
    %cst_218 = arith.constant dense<0.000000e+00> : vector<8xf32>
    %813 = vector.multi_reduction <add>, %812, %cst_218 [1] : vector<8x4xf32> to vector<8xf32>
    %814 = vector.shape_cast %813 : vector<8xf32> to vector<8x1xf32>
    %815 = arith.mulf %811, %811 : vector<8x4xf32>
    %cst_219 = arith.constant dense<0.000000e+00> : vector<8xf32>
    %816 = vector.multi_reduction <add>, %815, %cst_219 [1] : vector<8x4xf32> to vector<8xf32>
    %817 = vector.shape_cast %816 : vector<8xf32> to vector<8x1xf32>
    %818 = math.sqrt %817 : vector<8x1xf32>
    %819 = arith.mulf %714, %818 : vector<8x1xf32>
    %cst_220 = arith.constant 9.99999993E-9 : f32
    %820 = vector.broadcast %cst_220 : f32 to vector<8x1xf32>
    %821 = arith.maximumf %819, %820 : vector<8x1xf32>
    %822 = arith.divf %814, %821 : vector<8x1xf32>
    %cst_221 = arith.constant 1.000000e+00 : f32
    %823 = vector.broadcast %cst_221 : f32 to vector<8x1xf32>
    %824 = arith.addf %823, %822 : vector<8x1xf32>
    %cst_222 = arith.constant 0.000000e+00 : f32
    %cst_223 = arith.constant 1.000000e+00 : f32
    %825 = vector.broadcast %cst_222 : f32 to vector<8x1xf32>
    %826 = arith.maximumf %825, %824 : vector<8x1xf32>
    %827 = vector.broadcast %cst_223 : f32 to vector<8x1xf32>
    %828 = arith.minimumf %827, %826 : vector<8x1xf32>
    %829 = vector.extract_strided_slice %700 {offsets = [0, 24], sizes = [8, 4], strides = [1, 1]} : vector<8x32xf32> to vector<8x4xf32>
    %830 = arith.subf %829, %653 : vector<8x4xf32>
    %831 = arith.mulf %830, %710 : vector<8x4xf32>
    %cst_224 = arith.constant dense<0.000000e+00> : vector<8xf32>
    %832 = vector.multi_reduction <add>, %831, %cst_224 [1] : vector<8x4xf32> to vector<8xf32>
    %833 = vector.shape_cast %832 : vector<8xf32> to vector<8x1xf32>
    %834 = arith.mulf %830, %830 : vector<8x4xf32>
    %cst_225 = arith.constant dense<0.000000e+00> : vector<8xf32>
    %835 = vector.multi_reduction <add>, %834, %cst_225 [1] : vector<8x4xf32> to vector<8xf32>
    %836 = vector.shape_cast %835 : vector<8xf32> to vector<8x1xf32>
    %837 = math.sqrt %836 : vector<8x1xf32>
    %838 = arith.mulf %714, %837 : vector<8x1xf32>
    %cst_226 = arith.constant 9.99999993E-9 : f32
    %839 = vector.broadcast %cst_226 : f32 to vector<8x1xf32>
    %840 = arith.maximumf %838, %839 : vector<8x1xf32>
    %841 = arith.divf %833, %840 : vector<8x1xf32>
    %cst_227 = arith.constant 1.000000e+00 : f32
    %842 = vector.broadcast %cst_227 : f32 to vector<8x1xf32>
    %843 = arith.addf %842, %841 : vector<8x1xf32>
    %cst_228 = arith.constant 0.000000e+00 : f32
    %cst_229 = arith.constant 1.000000e+00 : f32
    %844 = vector.broadcast %cst_228 : f32 to vector<8x1xf32>
    %845 = arith.maximumf %844, %843 : vector<8x1xf32>
    %846 = vector.broadcast %cst_229 : f32 to vector<8x1xf32>
    %847 = arith.minimumf %846, %845 : vector<8x1xf32>
    %848 = vector.extract_strided_slice %700 {offsets = [0, 28], sizes = [8, 4], strides = [1, 1]} : vector<8x32xf32> to vector<8x4xf32>
    %849 = arith.subf %848, %653 : vector<8x4xf32>
    %850 = arith.mulf %849, %710 : vector<8x4xf32>
    %cst_230 = arith.constant dense<0.000000e+00> : vector<8xf32>
    %851 = vector.multi_reduction <add>, %850, %cst_230 [1] : vector<8x4xf32> to vector<8xf32>
    %852 = vector.shape_cast %851 : vector<8xf32> to vector<8x1xf32>
    %853 = arith.mulf %849, %849 : vector<8x4xf32>
    %cst_231 = arith.constant dense<0.000000e+00> : vector<8xf32>
    %854 = vector.multi_reduction <add>, %853, %cst_231 [1] : vector<8x4xf32> to vector<8xf32>
    %855 = vector.shape_cast %854 : vector<8xf32> to vector<8x1xf32>
    %856 = math.sqrt %855 : vector<8x1xf32>
    %857 = arith.mulf %714, %856 : vector<8x1xf32>
    %cst_232 = arith.constant 9.99999993E-9 : f32
    %858 = vector.broadcast %cst_232 : f32 to vector<8x1xf32>
    %859 = arith.maximumf %857, %858 : vector<8x1xf32>
    %860 = arith.divf %852, %859 : vector<8x1xf32>
    %cst_233 = arith.constant 1.000000e+00 : f32
    %861 = vector.broadcast %cst_233 : f32 to vector<8x1xf32>
    %862 = arith.addf %861, %860 : vector<8x1xf32>
    %cst_234 = arith.constant 0.000000e+00 : f32
    %cst_235 = arith.constant 1.000000e+00 : f32
    %863 = vector.broadcast %cst_234 : f32 to vector<8x1xf32>
    %864 = arith.maximumf %863, %862 : vector<8x1xf32>
    %865 = vector.broadcast %cst_235 : f32 to vector<8x1xf32>
    %866 = arith.minimumf %865, %864 : vector<8x1xf32>
    %867 = tpu.concatenate %733, %752, %771, %790, %809, %828, %847, %866 in 1 : vector<8x1xf32>, vector<8x1xf32>, vector<8x1xf32>, vector<8x1xf32>, vector<8x1xf32>, vector<8x1xf32>, vector<8x1xf32>, vector<8x1xf32> -> vector<8x8xf32>
    %868 = arith.mulf %709, %867 : vector<8x8xf32>
    %cst_236 = arith.constant dense<0xFF800000> : vector<8xf32>
    %869 = vector.multi_reduction <maximumf>, %868, %cst_236 [1] : vector<8x8xf32> to vector<8xf32>
    %870 = vector.shape_cast %869 : vector<8xf32> to vector<8x1xf32>
    %871 = vector.broadcast %870 : vector<8x1xf32> to vector<8x8xf32>
    %872 = arith.subf %868, %871 : vector<8x8xf32>
    %873 = math.exp %872 : vector<8x8xf32>
    %cst_237 = arith.constant dense<0.000000e+00> : vector<8xf32>
    %874 = vector.multi_reduction <add>, %873, %cst_237 [1] : vector<8x8xf32> to vector<8xf32>
    %875 = vector.shape_cast %874 : vector<8xf32> to vector<8x1xf32>
    %876 = vector.broadcast %875 : vector<8x1xf32> to vector<8x8xf32>
    %877 = arith.divf %873, %876 : vector<8x8xf32>
    %cst_238 = arith.constant dense<0xFF800000> : vector<8xf32>
    %878 = vector.multi_reduction <maximumf>, %877, %cst_238 [1] : vector<8x8xf32> to vector<8xf32>
    %879 = vector.shape_cast %878 : vector<8xf32> to vector<8x1xf32>
    %880 = vector.broadcast %879 : vector<8x1xf32> to vector<8x8xf32>
    %881 = arith.cmpf oeq, %877, %880 : vector<8x8xf32>
    %c8_i32_239 = arith.constant 8 : i32
    %882 = vector.broadcast %c8_i32_239 : i32 to vector<8x8xi32>
    %883 = arith.select %881, %19, %882 : vector<8x8xi1>, vector<8x8xi32>
    %cst_240 = arith.constant dense<2147483647> : vector<8xi32>
    %884 = vector.multi_reduction <minsi>, %883, %cst_240 [1] : vector<8x8xi32> to vector<8xi32>
    %885 = vector.shape_cast %884 : vector<8xi32> to vector<8x1xi32>
    %886 = vector.broadcast %885 : vector<8x1xi32> to vector<8x8xi32>
    %887 = arith.cmpi eq, %19, %886 : vector<8x8xi32>
    %888 = arith.extui %887 : vector<8x8xi1> to vector<8x8xi32>
    %889 = arith.sitofp %888 : vector<8x8xi32> to vector<8x8xf32>
    %890 = arith.subf %889, %877 : vector<8x8xf32>
    %891 = arith.addf %890, %877 : vector<8x8xf32>
    %892 = vector.extract_strided_slice %700 {offsets = [0, 0], sizes = [8, 4], strides = [1, 1]} : vector<8x32xf32> to vector<8x4xf32>
    %893 = vector.extract_strided_slice %891 {offsets = [0, 0], sizes = [8, 1], strides = [1, 1]} : vector<8x8xf32> to vector<8x1xf32>
    %894 = vector.broadcast %893 : vector<8x1xf32> to vector<8x4xf32>
    %895 = arith.mulf %892, %894 : vector<8x4xf32>
    %896 = vector.extract_strided_slice %700 {offsets = [0, 4], sizes = [8, 4], strides = [1, 1]} : vector<8x32xf32> to vector<8x4xf32>
    %897 = vector.extract_strided_slice %891 {offsets = [0, 1], sizes = [8, 1], strides = [1, 1]} : vector<8x8xf32> to vector<8x1xf32>
    %898 = vector.broadcast %897 : vector<8x1xf32> to vector<8x4xf32>
    %899 = arith.mulf %896, %898 : vector<8x4xf32>
    %900 = arith.addf %895, %899 : vector<8x4xf32>
    %901 = vector.extract_strided_slice %700 {offsets = [0, 8], sizes = [8, 4], strides = [1, 1]} : vector<8x32xf32> to vector<8x4xf32>
    %902 = vector.extract_strided_slice %891 {offsets = [0, 2], sizes = [8, 1], strides = [1, 1]} : vector<8x8xf32> to vector<8x1xf32>
    %903 = vector.broadcast %902 : vector<8x1xf32> to vector<8x4xf32>
    %904 = arith.mulf %901, %903 : vector<8x4xf32>
    %905 = arith.addf %900, %904 : vector<8x4xf32>
    %906 = vector.extract_strided_slice %700 {offsets = [0, 12], sizes = [8, 4], strides = [1, 1]} : vector<8x32xf32> to vector<8x4xf32>
    %907 = vector.extract_strided_slice %891 {offsets = [0, 3], sizes = [8, 1], strides = [1, 1]} : vector<8x8xf32> to vector<8x1xf32>
    %908 = vector.broadcast %907 : vector<8x1xf32> to vector<8x4xf32>
    %909 = arith.mulf %906, %908 : vector<8x4xf32>
    %910 = arith.addf %905, %909 : vector<8x4xf32>
    %911 = vector.extract_strided_slice %700 {offsets = [0, 16], sizes = [8, 4], strides = [1, 1]} : vector<8x32xf32> to vector<8x4xf32>
    %912 = vector.extract_strided_slice %891 {offsets = [0, 4], sizes = [8, 1], strides = [1, 1]} : vector<8x8xf32> to vector<8x1xf32>
    %913 = vector.broadcast %912 : vector<8x1xf32> to vector<8x4xf32>
    %914 = arith.mulf %911, %913 : vector<8x4xf32>
    %915 = arith.addf %910, %914 : vector<8x4xf32>
    %916 = vector.extract_strided_slice %700 {offsets = [0, 20], sizes = [8, 4], strides = [1, 1]} : vector<8x32xf32> to vector<8x4xf32>
    %917 = vector.extract_strided_slice %891 {offsets = [0, 5], sizes = [8, 1], strides = [1, 1]} : vector<8x8xf32> to vector<8x1xf32>
    %918 = vector.broadcast %917 : vector<8x1xf32> to vector<8x4xf32>
    %919 = arith.mulf %916, %918 : vector<8x4xf32>
    %920 = arith.addf %915, %919 : vector<8x4xf32>
    %921 = vector.extract_strided_slice %700 {offsets = [0, 24], sizes = [8, 4], strides = [1, 1]} : vector<8x32xf32> to vector<8x4xf32>
    %922 = vector.extract_strided_slice %891 {offsets = [0, 6], sizes = [8, 1], strides = [1, 1]} : vector<8x8xf32> to vector<8x1xf32>
    %923 = vector.broadcast %922 : vector<8x1xf32> to vector<8x4xf32>
    %924 = arith.mulf %921, %923 : vector<8x4xf32>
    %925 = arith.addf %920, %924 : vector<8x4xf32>
    %926 = vector.extract_strided_slice %700 {offsets = [0, 28], sizes = [8, 4], strides = [1, 1]} : vector<8x32xf32> to vector<8x4xf32>
    %927 = vector.extract_strided_slice %891 {offsets = [0, 7], sizes = [8, 1], strides = [1, 1]} : vector<8x8xf32> to vector<8x1xf32>
    %928 = vector.broadcast %927 : vector<8x1xf32> to vector<8x4xf32>
    %929 = arith.mulf %926, %928 : vector<8x4xf32>
    %930 = arith.addf %925, %929 : vector<8x4xf32>
    %c0_241 = arith.constant 0 : index
    %931 = arith.index_cast %c3_i32 : i32 to index
    %c0_242 = arith.constant 0 : index
    %c0_243 = arith.constant 0 : index
    %932 = vector.load %arg13[%c0_241, %931, %c0_242, %c0_243] : memref<1x4x8x4xf32, #tpu.memory_space<vmem>>, vector<1x1x8x4xf32>
    %933 = vector.shape_cast %932 : vector<1x1x8x4xf32> to vector<8x4xf32>
    %934 = vector.shape_cast %930 : vector<8x4xf32> to vector<1x1x8x4xf32>
    tpu.vector_store %arg13[%c0_241, %931, %c0_242, %c0_243], %934 {strides = array<i32>} : memref<1x4x8x4xf32, #tpu.memory_space<vmem>>, vector<1x1x8x4xf32>,
    %935 = arith.mulf %701, %889 : vector<8x8xf32>
    %cst_244 = arith.constant dense<0.000000e+00> : vector<8xf32>
    %936 = vector.multi_reduction <add>, %935, %cst_244 [1] : vector<8x8xf32> to vector<8xf32>
    %937 = vector.shape_cast %936 : vector<8xf32> to vector<8x1xf32>
    %938 = arith.fptosi %937 : vector<8x1xf32> to vector<8x1xi32>
    %c3_i32_245 = arith.constant 3 : i32
    return
  }
  func.func @transform_0(%arg0: i32) -> (i32, i32, i32) {
    %c0_i32 = arith.constant 0 : i32
    %c0_i32_0 = arith.constant 0 : i32
    %c0_i32_1 = arith.constant 0 : i32
    return %arg0, %c0_i32, %c0_i32_0 : i32, i32, i32
  }
  func.func @transform_1(%arg0: i32) -> (i32, i32, i32) {
    %c0_i32 = arith.constant 0 : i32
    %c0_i32_0 = arith.constant 0 : i32
    %c0_i32_1 = arith.constant 0 : i32
    return %arg0, %c0_i32, %c0_i32_0 : i32, i32, i32
  }
  func.func @transform_2(%arg0: i32) -> (i32, i32, i32) {
    %c0_i32 = arith.constant 0 : i32
    %c0_i32_0 = arith.constant 0 : i32
    %c0_i32_1 = arith.constant 0 : i32
    return %arg0, %c0_i32, %c0_i32_0 : i32, i32, i32
  }
  func.func @transform_3(%arg0: i32) -> (i32, i32) {
    %c0_i32 = arith.constant 0 : i32
    %c0_i32_0 = arith.constant 0 : i32
    %c0_i32_1 = arith.constant 0 : i32
    return %c0_i32, %c0_i32_0 : i32, i32
  }
  func.func @transform_4(%arg0: i32) -> (i32, i32) {
    %c0_i32 = arith.constant 0 : i32
    %c0_i32_0 = arith.constant 0 : i32
    %c0_i32_1 = arith.constant 0 : i32
    return %c0_i32, %c0_i32_0 : i32, i32
  }
  func.func @transform_5(%arg0: i32) -> (i32, i32) {
    %c0_i32 = arith.constant 0 : i32
    %c0_i32_0 = arith.constant 0 : i32
    %c0_i32_1 = arith.constant 0 : i32
    return %c0_i32, %c0_i32_0 : i32, i32
  }
  func.func @transform_6(%arg0: i32) -> (i32, i32) {
    %c0_i32 = arith.constant 0 : i32
    %c0_i32_0 = arith.constant 0 : i32
    %c0_i32_1 = arith.constant 0 : i32
    return %c0_i32, %c0_i32_0 : i32, i32
  }
  func.func @transform_7(%arg0: i32) -> (i32, i32) {
    %c0_i32 = arith.constant 0 : i32
    %c0_i32_0 = arith.constant 0 : i32
    %c0_i32_1 = arith.constant 0 : i32
    return %c0_i32, %c0_i32_0 : i32, i32
  }
  func.func @transform_8(%arg0: i32) -> (i32, i32) {
    %c0_i32 = arith.constant 0 : i32
    %c0_i32_0 = arith.constant 0 : i32
    %c0_i32_1 = arith.constant 0 : i32
    return %c0_i32, %c0_i32_0 : i32, i32
  }
  func.func @transform_9(%arg0: i32) -> (i32, i32) {
    %c0_i32 = arith.constant 0 : i32
    %c0_i32_0 = arith.constant 0 : i32
    %c0_i32_1 = arith.constant 0 : i32
    return %c0_i32, %c0_i32_0 : i32, i32
  }
  func.func @transform_10(%arg0: i32) -> (i32, i32) {
    %c0_i32 = arith.constant 0 : i32
    %c0_i32_0 = arith.constant 0 : i32
    %c0_i32_1 = arith.constant 0 : i32
    return %c0_i32, %c0_i32_0 : i32, i32
  }
  func.func @transform_11(%arg0: i32) -> (i32, i32) {
    %c0_i32 = arith.constant 0 : i32
    %c0_i32_0 = arith.constant 0 : i32
    %c0_i32_1 = arith.constant 0 : i32
    return %c0_i32, %c0_i32_0 : i32, i32
  }
  func.func @transform_12(%arg0: i32) -> (i32, i32, i32, i32) {
    %c0_i32 = arith.constant 0 : i32
    %c0_i32_0 = arith.constant 0 : i32
    %c0_i32_1 = arith.constant 0 : i32
    %c0_i32_2 = arith.constant 0 : i32
    return %arg0, %c0_i32, %c0_i32_0, %c0_i32_1 : i32, i32, i32, i32
  }
}

</mosaic_0001>

<llo_original>
// kernel: tpu_custom_call.1
$region0: #{tpu_custom_call.1}
  #allocation0 [shape = 'u32[]', space=smem, size = 0x4, offset = 0x4, fixed_abs, tag = 'smem constant byte address 0x4 - core index']
  #allocation1 [shape = 'u32[72,128]{1,0:T(1,128)}', space=vmem, size = 0x9000, scoped, tag = 'internal scratch']
  %s0 = inlined_call_operand.vmem [shape: s32[2,8,1], index: 0, kind: input, shape index: {}]
  %s1 = inlined_call_operand.vmem [shape: f32[2,8,4], index: 1, kind: input, shape index: {}]
  %s2 = inlined_call_operand.vmem [shape: f32[2,16,40], index: 2, kind: input, shape index: {}]
  %s3 = inlined_call_operand.vmem [shape: f32[32,8], index: 3, kind: input, shape index: {}]
  %s4 = inlined_call_operand.vmem [shape: f32[4,1], index: 4, kind: input, shape index: {}]
  %s5 = inlined_call_operand.vmem [shape: f32[4,2], index: 5, kind: input, shape index: {}]
  %s6 = inlined_call_operand.vmem [shape: f32[4,2], index: 6, kind: input, shape index: {}]
  %s7 = inlined_call_operand.vmem [shape: f32[1,2], index: 7, kind: input, shape index: {}]
  %s8 = inlined_call_operand.vmem [shape: f32[2,2], index: 8, kind: input, shape index: {}]
  %s9 = inlined_call_operand.vmem [shape: f32[8,8], index: 9, kind: input, shape index: {}]
  %s10 = inlined_call_operand.vmem [shape: f32[8,8], index: 10, kind: input, shape index: {}]
  %s11 = inlined_call_operand.vmem [shape: f32[8,2], index: 11, kind: input, shape index: {}]
  %s12 = inlined_call_operand.vmem [shape: f32[2,4,8,4], index: 12, kind: output, shape index: {}]
  %s13 = sld [smem:[#allocation0]]
  $region81: #{tpu_custom_call.1} parent=0
    _
  %s15 = ssub.s32 1, %s13
  %s16 = scalar_select 0, %s15, %s13
  loop: start=0, step=1, limit=4
  $region2: #{tpu_custom_call.1} parent=0 // loop_pre_header
    _
  $region3: #{tpu_custom_call.1} parent=0 // loop_header
    %s18 = sphi 0, %s22
    %p19 = scmp.ge.s32.totalorder %s18, 4
    %s28 = sphi 0, %s30
    %s31 = sphi 0, %s28
    %s32 = sphi 0, %s31
    %s48 = sphi 0, %s32
    %s54 = sphi 0, %s56
    %s57 = sphi 0, %s54
    %s58 = sphi 0, %s57
    %s74 = sphi 0, %s58
    %s80 = sphi 0, %s82
    %s83 = sphi 0, %s80
    %s84 = sphi 0, %s83
    %s100 = sphi 0, %s84
    %s104 = sphi 0, %s104
    %s106 = sphi 0, %s104
    %s107 = sphi 0, %s106
    %s121 = sphi 0, %s107
    %s125 = sphi 0, %s125
    %s127 = sphi 0, %s125
    %s128 = sphi 0, %s127
    %s142 = sphi 0, %s128
    %s146 = sphi 0, %s146
    %s148 = sphi 0, %s146
    %s149 = sphi 0, %s148
    %s163 = sphi 0, %s149
    %s167 = sphi 0, %s167
    %s169 = sphi 0, %s167
    %s170 = sphi 0, %s169
    %s184 = sphi 0, %s170
    %s188 = sphi 0, %s188
    %s190 = sphi 0, %s188
    %s191 = sphi 0, %s190
    %s205 = sphi 0, %s191
    %s209 = sphi 0, %s209
    %s211 = sphi 0, %s209
    %s212 = sphi 0, %s211
    %s226 = sphi 0, %s212
    %s230 = sphi 0, %s230
    %s232 = sphi 0, %s230
    %s233 = sphi 0, %s232
    %s247 = sphi 0, %s233
    %s251 = sphi 0, %s251
    %s253 = sphi 0, %s251
    %s254 = sphi 0, %s253
    %s268 = sphi 0, %s254
    %s272 = sphi 0, %s272
    %s274 = sphi 0, %s272
    %s275 = sphi 0, %s274
    %s289 = sphi 0, %s275
    %s295 = sphi 0, %s297
    %s298 = sphi 0, %s295
    %s299 = sphi 0, %s298
    %s315 = sphi 0, %s299
  $region4: #{tpu_custom_call.1} parent=0 // loop_header_branch
    %21 = sbr.rel (%p19) target = $region8
  $region5: #{tpu_custom_call.1} parent=0 // loop_body
    %s23 = ssub.s32 %s18, 1
    %s24 = ssub.s32 %s18, 2
    %s25 = sadd.s32 %s18, 1
    %s26 = ssub.s32 %s18, %s25
    %p27 = scmp.eq.s32.totalorder %s26, 0
    %s29 = sadd.s32 %s28, 1
    %s30 = scalar_select %p27, %s28, %s29
    %p33 = pneg %p27
    %p34 = scmp.eq.s32.totalorder %s18, 1
    %p35 = por %p33, %p34
    %p36 = scmp.ne.s32.totalorder %s28, %s31
    %p37 = scmp.eq.s32.totalorder %s18, 0
    %p38 = por %p36, %p37
    %p39 = scmp.ne.s32.totalorder %s28, %s31
    %p40 = scmp.eq.s32.totalorder %s23, 1
    %p41 = por %p39, %p40
    %p42 = scmp.ne.s32.totalorder %s31, %s32
    %p43 = scmp.eq.s32.totalorder %s23, 0
    %p44 = por %p42, %p43
    %p45 = scmp.ne.s32.totalorder %s31, %s32
    %p46 = scmp.eq.s32.totalorder %s24, 1
    %p47 = por %p45, %p46
    %p49 = scmp.ne.s32.totalorder %s32, %s48
    %p50 = scmp.eq.s32.totalorder %s24, 0
    %p51 = por %p49, %p50
    %s52 = ssub.s32 %s18, %s25
    %p53 = scmp.eq.s32.totalorder %s52, 0
    %s55 = sadd.s32 %s54, 1
    %s56 = scalar_select %p53, %s54, %s55
    %p59 = pneg %p53
    %p60 = scmp.eq.s32.totalorder %s18, 1
    %p61 = por %p59, %p60
    %p62 = scmp.ne.s32.totalorder %s54, %s57
    %p63 = scmp.eq.s32.totalorder %s18, 0
    %p64 = por %p62, %p63
    %p65 = scmp.ne.s32.totalorder %s54, %s57
    %p66 = scmp.eq.s32.totalorder %s23, 1
    %p67 = por %p65, %p66
    %p68 = scmp.ne.s32.totalorder %s57, %s58
    %p69 = scmp.eq.s32.totalorder %s23, 0
    %p70 = por %p68, %p69
    %p71 = scmp.ne.s32.totalorder %s57, %s58
    %p72 = scmp.eq.s32.totalorder %s24, 1
    %p73 = por %p71, %p72
    %p75 = scmp.ne.s32.totalorder %s58, %s74
    %p76 = scmp.eq.s32.totalorder %s24, 0
    %p77 = por %p75, %p76
    %s78 = ssub.s32 %s18, %s25
    %p79 = scmp.eq.s32.totalorder %s78, 0
    %s81 = sadd.s32 %s80, 1
    %s82 = scalar_select %p79, %s80, %s81
    %p85 = pneg %p79
    %p86 = scmp.eq.s32.totalorder %s18, 1
    %p87 = por %p85, %p86
    %p88 = scmp.ne.s32.totalorder %s80, %s83
    %p89 = scmp.eq.s32.totalorder %s18, 0
    %p90 = por %p88, %p89
    %p91 = scmp.ne.s32.totalorder %s80, %s83
    %p92 = scmp.eq.s32.totalorder %s23, 1
    %p93 = por %p91, %p92
    %p94 = scmp.ne.s32.totalorder %s83, %s84
    %p95 = scmp.eq.s32.totalorder %s23, 0
    %p96 = por %p94, %p95
    %p97 = scmp.ne.s32.totalorder %s83, %s84
    %p98 = scmp.eq.s32.totalorder %s24, 1
    %p99 = por %p97, %p98
    %p101 = scmp.ne.s32.totalorder %s84, %s100
    %p102 = scmp.eq.s32.totalorder %s24, 0
    %p103 = por %p101, %p102
    %s105 = sadd.s32 %s104, 1
    %p108 = scmp.eq.s32.totalorder %s18, 1
    %p109 = scmp.ne.s32.totalorder %s104, %s106
    %p110 = scmp.eq.s32.totalorder %s18, 0
    %p111 = por %p109, %p110
    %p112 = scmp.ne.s32.totalorder %s104, %s106
    %p113 = scmp.eq.s32.totalorder %s23, 1
    %p114 = por %p112, %p113
    %p115 = scmp.ne.s32.totalorder %s106, %s107
    %p116 = scmp.eq.s32.totalorder %s23, 0
    %p117 = por %p115, %p116
    %p118 = scmp.ne.s32.totalorder %s106, %s107
    %p119 = scmp.eq.s32.totalorder %s24, 1
    %p120 = por %p118, %p119
    %p122 = scmp.ne.s32.totalorder %s107, %s121
    %p123 = scmp.eq.s32.totalorder %s24, 0
    %p124 = por %p122, %p123
    %s126 = sadd.s32 %s125, 1
    %p129 = scmp.eq.s32.totalorder %s18, 1
    %p130 = scmp.ne.s32.totalorder %s125, %s127
    %p131 = scmp.eq.s32.totalorder %s18, 0
    %p132 = por %p130, %p131
    %p133 = scmp.ne.s32.totalorder %s125, %s127
    %p134 = scmp.eq.s32.totalorder %s23, 1
    %p135 = por %p133, %p134
    %p136 = scmp.ne.s32.totalorder %s127, %s128
    %p137 = scmp.eq.s32.totalorder %s23, 0
    %p138 = por %p136, %p137
    %p139 = scmp.ne.s32.totalorder %s127, %s128
    %p140 = scmp.eq.s32.totalorder %s24, 1
    %p141 = por %p139, %p140
    %p143 = scmp.ne.s32.totalorder %s128, %s142
    %p144 = scmp.eq.s32.totalorder %s24, 0
    %p145 = por %p143, %p144
    %s147 = sadd.s32 %s146, 1
    %p150 = scmp.eq.s32.totalorder %s18, 1
    %p151 = scmp.ne.s32.totalorder %s146, %s148
    %p152 = scmp.eq.s32.totalorder %s18, 0
    %p153 = por %p151, %p152
    %p154 = scmp.ne.s32.totalorder %s146, %s148
    %p155 = scmp.eq.s32.totalorder %s23, 1
    %p156 = por %p154, %p155
    %p157 = scmp.ne.s32.totalorder %s148, %s149
    %p158 = scmp.eq.s32.totalorder %s23, 0
    %p159 = por %p157, %p158
    %p160 = scmp.ne.s32.totalorder %s148, %s149
    %p161 = scmp.eq.s32.totalorder %s24, 1
    %p162 = por %p160, %p161
    %p164 = scmp.ne.s32.totalorder %s149, %s163
    %p165 = scmp.eq.s32.totalorder %s24, 0
    %p166 = por %p164, %p165
    %s168 = sadd.s32 %s167, 1
    %p171 = scmp.eq.s32.totalorder %s18, 1
    %p172 = scmp.ne.s32.totalorder %s167, %s169
    %p173 = scmp.eq.s32.totalorder %s18, 0
    %p174 = por %p172, %p173
    %p175 = scmp.ne.s32.totalorder %s167, %s169
    %p176 = scmp.eq.s32.totalorder %s23, 1
    %p177 = por %p175, %p176
    %p178 = scmp.ne.s32.totalorder %s169, %s170
    %p179 = scmp.eq.s32.totalorder %s23, 0
    %p180 = por %p178, %p179
    %p181 = scmp.ne.s32.totalorder %s169, %s170
    %p182 = scmp.eq.s32.totalorder %s24, 1
    %p183 = por %p181, %p182
    %p185 = scmp.ne.s32.totalorder %s170, %s184
    %p186 = scmp.eq.s32.totalorder %s24, 0
    %p187 = por %p185, %p186
    %s189 = sadd.s32 %s188, 1
    %p192 = scmp.eq.s32.totalorder %s18, 1
    %p193 = scmp.ne.s32.totalorder %s188, %s190
    %p194 = scmp.eq.s32.totalorder %s18, 0
    %p195 = por %p193, %p194
    %p196 = scmp.ne.s32.totalorder %s188, %s190
    %p197 = scmp.eq.s32.totalorder %s23, 1
    %p198 = por %p196, %p197
    %p199 = scmp.ne.s32.totalorder %s190, %s191
    %p200 = scmp.eq.s32.totalorder %s23, 0
    %p201 = por %p199, %p200
    %p202 = scmp.ne.s32.totalorder %s190, %s191
    %p203 = scmp.eq.s32.totalorder %s24, 1
    %p204 = por %p202, %p203
    %p206 = scmp.ne.s32.totalorder %s191, %s205
    %p207 = scmp.eq.s32.totalorder %s24, 0
    %p208 = por %p206, %p207
    %s210 = sadd.s32 %s209, 1
    %p213 = scmp.eq.s32.totalorder %s18, 1
    %p214 = scmp.ne.s32.totalorder %s209, %s211
    %p215 = scmp.eq.s32.totalorder %s18, 0
    %p216 = por %p214, %p215
    %p217 = scmp.ne.s32.totalorder %s209, %s211
    %p218 = scmp.eq.s32.totalorder %s23, 1
    %p219 = por %p217, %p218
    %p220 = scmp.ne.s32.totalorder %s211, %s212
    %p221 = scmp.eq.s32.totalorder %s23, 0
    %p222 = por %p220, %p221
    %p223 = scmp.ne.s32.totalorder %s211, %s212
    %p224 = scmp.eq.s32.totalorder %s24, 1
    %p225 = por %p223, %p224
    %p227 = scmp.ne.s32.totalorder %s212, %s226
    %p228 = scmp.eq.s32.totalorder %s24, 0
    %p229 = por %p227, %p228
    %s231 = sadd.s32 %s230, 1
    %p234 = scmp.eq.s32.totalorder %s18, 1
    %p235 = scmp.ne.s32.totalorder %s230, %s232
    %p236 = scmp.eq.s32.totalorder %s18, 0
    %p237 = por %p235, %p236
    %p238 = scmp.ne.s32.totalorder %s230, %s232
    %p239 = scmp.eq.s32.totalorder %s23, 1
    %p240 = por %p238, %p239
    %p241 = scmp.ne.s32.totalorder %s232, %s233
    %p242 = scmp.eq.s32.totalorder %s23, 0
    %p243 = por %p241, %p242
    %p244 = scmp.ne.s32.totalorder %s232, %s233
    %p245 = scmp.eq.s32.totalorder %s24, 1
    %p246 = por %p244, %p245
    %p248 = scmp.ne.s32.totalorder %s233, %s247
    %p249 = scmp.eq.s32.totalorder %s24, 0
    %p250 = por %p248, %p249
    %s252 = sadd.s32 %s251, 1
    %p255 = scmp.eq.s32.totalorder %s18, 1
    %p256 = scmp.ne.s32.totalorder %s251, %s253
    %p257 = scmp.eq.s32.totalorder %s18, 0
    %p258 = por %p256, %p257
    %p259 = scmp.ne.s32.totalorder %s251, %s253
    %p260 = scmp.eq.s32.totalorder %s23, 1
    %p261 = por %p259, %p260
    %p262 = scmp.ne.s32.totalorder %s253, %s254
    %p263 = scmp.eq.s32.totalorder %s23, 0
    %p264 = por %p262, %p263
    %p265 = scmp.ne.s32.totalorder %s253, %s254
    %p266 = scmp.eq.s32.totalorder %s24, 1
    %p267 = por %p265, %p266
    %p269 = scmp.ne.s32.totalorder %s254, %s268
    %p270 = scmp.eq.s32.totalorder %s24, 0
    %p271 = por %p269, %p270
    %s273 = sadd.s32 %s272, 1
    %p276 = scmp.eq.s32.totalorder %s18, 1
    %p277 = scmp.ne.s32.totalorder %s272, %s274
    %p278 = scmp.eq.s32.totalorder %s18, 0
    %p279 = por %p277, %p278
    %p280 = scmp.ne.s32.totalorder %s272, %s274
    %p281 = scmp.eq.s32.totalorder %s23, 1
    %p282 = por %p280, %p281
    %p283 = scmp.ne.s32.totalorder %s274, %s275
    %p284 = scmp.eq.s32.totalorder %s23, 0
    %p285 = por %p283, %p284
    %p286 = scmp.ne.s32.totalorder %s274, %s275
    %p287 = scmp.eq.s32.totalorder %s24, 1
    %p288 = por %p286, %p287
    %p290 = scmp.ne.s32.totalorder %s275, %s289
    %p291 = scmp.eq.s32.totalorder %s24, 0
    %p292 = por %p290, %p291
    %s293 = ssub.s32 %s18, %s25
    %p294 = scmp.eq.s32.totalorder %s293, 0
    %s296 = sadd.s32 %s295, 1
    %s297 = scalar_select %p294, %s295, %s296
    %p300 = pneg %p294
    %p301 = scmp.eq.s32.totalorder %s18, 1
    %p302 = por %p300, %p301
    %p303 = scmp.ne.s32.totalorder %s295, %s298
    %p304 = scmp.eq.s32.totalorder %s18, 0
    %p305 = por %p303, %p304
    %p306 = scmp.ne.s32.totalorder %s295, %s298
    %p307 = scmp.eq.s32.totalorder %s23, 1
    %p308 = por %p306, %p307
    %p309 = scmp.ne.s32.totalorder %s298, %s299
    %p310 = scmp.eq.s32.totalorder %s23, 0
    %p311 = por %p309, %p310
    %p312 = scmp.ne.s32.totalorder %s298, %s299
    %p313 = scmp.eq.s32.totalorder %s24, 1
    %p314 = por %p312, %p313
    %p316 = scmp.ne.s32.totalorder %s299, %s315
    %p317 = scmp.eq.s32.totalorder %s24, 0
    %p318 = por %p316, %p317
    %p319 = scmp.le.s32.totalorder 1, %s18
    %p320 = scmp.lt.s32.totalorder %s18, 3
    %p321 = pnand %p319, %p320
    %p322 = pneg %p321
    // Predicated region
    $region9: #{tpu_custom_call.1} parent=5 // pred_check
      _
    $region10: #{tpu_custom_call.1} parent=5 // pred_check_branch
      %324 = sbr.rel (%p321) target = $region12
    $region11: #{tpu_custom_call.1} parent=5 // pred_region
      %s325 = ssub.s32 %s18, 1
      // Predicated region
      $region13: #{tpu_custom_call.1} parent=11 // pred_check
        %p326 = pneg %p117
      $region14: #{tpu_custom_call.1} parent=11 // pred_check_branch
        %328 = sbr.rel (%p326) target = $region16
      $region15: #{tpu_custom_call.1} parent=11 // pred_region
        _
      $region16: #{tpu_custom_call.1} parent=11 // pred_fallthru
        _
      // Predicated region
      $region17: #{tpu_custom_call.1} parent=11 // pred_check
        %p329 = pneg %p138
      $region18: #{tpu_custom_call.1} parent=11 // pred_check_branch
        %331 = sbr.rel (%p329) target = $region20
      $region19: #{tpu_custom_call.1} parent=11 // pred_region
        _
      $region20: #{tpu_custom_call.1} parent=11 // pred_fallthru
        _
      // Predicated region
      $region21: #{tpu_custom_call.1} parent=11 // pred_check
        %p332 = pneg %p159
      $region22: #{tpu_custom_call.1} parent=11 // pred_check_branch
        %334 = sbr.rel (%p332) target = $region24
      $region23: #{tpu_custom_call.1} parent=11 // pred_region
        _
      $region24: #{tpu_custom_call.1} parent=11 // pred_fallthru
        _
      // Predicated region
      $region25: #{tpu_custom_call.1} parent=11 // pred_check
        %p335 = pneg %p180
      $region26: #{tpu_custom_call.1} parent=11 // pred_check_branch
        %337 = sbr.rel (%p335) target = $region28
      $region27: #{tpu_custom_call.1} parent=11 // pred_region
        _
      $region28: #{tpu_custom_call.1} parent=11 // pred_fallthru
        _
      // Predicated region
      $region29: #{tpu_custom_call.1} parent=11 // pred_check
        %p338 = pneg %p201
      $region30: #{tpu_custom_call.1} parent=11 // pred_check_branch
        %340 = sbr.rel (%p338) target = $region32
      $region31: #{tpu_custom_call.1} parent=11 // pred_region
        _
      $region32: #{tpu_custom_call.1} parent=11 // pred_fallthru
        _
      // Predicated region
      $region33: #{tpu_custom_call.1} parent=11 // pred_check
        %p341 = pneg %p222
      $region34: #{tpu_custom_call.1} parent=11 // pred_check_branch
        %343 = sbr.rel (%p341) target = $region36
      $region35: #{tpu_custom_call.1} parent=11 // pred_region
        _
      $region36: #{tpu_custom_call.1} parent=11 // pred_fallthru
        _
      // Predicated region
      $region37: #{tpu_custom_call.1} parent=11 // pred_check
        %p344 = pneg %p243
      $region38: #{tpu_custom_call.1} parent=11 // pred_check_branch
        %346 = sbr.rel (%p344) target = $region40
      $region39: #{tpu_custom_call.1} parent=11 // pred_region
        _
      $region40: #{tpu_custom_call.1} parent=11 // pred_fallthru
        _
      // Predicated region
      $region41: #{tpu_custom_call.1} parent=11 // pred_check
        %p347 = pneg %p264
      $region42: #{tpu_custom_call.1} parent=11 // pred_check_branch
        %349 = sbr.rel (%p347) target = $region44
      $region43: #{tpu_custom_call.1} parent=11 // pred_region
        _
      $region44: #{tpu_custom_call.1} parent=11 // pred_fallthru
        _
      // Predicated region
      $region45: #{tpu_custom_call.1} parent=11 // pred_check
        %p350 = pneg %p285
      $region46: #{tpu_custom_call.1} parent=11 // pred_check_branch
        %352 = sbr.rel (%p350) target = $region48
      $region47: #{tpu_custom_call.1} parent=11 // pred_region
        _
      $region48: #{tpu_custom_call.1} parent=11 // pred_fallthru
        _
    $region12: #{tpu_custom_call.1} parent=5 // pred_fallthru
      _
    %p353 = scmp.lt.s32.totalorder %s18, 2
    // Predicated region
    $region49: #{tpu_custom_call.1} parent=5 // pred_check
      %p354 = pneg %p353
    $region50: #{tpu_custom_call.1} parent=5 // pred_check_branch
      %356 = sbr.rel (%p354) target = $region52
    $region51: #{tpu_custom_call.1} parent=5 // pred_region
      // Predicated region
      $region53: #{tpu_custom_call.1} parent=51 // pred_check
        %p357 = pneg %p38
      $region54: #{tpu_custom_call.1} parent=51 // pred_check_branch
        %359 = sbr.rel (%p357) target = $region56
      $region55: #{tpu_custom_call.1} parent=51 // pred_region
        %p360 = scmp.lt.s32.totalorder %s18, 1
        %s361 = scalar_select %p360, %s18, 1
        %s362 = smul.addr %s361, 8
        %s363 = scalar_lea.vmem %s0, %s362
      $region56: #{tpu_custom_call.1} parent=51 // pred_fallthru
        _
      // Predicated region
      $region57: #{tpu_custom_call.1} parent=51 // pred_check
        %p364 = pneg %p64
      $region58: #{tpu_custom_call.1} parent=51 // pred_check_branch
        %366 = sbr.rel (%p364) target = $region60
      $region59: #{tpu_custom_call.1} parent=51 // pred_region
        %p367 = scmp.lt.s32.totalorder %s18, 1
        %s368 = scalar_select %p367, %s18, 1
        %s369 = smul.addr %s368, 8
        %s370 = scalar_lea.vmem %s1, %s369
      $region60: #{tpu_custom_call.1} parent=51 // pred_fallthru
        _
      // Predicated region
      $region61: #{tpu_custom_call.1} parent=51 // pred_check
        %p371 = pneg %p90
      $region62: #{tpu_custom_call.1} parent=51 // pred_check_branch
        %373 = sbr.rel (%p371) target = $region64
      $region63: #{tpu_custom_call.1} parent=51 // pred_region
        %p374 = scmp.lt.s32.totalorder %s18, 1
        %s375 = scalar_select %p374, %s18, 1
        %s376 = smul.addr %s375, 2
        %s377 = smul.addr %s376, 8
        %s378 = scalar_lea.vmem %s2, %s377
      $region64: #{tpu_custom_call.1} parent=51 // pred_fallthru
        _
    $region52: #{tpu_custom_call.1} parent=5 // pred_fallthru
      _
    %p379 = scmp.le.s32.totalorder 1, %s18
    %p380 = scmp.lt.s32.totalorder %s18, 3
    %p381 = pnand %p379, %p380
    %p382 = pneg %p381
    // Predicated region
    $region65: #{tpu_custom_call.1} parent=5 // pred_check
      _
    $region66: #{tpu_custom_call.1} parent=5 // pred_check_branch
      %384 = sbr.rel (%p381) target = $region68
    $region67: #{tpu_custom_call.1} parent=5 // pred_region
      %s385 = ssub.s32 %s18, 1
      %p386 = scmp.lt.s32.totalorder %s23, 1
      %s387 = scalar_select %p386, %s23, 1
      %s388 = smul.addr %s387, 8
      %s389 = scalar_lea.vmem %s0, %s388
      %p390 = pneg %p44
      %p391 = pneg %p41
      %p392 = scmp.lt.s32.totalorder %s23, 1
      %s393 = scalar_select %p392, %s23, 1
      %s394 = smul.addr %s393, 8
      %s395 = scalar_lea.vmem %s1, %s394
      %p396 = pneg %p70
      %p397 = pneg %p67
      %p398 = scmp.lt.s32.totalorder %s23, 1
      %s399 = scalar_select %p398, %s23, 1
      %s400 = smul.addr %s399, 2
      %s401 = smul.addr %s400, 8
      %s402 = scalar_lea.vmem %s2, %s401
      %p403 = pneg %p96
      %p404 = pneg %p93
      %p405 = pneg %p117
      %p406 = pneg %p114
      %p407 = pneg %p138
      %p408 = pneg %p135
      %p409 = pneg %p159
      %p410 = pneg %p156
      %p411 = pneg %p180
      %p412 = pneg %p177
      %p413 = pneg %p201
      %p414 = pneg %p198
      %p415 = pneg %p222
      %p416 = pneg %p219
      %p417 = pneg %p243
      %p418 = pneg %p240
      %p419 = pneg %p264
      %p420 = pneg %p261
      %p421 = pneg %p285
      %p422 = pneg %p282
      %p423 = pneg %p311
      %p424 = pneg %p308
      %p425 = scmp.lt.s32.totalorder %s23, 1
      %s426 = scalar_select %p425, %s23, 1
      %s427 = smul.addr %s426, 4
      %s428 = smul.addr %s427, 8
      %s429 = scalar_lea.vmem %s12, %s428
      %p430 = scmp.lt.s32.totalorder %s23, 1
      %s431 = scalar_select %p430, %s23, 1
      %s432 = smul.addr %s431, 8
      %s433 = scalar_lea.vmem %s0, %s432
      %p434 = scmp.lt.s32.totalorder %s23, 1
      %s435 = scalar_select %p434, %s23, 1
      %s436 = smul.addr %s435, 8
      %s437 = scalar_lea.vmem %s1, %s436
      %p438 = scmp.lt.s32.totalorder %s23, 1
      %s439 = scalar_select %p438, %s23, 1
      %s440 = smul.addr %s439, 2
      %s441 = smul.addr %s440, 8
      %s442 = scalar_lea.vmem %s2, %s441
      %p443 = scmp.lt.s32.totalorder %s23, 1
      %s444 = scalar_select %p443, %s23, 1
      %s445 = smul.addr %s444, 4
      %s446 = smul.addr %s445, 8
      %s447 = scalar_lea.vmem %s12, %s446
      %v448 = vld [vmem:[%s442] sm:$0xff]
      %v449 = vld [vmem:[%s442 + $0x8] sm:$0xff]
      %v450 = vld [vmem:[%s3] sm:$0xff]
      %v451 = vld [vmem:[%s3 + $0x8] sm:$0xff]
      %v452 = vld [vmem:[%s3 + $0x10] sm:$0xff]
      %v453 = vld [vmem:[%s3 + $0x18] sm:$0xff]
      %v454 = vld [vmem:[%s4] sm:$0xf]
      %v455 = vld [vmem:[%s5] sm:$0xf]
      %v456 = vld [vmem:[%s6] sm:$0xf]
      %v457 = vld [vmem:[%s7] sm:$0x1]
      %v458 = vld [vmem:[%s8] sm:$0x1]
      %v459 = vld [vmem:[%s8 + $0x1] sm:$0x1]
      %v460 = vld [vmem:[%s9] sm:$0xff]
      %v461 = vld [vmem:[%s10] sm:$0xff]
      %v462 = vld [vmem:[%s11] sm:$0xff]
      %v463 = vsub.f32 1.0, %v462
      %v464 = vlaneseq
      %v465 = vand.u32 %v464, 127
      %v466 = vld [vmem:[%s433] sm:$0xff]
      %v467 = vld [vmem:[%s437] sm:$0xff]
      %468 = vset.pattern.permute.xlu0 0
      %469 = vperm.xlu0 %468, %v466
      %v470 = vpop.permute.xlu0 %469
      %vm471 = vcmp.eq.s32.totalorder %v470, %v465
      %v472 = vsel %vm471, 1, 0
      %v473 = vcvt.s32.f32 %v472
      %vm474 = vcmask 130048
      %v476 = vsel %vm474, %v473, 0
      %478 = vmatpush.msra.mxu0 0.0
      %479 = vmatpush.msra.mxu0 0.0
      %480 = vmatpush.msra.mxu0 0.0
      %481 = vmatpush.msra.mxu0 0.0
      %482 = vmatpush.msra.mxu0 0.0
      %483 = vmatpush.msra.mxu0 0.0
      %484 = vmatpush.msra.mxu0 0.0
      %485 = vmatpush.msra.mxu0 0.0
      %486 = vmatpush.msra.mxu0 0.0
      %487 = vmatpush.msra.mxu0 0.0
      %488 = vmatpush.msra.mxu0 0.0
      %489 = vmatpush.msra.mxu0 0.0
      %490 = vmatpush.msra.mxu0 0.0
      %491 = vmatpush.msra.mxu0 0.0
      %492 = vmatpush.msra.mxu0 %v449
      %493 = vmatpush.msra.mxu0 %v448
      %494 = vmatmul.f32.gmra.mxu0 %v476
      %v495 = vpop.f32.mrf.mxu0
      %v496 = vadd.f32 0.0, %v495
      %497 = vdwg.mxu0
      %vm498 = vcmask 31744
      %v500 = vsel %vm498, %v467, 0
      %vm502 = vcmask 1043456
      %v504 = vsel %vm502, %v454, 0
      %506 = vmatpush.msra.mxu0 0.0
      %507 = vmatpush.msra.mxu0 0.0
      %508 = vmatpush.msra.mxu0 0.0
      %509 = vmatpush.msra.mxu0 0.0
      %510 = vmatpush.msra.mxu0 0.0
      %511 = vmatpush.msra.mxu0 0.0
      %512 = vmatpush.msra.mxu0 0.0
      %513 = vmatpush.msra.mxu0 0.0
      %514 = vmatpush.msra.mxu0 0.0
      %515 = vmatpush.msra.mxu0 0.0
      %516 = vmatpush.msra.mxu0 0.0
      %517 = vmatpush.msra.mxu0 0.0
      %518 = vmatpush.msra.mxu0 0.0
      %519 = vmatpush.msra.mxu0 0.0
      %520 = vmatpush.msra.mxu0 0.0
      %521 = vmatpush.msra.mxu0 %v504
      %522 = vmatmul.f32.gmra.mxu0 %v500
      %v523 = vpop.f32.mrf.mxu0
      %v524 = vadd.f32 0.0, %v523
      %525 = vdwg.mxu0
      %527 = vset.pattern.permute.xlu0 0
      %528 = vperm.xlu0 %527, %v524
      %v529 = vpop.permute.xlu0 %528
      %vm531 = vcmask 261120
      %v533 = vsel %vm531, %v496, 0
      %535 = vmatpush.msra.mxu0 0.0
      %536 = vmatpush.msra.mxu0 0.0
      %537 = vmatpush.msra.mxu0 0.0
      %538 = vmatpush.msra.mxu0 0.0
      %539 = vmatpush.msra.mxu0 0.0
      %540 = vmatpush.msra.mxu0 0.0
      %541 = vmatpush.msra.mxu0 0.0
      %542 = vmatpush.msra.mxu0 0.0
      %543 = vmatpush.msra.mxu0 0.0
      %544 = vmatpush.msra.mxu0 0.0
      %545 = vmatpush.msra.mxu0 0.0
      %546 = vmatpush.msra.mxu0 0.0
      %547 = vmatpush.msra.mxu0 %v453
      %548 = vmatpush.msra.mxu0 %v452
      %549 = vmatpush.msra.mxu0 %v451
      %550 = vmatpush.msra.mxu0 %v450
      %551 = vmatmul.f32.gmra.mxu0 %v533
      %v552 = vpop.f32.mrf.mxu0
      %v553 = vadd.f32 %v529, %v552
      %554 = vdwg.mxu0
      %v556 = vperm.slane %v457, 0
      %557 = vset.pattern.permute.xlu0 0
      %558 = vperm.xlu0 %557, %v556
      %v559 = vpop.permute.xlu0 %558
      %v561 = vmul.f32 %v553, %v559
      %562 = vset.pattern.permute.xlu0 1
      %563 = vperm.xlu0 %562, %v556
      %v564 = vpop.permute.xlu0 %563
      %v566 = vadd.f32 %v561, %v564
      %vm567 = vcmask 64512
      %v568 = vsel %vm567, %v566, -inf
      %569 = vmax.xlane.f32.xlu0 %v568
      %v570 = vpop.xlane.xlu0 %569
      %v571 = vsub.f32 %v566, %v570
      %v572 = vmul.f32 %v571, 1.442695
      %v573 = vpow.pop %v572
      %v574 = vsel %vm567, %v573, 0.0
      %575 = vadd.xlane.f32.xlu0 %v574
      %v576 = vpop.xlane.xlu0 %575
      %v577 = vrcp.pop %v576
      %v578 = vmul.f32 %v576, %v577
      %v579 = vsub.f32 1.0, %v578
      %v580 = vmul.f32 %v577, %v579
      %v581 = vadd.f32 %v577, %v580
      %vm582 = vweird.f32 %v576
      %vm583 = vweird.f32 %v577
      %vm584 = vmor %vm582, %vm583
      %v585 = vsel %vm584, %v577, %v581
      %v586 = vand.u32 2147483647, %v576
      %vm587 = vcmp.eq.f32.partialorder %v586, 8.507059e+37
      %v588 = vand.u32 %v576, 2147483648
      %v589 = vor.u32 1.1754944e-38, %v588
      %v590 = vsel %vm587, %v589, %v585
      %v591 = vmul.f32 %v573, %v590
      %v592 = vsel %vm567, %v591, -inf
      %593 = vmax.xlane.f32.xlu0 %v592
      %v594 = vpop.xlane.xlu0 %593
      %vm595 = vcmp.eq.f32.partialorder %v591, %v594
      %v596 = vsel %vm595, %v465, 8
      %v597 = vsel %vm567, %v596, 2147483647
      %v598 = vand.u32 %v597, 65535
      %v599 = vshra.s32 %v597, 16
      %v600 = vcvt.s32.f32 %v598
      %v601 = vcvt.s32.f32 %v599
      %602 = vmin.xlane.f32.xlu0 %v601
      %v603 = vpop.xlane.xlu0 %602
      %vm604 = vcmp.eq.f32.partialorder %v601, %v603
      %v605 = vsel %vm604, %v600, inf
      %606 = vmin.xlane.f32.xlu0 %v605
      %v607 = vpop.xlane.xlu0 %606
      %v608 = vcvt.f32.s32 %v607
      %v609 = vcvt.f32.s32 %v603
      %v610 = vshll.u32 %v609, 16
      %v611 = vadd.s32 %v610, %v608
      %vm612 = vcmp.eq.s32.totalorder %v465, %v611
      %v613 = vsel %vm612, 1, 0
      %v614 = vcvt.s32.f32 %v613
      %v615 = vsub.f32 %v614, %v591
      %v616 = vadd.f32 %v615, %v591
      %618 = vset.pattern.permute.xlu0 0
      %619 = vperm.xlu0 %618, %v616
      %v620 = vpop.permute.xlu0 %619
      %v622 = vmul.f32 %v496, %v620
      %623 = vset.pattern.permute.xlu0 1
      %624 = vperm.xlu0 %623, %v616
      %v625 = vpop.permute.xlu0 %624
      %v627 = vmul.f32 %v496, %v625
      %629 = vrot.lane.b32.xlu0 %v627, 124
      %v630 = vpop.permute.xlu0 %629
      %v632 = vadd.f32 %v622, %v630
      %633 = vset.pattern.permute.xlu0 2
      %634 = vperm.xlu0 %633, %v616
      %v635 = vpop.permute.xlu0 %634
      %v637 = vmul.f32 %v496, %v635
      %639 = vrot.lane.b32.xlu0 %v637, 120
      %v640 = vpop.permute.xlu0 %639
      %v642 = vadd.f32 %v632, %v640
      %643 = vset.pattern.permute.xlu0 3
      %644 = vperm.xlu0 %643, %v616
      %v645 = vpop.permute.xlu0 %644
      %v647 = vmul.f32 %v496, %v645
      %649 = vrot.lane.b32.xlu0 %v647, 116
      %v650 = vpop.permute.xlu0 %649
      %v652 = vadd.f32 %v642, %v650
      %653 = vset.pattern.permute.xlu0 4
      %654 = vperm.xlu0 %653, %v616
      %v655 = vpop.permute.xlu0 %654
      %v657 = vmul.f32 %v496, %v655
      %659 = vrot.lane.b32.xlu0 %v657, 112
      %v660 = vpop.permute.xlu0 %659
      %v662 = vadd.f32 %v652, %v660
      %663 = vset.pattern.permute.xlu0 5
      %664 = vperm.xlu0 %663, %v616
      %v665 = vpop.permute.xlu0 %664
      %v667 = vmul.f32 %v496, %v665
      %669 = vrot.lane.b32.xlu0 %v667, 108
      %v670 = vpop.permute.xlu0 %669
      %v672 = vadd.f32 %v662, %v670
      %673 = vset.pattern.permute.xlu0 6
      %674 = vperm.xlu0 %673, %v616
      %v675 = vpop.permute.xlu0 %674
      %v677 = vmul.f32 %v496, %v675
      %679 = vrot.lane.b32.xlu0 %v677, 104
      %v680 = vpop.permute.xlu0 %679
      %v682 = vadd.f32 %v672, %v680
      %683 = vset.pattern.permute.xlu0 7
      %684 = vperm.xlu0 %683, %v616
      %v685 = vpop.permute.xlu0 %684
      %v687 = vmul.f32 %v496, %v685
      %689 = vrot.lane.b32.xlu0 %v687, 100
      %v690 = vpop.permute.xlu0 %689
      %v692 = vadd.f32 %v682, %v690
      %693 = vst.msk [vmem:[%s447] sm:$0xff] %vm498, %v692
      %695 = vrot.lane.b32.xlu0 %v614, 32
      %v696 = vpop.permute.xlu0 %695
      %v698 = vmul.f32 %v496, %v696
      %700 = vrot.lane.b32.xlu0 %v698, 96
      %v701 = vpop.permute.xlu0 %700
      %v703 = vsel %vm567, %v701, 0.0
      %704 = vadd.xlane.f32.xlu0 %v703
      %v705 = vpop.xlane.xlu0 %704
      %v706 = vcvt.f32.s32.to.zero.pseudo %v705
      %v708 = vsel %vm502, %v456, 0
      %710 = vmatpush.msra.mxu0 0.0
      %711 = vmatpush.msra.mxu0 0.0
      %712 = vmatpush.msra.mxu0 0.0
      %713 = vmatpush.msra.mxu0 0.0
      %714 = vmatpush.msra.mxu0 0.0
      %715 = vmatpush.msra.mxu0 0.0
      %716 = vmatpush.msra.mxu0 0.0
      %717 = vmatpush.msra.mxu0 0.0
      %718 = vmatpush.msra.mxu0 0.0
      %719 = vmatpush.msra.mxu0 0.0
      %720 = vmatpush.msra.mxu0 0.0
      %721 = vmatpush.msra.mxu0 0.0
      %722 = vmatpush.msra.mxu0 0.0
      %723 = vmatpush.msra.mxu0 0.0
      %724 = vmatpush.msra.mxu0 0.0
      %725 = vmatpush.msra.mxu0 %v708
      %726 = vmatmul.f32.gmra.mxu0 %v500
      %v727 = vpop.f32.mrf.mxu0
      %v728 = vadd.f32 0.0, %v727
      %729 = vdwg.mxu0
      %v731 = vsel %vm498, %v692, 0
      %v734 = vsel %vm502, %v455, 0
      %736 = vmatpush.msra.mxu0 0.0
      %737 = vmatpush.msra.mxu0 0.0
      %738 = vmatpush.msra.mxu0 0.0
      %739 = vmatpush.msra.mxu0 0.0
      %740 = vmatpush.msra.mxu0 0.0
      %741 = vmatpush.msra.mxu0 0.0
      %742 = vmatpush.msra.mxu0 0.0
      %743 = vmatpush.msra.mxu0 0.0
      %744 = vmatpush.msra.mxu0 0.0
      %745 = vmatpush.msra.mxu0 0.0
      %746 = vmatpush.msra.mxu0 0.0
      %747 = vmatpush.msra.mxu0 0.0
      %748 = vmatpush.msra.mxu0 0.0
      %749 = vmatpush.msra.mxu0 0.0
      %750 = vmatpush.msra.mxu0 0.0
      %751 = vmatpush.msra.mxu0 %v734
      %752 = vmatmul.f32.gmra.mxu0 %v731
      %v753 = vpop.f32.mrf.mxu0
      %v754 = vadd.f32 %v728, %v753
      %755 = vdwg.mxu0
      %v756 = vperm.slane %v458, 0
      %v757 = vmul.f32 %v754, %v756
      %v758 = vperm.slane %v459, 0
      %v759 = vadd.f32 %v757, %v758
      %vm760 = vcmask 15360
      %v761 = vsel %vm760, %v759, -inf
      %762 = vmax.xlane.f32.xlu0 %v761
      %v763 = vpop.xlane.xlu0 %762
      %v764 = vsub.f32 %v759, %v763
      %v765 = vmul.f32 %v764, 1.442695
      %v766 = vpow.pop %v765
      %v767 = vsel %vm760, %v766, 0.0
      %768 = vadd.xlane.f32.xlu0 %v767
      %v769 = vpop.xlane.xlu0 %768
      %v770 = vrcp.pop %v769
      %v771 = vmul.f32 %v769, %v770
      %v772 = vsub.f32 1.0, %v771
      %v773 = vmul.f32 %v770, %v772
      %v774 = vadd.f32 %v770, %v773
      %vm775 = vweird.f32 %v769
      %vm776 = vweird.f32 %v770
      %vm777 = vmor %vm775, %vm776
      %v778 = vsel %vm777, %v770, %v774
      %v779 = vand.u32 2147483647, %v769
      %vm780 = vcmp.eq.f32.partialorder %v779, 8.507059e+37
      %v781 = vand.u32 %v769, 2147483648
      %v782 = vor.u32 1.1754944e-38, %v781
      %v783 = vsel %vm780, %v782, %v778
      %v784 = vmul.f32 %v766, %v783
      %v786 = vsel %vm567, %v460, 0
      %788 = vmatpush.msra.mxu0 0.0
      %789 = vmatpush.msra.mxu0 0.0
      %790 = vmatpush.msra.mxu0 0.0
      %791 = vmatpush.msra.mxu0 0.0
      %792 = vmatpush.msra.mxu0 0.0
      %793 = vmatpush.msra.mxu0 0.0
      %794 = vmatpush.msra.mxu0 0.0
      %795 = vmatpush.msra.mxu0 0.0
      %796 = vmatpush.msra.mxu0 0.0
      %797 = vmatpush.msra.mxu0 0.0
      %798 = vmatpush.msra.mxu0 0.0
      %799 = vmatpush.msra.mxu0 0.0
      %800 = vmatpush.msra.mxu0 0.0
      %801 = vmatpush.msra.mxu0 0.0
      %802 = vmatpush.msra.mxu0 0.0
      %803 = vmatpush.msra.mxu0 %v784
      %804 = vmatmul.f32.gmra.mxu0 %v786
      %v805 = vpop.f32.mrf.mxu0
      %v806 = vadd.f32 0.0, %v805
      %807 = vdwg.mxu0
      %v809 = vsel %vm567, %v461, 0
      %811 = vmatpush.msra.mxu0 0.0
      %812 = vmatpush.msra.mxu0 0.0
      %813 = vmatpush.msra.mxu0 0.0
      %814 = vmatpush.msra.mxu0 0.0
      %815 = vmatpush.msra.mxu0 0.0
      %816 = vmatpush.msra.mxu0 0.0
      %817 = vmatpush.msra.mxu0 0.0
      %818 = vmatpush.msra.mxu0 0.0
      %819 = vmatpush.msra.mxu0 0.0
      %820 = vmatpush.msra.mxu0 0.0
      %821 = vmatpush.msra.mxu0 0.0
      %822 = vmatpush.msra.mxu0 0.0
      %823 = vmatpush.msra.mxu0 0.0
      %824 = vmatpush.msra.mxu0 0.0
      %825 = vmatpush.msra.mxu0 0.0
      %826 = vmatpush.msra.mxu0 %v784
      %827 = vmatmul.f32.gmra.mxu0 %v809
      %v828 = vpop.f32.mrf.mxu0
      %v829 = vadd.f32 0.0, %v828
      %830 = vdwg.mxu0
      %v831 = vmul.f32 %v806, %v462
      %833 = vrot.lane.b32.xlu0 %v463, 1
      %v834 = vpop.permute.xlu0 %833
      %v836 = vmul.f32 %v806, %v834
      %838 = vrot.lane.b32.xlu0 %v836, 127
      %v839 = vpop.permute.xlu0 %838
      %v841 = vadd.f32 %v831, %v839
      %843 = vrot.lane.b32.xlu0 %v462, 127
      %v844 = vpop.permute.xlu0 %843
      %v846 = vmul.f32 %v829, %v844
      %v847 = vmul.f32 %v829, %v463
      %849 = vrot.lane.b32.xlu0 %v847, 127
      %v850 = vpop.permute.xlu0 %849
      %v852 = vadd.f32 %v846, %v850
      %854 = vset.pattern.permute.xlu0 0
      %855 = vperm.xlu0 %854, %v841
      %v856 = vpop.permute.xlu0 %855
      %v858 = vmul.f32 %v692, %v856
      %860 = vset.pattern.permute.xlu0 0
      %861 = vperm.xlu0 %860, %v852
      %v862 = vpop.permute.xlu0 %861
      %v864 = vmul.f32 %v467, %v862
      %v865 = vadd.f32 %v858, %v864
      %vm866 = vcmp.eq.s32.totalorder %v706, %v465
      %v867 = vsel %vm866, 1, 0
      %v868 = vcvt.s32.f32 %v867
      %v870 = vsel %vm474, %v868, 0
      %872 = vmatpush.msra.mxu0 0.0
      %873 = vmatpush.msra.mxu0 0.0
      %874 = vmatpush.msra.mxu0 0.0
      %875 = vmatpush.msra.mxu0 0.0
      %876 = vmatpush.msra.mxu0 0.0
      %877 = vmatpush.msra.mxu0 0.0
      %878 = vmatpush.msra.mxu0 0.0
      %879 = vmatpush.msra.mxu0 0.0
      %880 = vmatpush.msra.mxu0 0.0
      %881 = vmatpush.msra.mxu0 0.0
      %882 = vmatpush.msra.mxu0 0.0
      %883 = vmatpush.msra.mxu0 0.0
      %884 = vmatpush.msra.mxu0 0.0
      %885 = vmatpush.msra.mxu0 0.0
      %886 = vmatpush.msra.mxu0 %v449
      %887 = vmatpush.msra.mxu0 %v448
      %888 = vmatmul.f32.gmra.mxu0 %v870
      %v889 = vpop.f32.mrf.mxu0
      %v890 = vadd.f32 0.0, %v889
      %891 = vdwg.mxu0
      %v893 = vsel %vm498, %v865, 0
      %895 = vmatpush.msra.mxu0 0.0
      %896 = vmatpush.msra.mxu0 0.0
      %897 = vmatpush.msra.mxu0 0.0
      %898 = vmatpush.msra.mxu0 0.0
      %899 = vmatpush.msra.mxu0 0.0
      %900 = vmatpush.msra.mxu0 0.0
      %901 = vmatpush.msra.mxu0 0.0
      %902 = vmatpush.msra.mxu0 0.0
      %903 = vmatpush.msra.mxu0 0.0
      %904 = vmatpush.msra.mxu0 0.0
      %905 = vmatpush.msra.mxu0 0.0
      %906 = vmatpush.msra.mxu0 0.0
      %907 = vmatpush.msra.mxu0 0.0
      %908 = vmatpush.msra.mxu0 0.0
      %909 = vmatpush.msra.mxu0 0.0
      %910 = vmatpush.msra.mxu0 %v504
      %911 = vmatmul.f32.gmra.mxu0 %v893
      %v912 = vpop.f32.mrf.mxu0
      %v913 = vadd.f32 0.0, %v912
      %914 = vdwg.mxu0
      %916 = vset.pattern.permute.xlu0 0
      %917 = vperm.xlu0 %916, %v913
      %v918 = vpop.permute.xlu0 %917
      %v921 = vsel %vm531, %v890, 0
      %923 = vmatpush.msra.mxu0 0.0
      %924 = vmatpush.msra.mxu0 0.0
      %925 = vmatpush.msra.mxu0 0.0
      %926 = vmatpush.msra.mxu0 0.0
      %927 = vmatpush.msra.mxu0 0.0
      %928 = vmatpush.msra.mxu0 0.0
      %929 = vmatpush.msra.mxu0 0.0
      %930 = vmatpush.msra.mxu0 0.0
      %931 = vmatpush.msra.mxu0 0.0
      %932 = vmatpush.msra.mxu0 0.0
      %933 = vmatpush.msra.mxu0 0.0
      %934 = vmatpush.msra.mxu0 0.0
      %935 = vmatpush.msra.mxu0 %v453
      %936 = vmatpush.msra.mxu0 %v452
      %937 = vmatpush.msra.mxu0 %v451
      %938 = vmatpush.msra.mxu0 %v450
      %939 = vmatmul.f32.gmra.mxu0 %v921
      %v940 = vpop.f32.mrf.mxu0
      %v941 = vadd.f32 %v918, %v940
      %942 = vdwg.mxu0
      %v943 = vmul.f32 %v941, %v559
      %v944 = vadd.f32 %v943, %v564
      %v945 = vsub.f32 %v692, %v865
      %v946 = vmul.f32 %v945, %v945
      %v947 = vsel %vm498, %v946, 0.0
      %948 = vadd.xlane.f32.xlu0 %v947
      %v949 = vpop.xlane.xlu0 %948
      %v950 = vrsqrt.pop %v949
      %v951 = vmul.f32 %v950, %v949
      %v952 = vmul.f32 %v951, %v950
      %v953 = vmul.f32 0.5, %v952
      %v954 = vsub.f32 1.5, %v953
      %v955 = vmul.f32 %v950, %v954
      %v956 = vmul.f32 %v949, %v955
      %vm957 = vcmp.eq.f32.partialorder %v949, inf
      %v958 = vsel %vm957, %v949, %v956
      %vm959 = vcmp.eq.f32.partialorder %v949, 0.0
      %v960 = vand.u32 %v949, 2147483648
      %v961 = vsel %vm959, %v960, %v958
      %v962 = vsub.f32 %v890, %v692
      %v963 = vmul.f32 %v962, %v945
      %v964 = vsel %vm498, %v963, 0.0
      %965 = vadd.xlane.f32.xlu0 %v964
      %v966 = vpop.xlane.xlu0 %965
      %v967 = vmul.f32 %v962, %v962
      %v968 = vsel %vm498, %v967, 0.0
      %969 = vadd.xlane.f32.xlu0 %v968
      %v970 = vpop.xlane.xlu0 %969
      %v971 = vrsqrt.pop %v970
      %v972 = vmul.f32 %v971, %v970
      %v973 = vmul.f32 %v972, %v971
      %v974 = vmul.f32 0.5, %v973
      %v975 = vsub.f32 1.5, %v974
      %v976 = vmul.f32 %v971, %v975
      %v977 = vmul.f32 %v970, %v976
      %vm978 = vcmp.eq.f32.partialorder %v970, inf
      %v979 = vsel %vm978, %v970, %v977
      %vm980 = vcmp.eq.f32.partialorder %v970, 0.0
      %v981 = vand.u32 %v970, 2147483648
      %v982 = vsel %vm980, %v981, %v979
      %v983 = vmul.f32 %v961, %v982
      %v984 = vmax.f32 %v983, 1e-08
      %v985 = vrcp.pop %v984
      %v986 = vmul.f32 %v984, %v985
      %v987 = vsub.f32 1.0, %v986
      %v988 = vmul.f32 %v985, %v987
      %v989 = vadd.f32 %v985, %v988
      %vm990 = vweird.f32 %v984
      %vm991 = vweird.f32 %v985
      %vm992 = vmor %vm990, %vm991
      %v993 = vsel %vm992, %v985, %v989
      %v994 = vand.u32 2147483647, %v984
      %vm995 = vcmp.eq.f32.partialorder %v994, 8.507059e+37
      %v996 = vand.u32 %v984, 2147483648
      %v997 = vor.u32 1.1754944e-38, %v996
      %v998 = vsel %vm995, %v997, %v993
      %v999 = vmul.f32 %v966, %v998
      %v1000 = vadd.f32 %v999, 1.0
      %v1001 = vmax.f32 %v1000, 0.0
      %v1002 = vmin.f32 %v1001, 1.0
      %1003 = vrot.lane.b32.xlu0 %v692, 4
      %v1004 = vpop.permute.xlu0 %1003
      %v1006 = vsub.f32 %v890, %v1004
      %1008 = vrot.lane.b32.xlu0 %v945, 4
      %v1009 = vpop.permute.xlu0 %1008
      %v1011 = vmul.f32 %v1006, %v1009
      %1013 = vrot.lane.b32.xlu0 %v1011, 124
      %v1014 = vpop.permute.xlu0 %1013
      %v1016 = vsel %vm498, %v1014, 0.0
      %1017 = vadd.xlane.f32.xlu0 %v1016
      %v1018 = vpop.xlane.xlu0 %1017
      %v1019 = vmul.f32 %v1006, %v1006
      %1021 = vrot.lane.b32.xlu0 %v1019, 124
      %v1022 = vpop.permute.xlu0 %1021
      %v1024 = vsel %vm498, %v1022, 0.0
      %1025 = vadd.xlane.f32.xlu0 %v1024
      %v1026 = vpop.xlane.xlu0 %1025
      %v1027 = vrsqrt.pop %v1026
      %v1028 = vmul.f32 %v1027, %v1026
      %v1029 = vmul.f32 %v1028, %v1027
      %v1030 = vmul.f32 0.5, %v1029
      %v1031 = vsub.f32 1.5, %v1030
      %v1032 = vmul.f32 %v1027, %v1031
      %v1033 = vmul.f32 %v1026, %v1032
      %vm1034 = vcmp.eq.f32.partialorder %v1026, inf
      %v1035 = vsel %vm1034, %v1026, %v1033
      %vm1036 = vcmp.eq.f32.partialorder %v1026, 0.0
      %v1037 = vand.u32 %v1026, 2147483648
      %v1038 = vsel %vm1036, %v1037, %v1035
      %v1039 = vmul.f32 %v961, %v1038
      %v1040 = vmax.f32 %v1039, 1e-08
      %v1041 = vrcp.pop %v1040
      %v1042 = vmul.f32 %v1040, %v1041
      %v1043 = vsub.f32 1.0, %v1042
      %v1044 = vmul.f32 %v1041, %v1043
      %v1045 = vadd.f32 %v1041, %v1044
      %vm1046 = vweird.f32 %v1040
      %vm1047 = vweird.f32 %v1041
      %vm1048 = vmor %vm1046, %vm1047
      %v1049 = vsel %vm1048, %v1041, %v1045
      %v1050 = vand.u32 2147483647, %v1040
      %vm1051 = vcmp.eq.f32.partialorder %v1050, 8.507059e+37
      %v1052 = vand.u32 %v1040, 2147483648
      %v1053 = vor.u32 1.1754944e-38, %v1052
      %v1054 = vsel %vm1051, %v1053, %v1049
      %v1055 = vmul.f32 %v1018, %v1054
      %v1056 = vadd.f32 %v1055, 1.0
      %v1057 = vmax.f32 %v1056, 0.0
      %v1058 = vmin.f32 %v1057, 1.0
      %1059 = vrot.lane.b32.xlu0 %v692, 8
      %v1060 = vpop.permute.xlu0 %1059
      %v1062 = vsub.f32 %v890, %v1060
      %1063 = vrot.lane.b32.xlu0 %v945, 8
      %v1064 = vpop.permute.xlu0 %1063
      %v1066 = vmul.f32 %v1062, %v1064
      %1068 = vrot.lane.b32.xlu0 %v1066, 120
      %v1069 = vpop.permute.xlu0 %1068
      %v1071 = vsel %vm498, %v1069, 0.0
      %1072 = vadd.xlane.f32.xlu0 %v1071
      %v1073 = vpop.xlane.xlu0 %1072
      %v1074 = vmul.f32 %v1062, %v1062
      %1076 = vrot.lane.b32.xlu0 %v1074, 120
      %v1077 = vpop.permute.xlu0 %1076
      %v1079 = vsel %vm498, %v1077, 0.0
      %1080 = vadd.xlane.f32.xlu0 %v1079
      %v1081 = vpop.xlane.xlu0 %1080
      %v1082 = vrsqrt.pop %v1081
      %v1083 = vmul.f32 %v1082, %v1081
      %v1084 = vmul.f32 %v1083, %v1082
      %v1085 = vmul.f32 0.5, %v1084
      %v1086 = vsub.f32 1.5, %v1085
      %v1087 = vmul.f32 %v1082, %v1086
      %v1088 = vmul.f32 %v1081, %v1087
      %vm1089 = vcmp.eq.f32.partialorder %v1081, inf
      %v1090 = vsel %vm1089, %v1081, %v1088
      %vm1091 = vcmp.eq.f32.partialorder %v1081, 0.0
      %v1092 = vand.u32 %v1081, 2147483648
      %v1093 = vsel %vm1091, %v1092, %v1090
      %v1094 = vmul.f32 %v961, %v1093
      %v1095 = vmax.f32 %v1094, 1e-08
      %v1096 = vrcp.pop %v1095
      %v1097 = vmul.f32 %v1095, %v1096
      %v1098 = vsub.f32 1.0, %v1097
      %v1099 = vmul.f32 %v1096, %v1098
      %v1100 = vadd.f32 %v1096, %v1099
      %vm1101 = vweird.f32 %v1095
      %vm1102 = vweird.f32 %v1096
      %vm1103 = vmor %vm1101, %vm1102
      %v1104 = vsel %vm1103, %v1096, %v1100
      %v1105 = vand.u32 2147483647, %v1095
      %vm1106 = vcmp.eq.f32.partialorder %v1105, 8.507059e+37
      %v1107 = vand.u32 %v1095, 2147483648
      %v1108 = vor.u32 1.1754944e-38, %v1107
      %v1109 = vsel %vm1106, %v1108, %v1104
      %v1110 = vmul.f32 %v1073, %v1109
      %v1111 = vadd.f32 %v1110, 1.0
      %v1112 = vmax.f32 %v1111, 0.0
      %v1113 = vmin.f32 %v1112, 1.0
      %1114 = vrot.lane.b32.xlu0 %v692, 12
      %v1115 = vpop.permute.xlu0 %1114
      %v1117 = vsub.f32 %v890, %v1115
      %1118 = vrot.lane.b32.xlu0 %v945, 12
      %v1119 = vpop.permute.xlu0 %1118
      %v1121 = vmul.f32 %v1117, %v1119
      %1123 = vrot.lane.b32.xlu0 %v1121, 116
      %v1124 = vpop.permute.xlu0 %1123
      %v1126 = vsel %vm498, %v1124, 0.0
      %1127 = vadd.xlane.f32.xlu0 %v1126
      %v1128 = vpop.xlane.xlu0 %1127
      %v1129 = vmul.f32 %v1117, %v1117
      %1131 = vrot.lane.b32.xlu0 %v1129, 116
      %v1132 = vpop.permute.xlu0 %1131
      %v1134 = vsel %vm498, %v1132, 0.0
      %1135 = vadd.xlane.f32.xlu0 %v1134
      %v1136 = vpop.xlane.xlu0 %1135
      %v1137 = vrsqrt.pop %v1136
      %v1138 = vmul.f32 %v1137, %v1136
      %v1139 = vmul.f32 %v1138, %v1137
      %v1140 = vmul.f32 0.5, %v1139
      %v1141 = vsub.f32 1.5, %v1140
      %v1142 = vmul.f32 %v1137, %v1141
      %v1143 = vmul.f32 %v1136, %v1142
      %vm1144 = vcmp.eq.f32.partialorder %v1136, inf
      %v1145 = vsel %vm1144, %v1136, %v1143
      %vm1146 = vcmp.eq.f32.partialorder %v1136, 0.0
      %v1147 = vand.u32 %v1136, 2147483648
      %v1148 = vsel %vm1146, %v1147, %v1145
      %v1149 = vmul.f32 %v961, %v1148
      %v1150 = vmax.f32 %v1149, 1e-08
      %v1151 = vrcp.pop %v1150
      %v1152 = vmul.f32 %v1150, %v1151
      %v1153 = vsub.f32 1.0, %v1152
      %v1154 = vmul.f32 %v1151, %v1153
      %v1155 = vadd.f32 %v1151, %v1154
      %vm1156 = vweird.f32 %v1150
      %vm1157 = vweird.f32 %v1151
      %vm1158 = vmor %vm1156, %vm1157
      %v1159 = vsel %vm1158, %v1151, %v1155
      %v1160 = vand.u32 2147483647, %v1150
      %vm1161 = vcmp.eq.f32.partialorder %v1160, 8.507059e+37
      %v1162 = vand.u32 %v1150, 2147483648
      %v1163 = vor.u32 1.1754944e-38, %v1162
      %v1164 = vsel %vm1161, %v1163, %v1159
      %v1165 = vmul.f32 %v1128, %v1164
      %v1166 = vadd.f32 %v1165, 1.0
      %v1167 = vmax.f32 %v1166, 0.0
      %v1168 = vmin.f32 %v1167, 1.0
      %1169 = vrot.lane.b32.xlu0 %v692, 16
      %v1170 = vpop.permute.xlu0 %1169
      %v1172 = vsub.f32 %v890, %v1170
      %1173 = vrot.lane.b32.xlu0 %v945, 16
      %v1174 = vpop.permute.xlu0 %1173
      %v1176 = vmul.f32 %v1172, %v1174
      %1178 = vrot.lane.b32.xlu0 %v1176, 112
      %v1179 = vpop.permute.xlu0 %1178
      %v1181 = vsel %vm498, %v1179, 0.0
      %1182 = vadd.xlane.f32.xlu0 %v1181
      %v1183 = vpop.xlane.xlu0 %1182
      %v1184 = vmul.f32 %v1172, %v1172
      %1186 = vrot.lane.b32.xlu0 %v1184, 112
      %v1187 = vpop.permute.xlu0 %1186
      %v1189 = vsel %vm498, %v1187, 0.0
      %1190 = vadd.xlane.f32.xlu0 %v1189
      %v1191 = vpop.xlane.xlu0 %1190
      %v1192 = vrsqrt.pop %v1191
      %v1193 = vmul.f32 %v1192, %v1191
      %v1194 = vmul.f32 %v1193, %v1192
      %v1195 = vmul.f32 0.5, %v1194
      %v1196 = vsub.f32 1.5, %v1195
      %v1197 = vmul.f32 %v1192, %v1196
      %v1198 = vmul.f32 %v1191, %v1197
      %vm1199 = vcmp.eq.f32.partialorder %v1191, inf
      %v1200 = vsel %vm1199, %v1191, %v1198
      %vm1201 = vcmp.eq.f32.partialorder %v1191, 0.0
      %v1202 = vand.u32 %v1191, 2147483648
      %v1203 = vsel %vm1201, %v1202, %v1200
      %v1204 = vmul.f32 %v961, %v1203
      %v1205 = vmax.f32 %v1204, 1e-08
      %v1206 = vrcp.pop %v1205
      %v1207 = vmul.f32 %v1205, %v1206
      %v1208 = vsub.f32 1.0, %v1207
      %v1209 = vmul.f32 %v1206, %v1208
      %v1210 = vadd.f32 %v1206, %v1209
      %vm1211 = vweird.f32 %v1205
      %vm1212 = vweird.f32 %v1206
      %vm1213 = vmor %vm1211, %vm1212
      %v1214 = vsel %vm1213, %v1206, %v1210
      %v1215 = vand.u32 2147483647, %v1205
      %vm1216 = vcmp.eq.f32.partialorder %v1215, 8.507059e+37
      %v1217 = vand.u32 %v1205, 2147483648
      %v1218 = vor.u32 1.1754944e-38, %v1217
      %v1219 = vsel %vm1216, %v1218, %v1214
      %v1220 = vmul.f32 %v1183, %v1219
      %v1221 = vadd.f32 %v1220, 1.0
      %v1222 = vmax.f32 %v1221, 0.0
      %v1223 = vmin.f32 %v1222, 1.0
      %1224 = vrot.lane.b32.xlu0 %v692, 20
      %v1225 = vpop.permute.xlu0 %1224
      %v1227 = vsub.f32 %v890, %v1225
      %1228 = vrot.lane.b32.xlu0 %v945, 20
      %v1229 = vpop.permute.xlu0 %1228
      %v1231 = vmul.f32 %v1227, %v1229
      %1233 = vrot.lane.b32.xlu0 %v1231, 108
      %v1234 = vpop.permute.xlu0 %1233
      %v1236 = vsel %vm498, %v1234, 0.0
      %1237 = vadd.xlane.f32.xlu0 %v1236
      %v1238 = vpop.xlane.xlu0 %1237
      %v1239 = vmul.f32 %v1227, %v1227
      %1241 = vrot.lane.b32.xlu0 %v1239, 108
      %v1242 = vpop.permute.xlu0 %1241
      %v1244 = vsel %vm498, %v1242, 0.0
      %1245 = vadd.xlane.f32.xlu0 %v1244
      %v1246 = vpop.xlane.xlu0 %1245
      %v1247 = vrsqrt.pop %v1246
      %v1248 = vmul.f32 %v1247, %v1246
      %v1249 = vmul.f32 %v1248, %v1247
      %v1250 = vmul.f32 0.5, %v1249
      %v1251 = vsub.f32 1.5, %v1250
      %v1252 = vmul.f32 %v1247, %v1251
      %v1253 = vmul.f32 %v1246, %v1252
      %vm1254 = vcmp.eq.f32.partialorder %v1246, inf
      %v1255 = vsel %vm1254, %v1246, %v1253
      %vm1256 = vcmp.eq.f32.partialorder %v1246, 0.0
      %v1257 = vand.u32 %v1246, 2147483648
      %v1258 = vsel %vm1256, %v1257, %v1255
      %v1259 = vmul.f32 %v961, %v1258
      %v1260 = vmax.f32 %v1259, 1e-08
      %v1261 = vrcp.pop %v1260
      %v1262 = vmul.f32 %v1260, %v1261
      %v1263 = vsub.f32 1.0, %v1262
      %v1264 = vmul.f32 %v1261, %v1263
      %v1265 = vadd.f32 %v1261, %v1264
      %vm1266 = vweird.f32 %v1260
      %vm1267 = vweird.f32 %v1261
      %vm1268 = vmor %vm1266, %vm1267
      %v1269 = vsel %vm1268, %v1261, %v1265
      %v1270 = vand.u32 2147483647, %v1260
      %vm1271 = vcmp.eq.f32.partialorder %v1270, 8.507059e+37
      %v1272 = vand.u32 %v1260, 2147483648
      %v1273 = vor.u32 1.1754944e-38, %v1272
      %v1274 = vsel %vm1271, %v1273, %v1269
      %v1275 = vmul.f32 %v1238, %v1274
      %v1276 = vadd.f32 %v1275, 1.0
      %v1277 = vmax.f32 %v1276, 0.0
      %v1278 = vmin.f32 %v1277, 1.0
      %1279 = vrot.lane.b32.xlu0 %v692, 24
      %v1280 = vpop.permute.xlu0 %1279
      %v1282 = vsub.f32 %v890, %v1280
      %1283 = vrot.lane.b32.xlu0 %v945, 24
      %v1284 = vpop.permute.xlu0 %1283
      %v1286 = vmul.f32 %v1282, %v1284
      %1288 = vrot.lane.b32.xlu0 %v1286, 104
      %v1289 = vpop.permute.xlu0 %1288
      %v1291 = vsel %vm498, %v1289, 0.0
      %1292 = vadd.xlane.f32.xlu0 %v1291
      %v1293 = vpop.xlane.xlu0 %1292
      %v1294 = vmul.f32 %v1282, %v1282
      %1296 = vrot.lane.b32.xlu0 %v1294, 104
      %v1297 = vpop.permute.xlu0 %1296
      %v1299 = vsel %vm498, %v1297, 0.0
      %1300 = vadd.xlane.f32.xlu0 %v1299
      %v1301 = vpop.xlane.xlu0 %1300
      %v1302 = vrsqrt.pop %v1301
      %v1303 = vmul.f32 %v1302, %v1301
      %v1304 = vmul.f32 %v1303, %v1302
      %v1305 = vmul.f32 0.5, %v1304
      %v1306 = vsub.f32 1.5, %v1305
      %v1307 = vmul.f32 %v1302, %v1306
      %v1308 = vmul.f32 %v1301, %v1307
      %vm1309 = vcmp.eq.f32.partialorder %v1301, inf
      %v1310 = vsel %vm1309, %v1301, %v1308
      %vm1311 = vcmp.eq.f32.partialorder %v1301, 0.0
      %v1312 = vand.u32 %v1301, 2147483648
      %v1313 = vsel %vm1311, %v1312, %v1310
      %v1314 = vmul.f32 %v961, %v1313
      %v1315 = vmax.f32 %v1314, 1e-08
      %v1316 = vrcp.pop %v1315
      %v1317 = vmul.f32 %v1315, %v1316
      %v1318 = vsub.f32 1.0, %v1317
      %v1319 = vmul.f32 %v1316, %v1318
      %v1320 = vadd.f32 %v1316, %v1319
      %vm1321 = vweird.f32 %v1315
      %vm1322 = vweird.f32 %v1316
      %vm1323 = vmor %vm1321, %vm1322
      %v1324 = vsel %vm1323, %v1316, %v1320
      %v1325 = vand.u32 2147483647, %v1315
      %vm1326 = vcmp.eq.f32.partialorder %v1325, 8.507059e+37
      %v1327 = vand.u32 %v1315, 2147483648
      %v1328 = vor.u32 1.1754944e-38, %v1327
      %v1329 = vsel %vm1326, %v1328, %v1324
      %v1330 = vmul.f32 %v1293, %v1329
      %v1331 = vadd.f32 %v1330, 1.0
      %v1332 = vmax.f32 %v1331, 0.0
      %v1333 = vmin.f32 %v1332, 1.0
      %1334 = vrot.lane.b32.xlu0 %v692, 28
      %v1335 = vpop.permute.xlu0 %1334
      %v1337 = vsub.f32 %v890, %v1335
      %1338 = vrot.lane.b32.xlu0 %v945, 28
      %v1339 = vpop.permute.xlu0 %1338
      %v1341 = vmul.f32 %v1337, %v1339
      %1343 = vrot.lane.b32.xlu0 %v1341, 100
      %v1344 = vpop.permute.xlu0 %1343
      %v1346 = vsel %vm498, %v1344, 0.0
      %1347 = vadd.xlane.f32.xlu0 %v1346
      %v1348 = vpop.xlane.xlu0 %1347
      %v1349 = vmul.f32 %v1337, %v1337
      %1351 = vrot.lane.b32.xlu0 %v1349, 100
      %v1352 = vpop.permute.xlu0 %1351
      %v1354 = vsel %vm498, %v1352, 0.0
      %1355 = vadd.xlane.f32.xlu0 %v1354
      %v1356 = vpop.xlane.xlu0 %1355
      %v1357 = vrsqrt.pop %v1356
      %v1358 = vmul.f32 %v1357, %v1356
      %v1359 = vmul.f32 %v1358, %v1357
      %v1360 = vmul.f32 0.5, %v1359
      %v1361 = vsub.f32 1.5, %v1360
      %v1362 = vmul.f32 %v1357, %v1361
      %v1363 = vmul.f32 %v1356, %v1362
      %vm1364 = vcmp.eq.f32.partialorder %v1356, inf
      %v1365 = vsel %vm1364, %v1356, %v1363
      %vm1366 = vcmp.eq.f32.partialorder %v1356, 0.0
      %v1367 = vand.u32 %v1356, 2147483648
      %v1368 = vsel %vm1366, %v1367, %v1365
      %v1369 = vmul.f32 %v961, %v1368
      %v1370 = vmax.f32 %v1369, 1e-08
      %v1371 = vrcp.pop %v1370
      %v1372 = vmul.f32 %v1370, %v1371
      %v1373 = vsub.f32 1.0, %v1372
      %v1374 = vmul.f32 %v1371, %v1373
      %v1375 = vadd.f32 %v1371, %v1374
      %vm1376 = vweird.f32 %v1370
      %vm1377 = vweird.f32 %v1371
      %vm1378 = vmor %vm1376, %vm1377
      %v1379 = vsel %vm1378, %v1371, %v1375
      %v1380 = vand.u32 2147483647, %v1370
      %vm1381 = vcmp.eq.f32.partialorder %v1380, 8.507059e+37
      %v1382 = vand.u32 %v1370, 2147483648
      %v1383 = vor.u32 1.1754944e-38, %v1382
      %v1384 = vsel %vm1381, %v1383, %v1379
      %v1385 = vmul.f32 %v1348, %v1384
      %v1386 = vadd.f32 %v1385, 1.0
      %v1387 = vmax.f32 %v1386, 0.0
      %v1388 = vmin.f32 %v1387, 1.0
      %vm1389 = vcmask 7168
      %v1390 = vsel %vm1389, %v1002, %v1058
      %v1391 = vsel %vm760, %v1390, %v1113
      %vm1392 = vcmask 23552
      %v1393 = vsel %vm1392, %v1391, %v1168
      %v1394 = vsel %vm498, %v1393, %v1223
      %vm1395 = vcmask 39936
      %v1396 = vsel %vm1395, %v1394, %v1278
      %vm1397 = vcmask 48128
      %v1398 = vsel %vm1397, %v1396, %v1333
      %vm1399 = vcmask 56320
      %v1400 = vsel %vm1399, %v1398, %v1388
      %v1401 = vmul.f32 %v944, %v1400
      %v1402 = vsel %vm567, %v1401, -inf
      %1403 = vmax.xlane.f32.xlu0 %v1402
      %v1404 = vpop.xlane.xlu0 %1403
      %v1405 = vsub.f32 %v1401, %v1404
      %v1406 = vmul.f32 %v1405, 1.442695
      %v1407 = vpow.pop %v1406
      %v1408 = vsel %vm567, %v1407, 0.0
      %1409 = vadd.xlane.f32.xlu0 %v1408
      %v1410 = vpop.xlane.xlu0 %1409
      %v1411 = vrcp.pop %v1410
      %v1412 = vmul.f32 %v1410, %v1411
      %v1413 = vsub.f32 1.0, %v1412
      %v1414 = vmul.f32 %v1411, %v1413
      %v1415 = vadd.f32 %v1411, %v1414
      %vm1416 = vweird.f32 %v1410
      %vm1417 = vweird.f32 %v1411
      %vm1418 = vmor %vm1416, %vm1417
      %v1419 = vsel %vm1418, %v1411, %v1415
      %v1420 = vand.u32 2147483647, %v1410
      %vm1421 = vcmp.eq.f32.partialorder %v1420, 8.507059e+37
      %v1422 = vand.u32 %v1410, 2147483648
      %v1423 = vor.u32 1.1754944e-38, %v1422
      %v1424 = vsel %vm1421, %v1423, %v1419
      %v1425 = vmul.f32 %v1407, %v1424
      %v1426 = vsel %vm567, %v1425, -inf
      %1427 = vmax.xlane.f32.xlu0 %v1426
      %v1428 = vpop.xlane.xlu0 %1427
      %vm1429 = vcmp.eq.f32.partialorder %v1425, %v1428
      %v1430 = vsel %vm1429, %v465, 8
      %v1431 = vsel %vm567, %v1430, 2147483647
      %v1432 = vand.u32 %v1431, 65535
      %v1433 = vshra.s32 %v1431, 16
      %v1434 = vcvt.s32.f32 %v1432
      %v1435 = vcvt.s32.f32 %v1433
      %1436 = vmin.xlane.f32.xlu0 %v1435
      %v1437 = vpop.xlane.xlu0 %1436
      %vm1438 = vcmp.eq.f32.partialorder %v1435, %v1437
      %v1439 = vsel %vm1438, %v1434, inf
      %1440 = vmin.xlane.f32.xlu0 %v1439
      %v1441 = vpop.xlane.xlu0 %1440
      %v1442 = vcvt.f32.s32 %v1441
      %v1443 = vcvt.f32.s32 %v1437
      %v1444 = vshll.u32 %v1443, 16
      %v1445 = vadd.s32 %v1444, %v1442
      %vm1446 = vcmp.eq.s32.totalorder %v465, %v1445
      %v1447 = vsel %vm1446, 1, 0
      %v1448 = vcvt.s32.f32 %v1447
      %v1449 = vsub.f32 %v1448, %v1425
      %v1450 = vadd.f32 %v1449, %v1425
      %1452 = vset.pattern.permute.xlu0 0
      %1453 = vperm.xlu0 %1452, %v1450
      %v1454 = vpop.permute.xlu0 %1453
      %v1456 = vmul.f32 %v890, %v1454
      %1457 = vset.pattern.permute.xlu0 1
      %1458 = vperm.xlu0 %1457, %v1450
      %v1459 = vpop.permute.xlu0 %1458
      %v1461 = vmul.f32 %v890, %v1459
      %1463 = vrot.lane.b32.xlu0 %v1461, 124
      %v1464 = vpop.permute.xlu0 %1463
      %v1466 = vadd.f32 %v1456, %v1464
      %1467 = vset.pattern.permute.xlu0 2
      %1468 = vperm.xlu0 %1467, %v1450
      %v1469 = vpop.permute.xlu0 %1468
      %v1471 = vmul.f32 %v890, %v1469
      %1473 = vrot.lane.b32.xlu0 %v1471, 120
      %v1474 = vpop.permute.xlu0 %1473
      %v1476 = vadd.f32 %v1466, %v1474
      %1477 = vset.pattern.permute.xlu0 3
      %1478 = vperm.xlu0 %1477, %v1450
      %v1479 = vpop.permute.xlu0 %1478
      %v1481 = vmul.f32 %v890, %v1479
      %1483 = vrot.lane.b32.xlu0 %v1481, 116
      %v1484 = vpop.permute.xlu0 %1483
      %v1486 = vadd.f32 %v1476, %v1484
      %1487 = vset.pattern.permute.xlu0 4
      %1488 = vperm.xlu0 %1487, %v1450
      %v1489 = vpop.permute.xlu0 %1488
      %v1491 = vmul.f32 %v890, %v1489
      %1493 = vrot.lane.b32.xlu0 %v1491, 112
      %v1494 = vpop.permute.xlu0 %1493
      %v1496 = vadd.f32 %v1486, %v1494
      %1497 = vset.pattern.permute.xlu0 5
      %1498 = vperm.xlu0 %1497, %v1450
      %v1499 = vpop.permute.xlu0 %1498
      %v1501 = vmul.f32 %v890, %v1499
      %1503 = vrot.lane.b32.xlu0 %v1501, 108
      %v1504 = vpop.permute.xlu0 %1503
      %v1506 = vadd.f32 %v1496, %v1504
      %1507 = vset.pattern.permute.xlu0 6
      %1508 = vperm.xlu0 %1507, %v1450
      %v1509 = vpop.permute.xlu0 %1508
      %v1511 = vmul.f32 %v890, %v1509
      %1513 = vrot.lane.b32.xlu0 %v1511, 104
      %v1514 = vpop.permute.xlu0 %1513
      %v1516 = vadd.f32 %v1506, %v1514
      %1517 = vset.pattern.permute.xlu0 7
      %1518 = vperm.xlu0 %1517, %v1450
      %v1519 = vpop.permute.xlu0 %1518
      %v1521 = vmul.f32 %v890, %v1519
      %1523 = vrot.lane.b32.xlu0 %v1521, 100
      %v1524 = vpop.permute.xlu0 %1523
      %v1526 = vadd.f32 %v1516, %v1524
      %s1527 = scalar_lea.vmem %s447, 8
      %1528 = vst.msk [vmem:[%s1527] sm:$0xff] %vm498, %v1526
      %1530 = vrot.lane.b32.xlu0 %v1448, 32
      %v1531 = vpop.permute.xlu0 %1530
      %v1533 = vmul.f32 %v890, %v1531
      %1535 = vrot.lane.b32.xlu0 %v1533, 96
      %v1536 = vpop.permute.xlu0 %1535
      %v1538 = vsel %vm567, %v1536, 0.0
      %1539 = vadd.xlane.f32.xlu0 %v1538
      %v1540 = vpop.xlane.xlu0 %1539
      %v1541 = vcvt.f32.s32.to.zero.pseudo %v1540
      %1542 = vmatpush.msra.mxu0 0.0
      %1543 = vmatpush.msra.mxu0 0.0
      %1544 = vmatpush.msra.mxu0 0.0
      %1545 = vmatpush.msra.mxu0 0.0
      %1546 = vmatpush.msra.mxu0 0.0
      %1547 = vmatpush.msra.mxu0 0.0
      %1548 = vmatpush.msra.mxu0 0.0
      %1549 = vmatpush.msra.mxu0 0.0
      %1550 = vmatpush.msra.mxu0 0.0
      %1551 = vmatpush.msra.mxu0 0.0
      %1552 = vmatpush.msra.mxu0 0.0
      %1553 = vmatpush.msra.mxu0 0.0
      %1554 = vmatpush.msra.mxu0 0.0
      %1555 = vmatpush.msra.mxu0 0.0
      %1556 = vmatpush.msra.mxu0 0.0
      %1557 = vmatpush.msra.mxu0 %v708
      %1558 = vmatmul.f32.gmra.mxu0 %v893
      %v1559 = vpop.f32.mrf.mxu0
      %v1560 = vadd.f32 0.0, %v1559
      %1561 = vdwg.mxu0
      %v1563 = vsel %vm498, %v1526, 0
      %1565 = vmatpush.msra.mxu0 0.0
      %1566 = vmatpush.msra.mxu0 0.0
      %1567 = vmatpush.msra.mxu0 0.0
      %1568 = vmatpush.msra.mxu0 0.0
      %1569 = vmatpush.msra.mxu0 0.0
      %1570 = vmatpush.msra.mxu0 0.0
      %1571 = vmatpush.msra.mxu0 0.0
      %1572 = vmatpush.msra.mxu0 0.0
      %1573 = vmatpush.msra.mxu0 0.0
      %1574 = vmatpush.msra.mxu0 0.0
      %1575 = vmatpush.msra.mxu0 0.0
      %1576 = vmatpush.msra.mxu0 0.0
      %1577 = vmatpush.msra.mxu0 0.0
      %1578 = vmatpush.msra.mxu0 0.0
      %1579 = vmatpush.msra.mxu0 0.0
      %1580 = vmatpush.msra.mxu0 %v734
      %1581 = vmatmul.f32.gmra.mxu0 %v1563
      %v1582 = vpop.f32.mrf.mxu0
      %v1583 = vadd.f32 %v1560, %v1582
      %1584 = vdwg.mxu0
      %v1585 = vmul.f32 %v1583, %v756
      %v1586 = vadd.f32 %v1585, %v758
      %v1587 = vsel %vm760, %v1586, -inf
      %1588 = vmax.xlane.f32.xlu0 %v1587
      %v1589 = vpop.xlane.xlu0 %1588
      %v1590 = vsub.f32 %v1586, %v1589
      %v1591 = vmul.f32 %v1590, 1.442695
      %v1592 = vpow.pop %v1591
      %v1593 = vsel %vm760, %v1592, 0.0
      %1594 = vadd.xlane.f32.xlu0 %v1593
      %v1595 = vpop.xlane.xlu0 %1594
      %v1596 = vrcp.pop %v1595
      %v1597 = vmul.f32 %v1595, %v1596
      %v1598 = vsub.f32 1.0, %v1597
      %v1599 = vmul.f32 %v1596, %v1598
      %v1600 = vadd.f32 %v1596, %v1599
      %vm1601 = vweird.f32 %v1595
      %vm1602 = vweird.f32 %v1596
      %vm1603 = vmor %vm1601, %vm1602
      %v1604 = vsel %vm1603, %v1596, %v1600
      %v1605 = vand.u32 2147483647, %v1595
      %vm1606 = vcmp.eq.f32.partialorder %v1605, 8.507059e+37
      %v1607 = vand.u32 %v1595, 2147483648
      %v1608 = vor.u32 1.1754944e-38, %v1607
      %v1609 = vsel %vm1606, %v1608, %v1604
      %v1610 = vmul.f32 %v1592, %v1609
      %1611 = vmatpush.msra.mxu0 0.0
      %1612 = vmatpush.msra.mxu0 0.0
      %1613 = vmatpush.msra.mxu0 0.0
      %1614 = vmatpush.msra.mxu0 0.0
      %1615 = vmatpush.msra.mxu0 0.0
      %1616 = vmatpush.msra.mxu0 0.0
      %1617 = vmatpush.msra.mxu0 0.0
      %1618 = vmatpush.msra.mxu0 0.0
      %1619 = vmatpush.msra.mxu0 0.0
      %1620 = vmatpush.msra.mxu0 0.0
      %1621 = vmatpush.msra.mxu0 0.0
      %1622 = vmatpush.msra.mxu0 0.0
      %1623 = vmatpush.msra.mxu0 0.0
      %1624 = vmatpush.msra.mxu0 0.0
      %1625 = vmatpush.msra.mxu0 0.0
      %1626 = vmatpush.msra.mxu0 %v1610
      %1627 = vmatmul.f32.gmra.mxu0 %v786
      %v1628 = vpop.f32.mrf.mxu0
      %v1629 = vadd.f32 0.0, %v1628
      %1630 = vdwg.mxu0
      %1631 = vmatpush.msra.mxu0 0.0
      %1632 = vmatpush.msra.mxu0 0.0
      %1633 = vmatpush.msra.mxu0 0.0
      %1634 = vmatpush.msra.mxu0 0.0
      %1635 = vmatpush.msra.mxu0 0.0
      %1636 = vmatpush.msra.mxu0 0.0
      %1637 = vmatpush.msra.mxu0 0.0
      %1638 = vmatpush.msra.mxu0 0.0
      %1639 = vmatpush.msra.mxu0 0.0
      %1640 = vmatpush.msra.mxu0 0.0
      %1641 = vmatpush.msra.mxu0 0.0
      %1642 = vmatpush.msra.mxu0 0.0
      %1643 = vmatpush.msra.mxu0 0.0
      %1644 = vmatpush.msra.mxu0 0.0
      %1645 = vmatpush.msra.mxu0 0.0
      %1646 = vmatpush.msra.mxu0 %v1610
      %1647 = vmatmul.f32.gmra.mxu0 %v809
      %v1648 = vpop.f32.mrf.mxu0
      %v1649 = vadd.f32 0.0, %v1648
      %1650 = vdwg.mxu0
      %v1651 = vmul.f32 %v1629, %v462
      %v1652 = vmul.f32 %v1629, %v834
      %1654 = vrot.lane.b32.xlu0 %v1652, 127
      %v1655 = vpop.permute.xlu0 %1654
      %v1657 = vadd.f32 %v1651, %v1655
      %v1658 = vmul.f32 %v1649, %v844
      %v1659 = vmul.f32 %v1649, %v463
      %1661 = vrot.lane.b32.xlu0 %v1659, 127
      %v1662 = vpop.permute.xlu0 %1661
      %v1664 = vadd.f32 %v1658, %v1662
      %1666 = vset.pattern.permute.xlu0 0
      %1667 = vperm.xlu0 %1666, %v1657
      %v1668 = vpop.permute.xlu0 %1667
      %v1670 = vmul.f32 %v1526, %v1668
      %1672 = vset.pattern.permute.xlu0 0
      %1673 = vperm.xlu0 %1672, %v1664
      %v1674 = vpop.permute.xlu0 %1673
      %v1676 = vmul.f32 %v865, %v1674
      %v1677 = vadd.f32 %v1670, %v1676
      %vm1678 = vcmp.eq.s32.totalorder %v1541, %v465
      %v1679 = vsel %vm1678, 1, 0
      %v1680 = vcvt.s32.f32 %v1679
      %v1682 = vsel %vm474, %v1680, 0
      %1684 = vmatpush.msra.mxu0 0.0
      %1685 = vmatpush.msra.mxu0 0.0
      %1686 = vmatpush.msra.mxu0 0.0
      %1687 = vmatpush.msra.mxu0 0.0
      %1688 = vmatpush.msra.mxu0 0.0
      %1689 = vmatpush.msra.mxu0 0.0
      %1690 = vmatpush.msra.mxu0 0.0
      %1691 = vmatpush.msra.mxu0 0.0
      %1692 = vmatpush.msra.mxu0 0.0
      %1693 = vmatpush.msra.mxu0 0.0
      %1694 = vmatpush.msra.mxu0 0.0
      %1695 = vmatpush.msra.mxu0 0.0
      %1696 = vmatpush.msra.mxu0 0.0
      %1697 = vmatpush.msra.mxu0 0.0
      %1698 = vmatpush.msra.mxu0 %v449
      %1699 = vmatpush.msra.mxu0 %v448
      %1700 = vmatmul.f32.gmra.mxu0 %v1682
      %v1701 = vpop.f32.mrf.mxu0
      %v1702 = vadd.f32 0.0, %v1701
      %1703 = vdwg.mxu0
      %v1705 = vsel %vm498, %v1677, 0
      %1707 = vmatpush.msra.mxu0 0.0
      %1708 = vmatpush.msra.mxu0 0.0
      %1709 = vmatpush.msra.mxu0 0.0
      %1710 = vmatpush.msra.mxu0 0.0
      %1711 = vmatpush.msra.mxu0 0.0
      %1712 = vmatpush.msra.mxu0 0.0
      %1713 = vmatpush.msra.mxu0 0.0
      %1714 = vmatpush.msra.mxu0 0.0
      %1715 = vmatpush.msra.mxu0 0.0
      %1716 = vmatpush.msra.mxu0 0.0
      %1717 = vmatpush.msra.mxu0 0.0
      %1718 = vmatpush.msra.mxu0 0.0
      %1719 = vmatpush.msra.mxu0 0.0
      %1720 = vmatpush.msra.mxu0 0.0
      %1721 = vmatpush.msra.mxu0 0.0
      %1722 = vmatpush.msra.mxu0 %v504
      %1723 = vmatmul.f32.gmra.mxu0 %v1705
      %v1724 = vpop.f32.mrf.mxu0
      %v1725 = vadd.f32 0.0, %v1724
      %1726 = vdwg.mxu0
      %1728 = vset.pattern.permute.xlu0 0
      %1729 = vperm.xlu0 %1728, %v1725
      %v1730 = vpop.permute.xlu0 %1729
      %v1733 = vsel %vm531, %v1702, 0
      %1735 = vmatpush.msra.mxu0 0.0
      %1736 = vmatpush.msra.mxu0 0.0
      %1737 = vmatpush.msra.mxu0 0.0
      %1738 = vmatpush.msra.mxu0 0.0
      %1739 = vmatpush.msra.mxu0 0.0
      %1740 = vmatpush.msra.mxu0 0.0
      %1741 = vmatpush.msra.mxu0 0.0
      %1742 = vmatpush.msra.mxu0 0.0
      %1743 = vmatpush.msra.mxu0 0.0
      %1744 = vmatpush.msra.mxu0 0.0
      %1745 = vmatpush.msra.mxu0 0.0
      %1746 = vmatpush.msra.mxu0 0.0
      %1747 = vmatpush.msra.mxu0 %v453
      %1748 = vmatpush.msra.mxu0 %v452
      %1749 = vmatpush.msra.mxu0 %v451
      %1750 = vmatpush.msra.mxu0 %v450
      %1751 = vmatmul.f32.gmra.mxu0 %v1733
      %v1752 = vpop.f32.mrf.mxu0
      %v1753 = vadd.f32 %v1730, %v1752
      %1754 = vdwg.mxu0
      %v1755 = vmul.f32 %v1753, %v559
      %v1756 = vadd.f32 %v1755, %v564
      %v1757 = vsub.f32 %v1526, %v1677
      %v1758 = vmul.f32 %v1757, %v1757
      %v1759 = vsel %vm498, %v1758, 0.0
      %1760 = vadd.xlane.f32.xlu0 %v1759
      %v1761 = vpop.xlane.xlu0 %1760
      %v1762 = vrsqrt.pop %v1761
      %v1763 = vmul.f32 %v1762, %v1761
      %v1764 = vmul.f32 %v1763, %v1762
      %v1765 = vmul.f32 0.5, %v1764
      %v1766 = vsub.f32 1.5, %v1765
      %v1767 = vmul.f32 %v1762, %v1766
      %v1768 = vmul.f32 %v1761, %v1767
      %vm1769 = vcmp.eq.f32.partialorder %v1761, inf
      %v1770 = vsel %vm1769, %v1761, %v1768
      %vm1771 = vcmp.eq.f32.partialorder %v1761, 0.0
      %v1772 = vand.u32 %v1761, 2147483648
      %v1773 = vsel %vm1771, %v1772, %v1770
      %v1774 = vsub.f32 %v1702, %v1526
      %v1775 = vmul.f32 %v1774, %v1757
      %v1776 = vsel %vm498, %v1775, 0.0
      %1777 = vadd.xlane.f32.xlu0 %v1776
      %v1778 = vpop.xlane.xlu0 %1777
      %v1779 = vmul.f32 %v1774, %v1774
      %v1780 = vsel %vm498, %v1779, 0.0
      %1781 = vadd.xlane.f32.xlu0 %v1780
      %v1782 = vpop.xlane.xlu0 %1781
      %v1783 = vrsqrt.pop %v1782
      %v1784 = vmul.f32 %v1783, %v1782
      %v1785 = vmul.f32 %v1784, %v1783
      %v1786 = vmul.f32 0.5, %v1785
      %v1787 = vsub.f32 1.5, %v1786
      %v1788 = vmul.f32 %v1783, %v1787
      %v1789 = vmul.f32 %v1782, %v1788
      %vm1790 = vcmp.eq.f32.partialorder %v1782, inf
      %v1791 = vsel %vm1790, %v1782, %v1789
      %vm1792 = vcmp.eq.f32.partialorder %v1782, 0.0
      %v1793 = vand.u32 %v1782, 2147483648
      %v1794 = vsel %vm1792, %v1793, %v1791
      %v1795 = vmul.f32 %v1773, %v1794
      %v1796 = vmax.f32 %v1795, 1e-08
      %v1797 = vrcp.pop %v1796
      %v1798 = vmul.f32 %v1796, %v1797
      %v1799 = vsub.f32 1.0, %v1798
      %v1800 = vmul.f32 %v1797, %v1799
      %v1801 = vadd.f32 %v1797, %v1800
      %vm1802 = vweird.f32 %v1796
      %vm1803 = vweird.f32 %v1797
      %vm1804 = vmor %vm1802, %vm1803
      %v1805 = vsel %vm1804, %v1797, %v1801
      %v1806 = vand.u32 2147483647, %v1796
      %vm1807 = vcmp.eq.f32.partialorder %v1806, 8.507059e+37
      %v1808 = vand.u32 %v1796, 2147483648
      %v1809 = vor.u32 1.1754944e-38, %v1808
      %v1810 = vsel %vm1807, %v1809, %v1805
      %v1811 = vmul.f32 %v1778, %v1810
      %v1812 = vadd.f32 %v1811, 1.0
      %v1813 = vmax.f32 %v1812, 0.0
      %v1814 = vmin.f32 %v1813, 1.0
      %1815 = vrot.lane.b32.xlu0 %v1526, 4
      %v1816 = vpop.permute.xlu0 %1815
      %v1818 = vsub.f32 %v1702, %v1816
      %1820 = vrot.lane.b32.xlu0 %v1757, 4
      %v1821 = vpop.permute.xlu0 %1820
      %v1823 = vmul.f32 %v1818, %v1821
      %1825 = vrot.lane.b32.xlu0 %v1823, 124
      %v1826 = vpop.permute.xlu0 %1825
      %v1828 = vsel %vm498, %v1826, 0.0
      %1829 = vadd.xlane.f32.xlu0 %v1828
      %v1830 = vpop.xlane.xlu0 %1829
      %v1831 = vmul.f32 %v1818, %v1818
      %1833 = vrot.lane.b32.xlu0 %v1831, 124
      %v1834 = vpop.permute.xlu0 %1833
      %v1836 = vsel %vm498, %v1834, 0.0
      %1837 = vadd.xlane.f32.xlu0 %v1836
      %v1838 = vpop.xlane.xlu0 %1837
      %v1839 = vrsqrt.pop %v1838
      %v1840 = vmul.f32 %v1839, %v1838
      %v1841 = vmul.f32 %v1840, %v1839
      %v1842 = vmul.f32 0.5, %v1841
      %v1843 = vsub.f32 1.5, %v1842
      %v1844 = vmul.f32 %v1839, %v1843
      %v1845 = vmul.f32 %v1838, %v1844
      %vm1846 = vcmp.eq.f32.partialorder %v1838, inf
      %v1847 = vsel %vm1846, %v1838, %v1845
      %vm1848 = vcmp.eq.f32.partialorder %v1838, 0.0
      %v1849 = vand.u32 %v1838, 2147483648
      %v1850 = vsel %vm1848, %v1849, %v1847
      %v1851 = vmul.f32 %v1773, %v1850
      %v1852 = vmax.f32 %v1851, 1e-08
      %v1853 = vrcp.pop %v1852
      %v1854 = vmul.f32 %v1852, %v1853
      %v1855 = vsub.f32 1.0, %v1854
      %v1856 = vmul.f32 %v1853, %v1855
      %v1857 = vadd.f32 %v1853, %v1856
      %vm1858 = vweird.f32 %v1852
      %vm1859 = vweird.f32 %v1853
      %vm1860 = vmor %vm1858, %vm1859
      %v1861 = vsel %vm1860, %v1853, %v1857
      %v1862 = vand.u32 2147483647, %v1852
      %vm1863 = vcmp.eq.f32.partialorder %v1862, 8.507059e+37
      %v1864 = vand.u32 %v1852, 2147483648
      %v1865 = vor.u32 1.1754944e-38, %v1864
      %v1866 = vsel %vm1863, %v1865, %v1861
      %v1867 = vmul.f32 %v1830, %v1866
      %v1868 = vadd.f32 %v1867, 1.0
      %v1869 = vmax.f32 %v1868, 0.0
      %v1870 = vmin.f32 %v1869, 1.0
      %1871 = vrot.lane.b32.xlu0 %v1526, 8
      %v1872 = vpop.permute.xlu0 %1871
      %v1874 = vsub.f32 %v1702, %v1872
      %1875 = vrot.lane.b32.xlu0 %v1757, 8
      %v1876 = vpop.permute.xlu0 %1875
      %v1878 = vmul.f32 %v1874, %v1876
      %1880 = vrot.lane.b32.xlu0 %v1878, 120
      %v1881 = vpop.permute.xlu0 %1880
      %v1883 = vsel %vm498, %v1881, 0.0
      %1884 = vadd.xlane.f32.xlu0 %v1883
      %v1885 = vpop.xlane.xlu0 %1884
      %v1886 = vmul.f32 %v1874, %v1874
      %1888 = vrot.lane.b32.xlu0 %v1886, 120
      %v1889 = vpop.permute.xlu0 %1888
      %v1891 = vsel %vm498, %v1889, 0.0
      %1892 = vadd.xlane.f32.xlu0 %v1891
      %v1893 = vpop.xlane.xlu0 %1892
      %v1894 = vrsqrt.pop %v1893
      %v1895 = vmul.f32 %v1894, %v1893
      %v1896 = vmul.f32 %v1895, %v1894
      %v1897 = vmul.f32 0.5, %v1896
      %v1898 = vsub.f32 1.5, %v1897
      %v1899 = vmul.f32 %v1894, %v1898
      %v1900 = vmul.f32 %v1893, %v1899
      %vm1901 = vcmp.eq.f32.partialorder %v1893, inf
      %v1902 = vsel %vm1901, %v1893, %v1900
      %vm1903 = vcmp.eq.f32.partialorder %v1893, 0.0
      %v1904 = vand.u32 %v1893, 2147483648
      %v1905 = vsel %vm1903, %v1904, %v1902
      %v1906 = vmul.f32 %v1773, %v1905
      %v1907 = vmax.f32 %v1906, 1e-08
      %v1908 = vrcp.pop %v1907
      %v1909 = vmul.f32 %v1907, %v1908
      %v1910 = vsub.f32 1.0, %v1909
      %v1911 = vmul.f32 %v1908, %v1910
      %v1912 = vadd.f32 %v1908, %v1911
      %vm1913 = vweird.f32 %v1907
      %vm1914 = vweird.f32 %v1908
      %vm1915 = vmor %vm1913, %vm1914
      %v1916 = vsel %vm1915, %v1908, %v1912
      %v1917 = vand.u32 2147483647, %v1907
      %vm1918 = vcmp.eq.f32.partialorder %v1917, 8.507059e+37
      %v1919 = vand.u32 %v1907, 2147483648
      %v1920 = vor.u32 1.1754944e-38, %v1919
      %v1921 = vsel %vm1918, %v1920, %v1916
      %v1922 = vmul.f32 %v1885, %v1921
      %v1923 = vadd.f32 %v1922, 1.0
      %v1924 = vmax.f32 %v1923, 0.0
      %v1925 = vmin.f32 %v1924, 1.0
      %1926 = vrot.lane.b32.xlu0 %v1526, 12
      %v1927 = vpop.permute.xlu0 %1926
      %v1929 = vsub.f32 %v1702, %v1927
      %1930 = vrot.lane.b32.xlu0 %v1757, 12
      %v1931 = vpop.permute.xlu0 %1930
      %v1933 = vmul.f32 %v1929, %v1931
      %1935 = vrot.lane.b32.xlu0 %v1933, 116
      %v1936 = vpop.permute.xlu0 %1935
      %v1938 = vsel %vm498, %v1936, 0.0
      %1939 = vadd.xlane.f32.xlu0 %v1938
      %v1940 = vpop.xlane.xlu0 %1939
      %v1941 = vmul.f32 %v1929, %v1929
      %1943 = vrot.lane.b32.xlu0 %v1941, 116
      %v1944 = vpop.permute.xlu0 %1943
      %v1946 = vsel %vm498, %v1944, 0.0
      %1947 = vadd.xlane.f32.xlu0 %v1946
      %v1948 = vpop.xlane.xlu0 %1947
      %v1949 = vrsqrt.pop %v1948
      %v1950 = vmul.f32 %v1949, %v1948
      %v1951 = vmul.f32 %v1950, %v1949
      %v1952 = vmul.f32 0.5, %v1951
      %v1953 = vsub.f32 1.5, %v1952
      %v1954 = vmul.f32 %v1949, %v1953
      %v1955 = vmul.f32 %v1948, %v1954
      %vm1956 = vcmp.eq.f32.partialorder %v1948, inf
      %v1957 = vsel %vm1956, %v1948, %v1955
      %vm1958 = vcmp.eq.f32.partialorder %v1948, 0.0
      %v1959 = vand.u32 %v1948, 2147483648
      %v1960 = vsel %vm1958, %v1959, %v1957
      %v1961 = vmul.f32 %v1773, %v1960
      %v1962 = vmax.f32 %v1961, 1e-08
      %v1963 = vrcp.pop %v1962
      %v1964 = vmul.f32 %v1962, %v1963
      %v1965 = vsub.f32 1.0, %v1964
      %v1966 = vmul.f32 %v1963, %v1965
      %v1967 = vadd.f32 %v1963, %v1966
      %vm1968 = vweird.f32 %v1962
      %vm1969 = vweird.f32 %v1963
      %vm1970 = vmor %vm1968, %vm1969
      %v1971 = vsel %vm1970, %v1963, %v1967
      %v1972 = vand.u32 2147483647, %v1962
      %vm1973 = vcmp.eq.f32.partialorder %v1972, 8.507059e+37
      %v1974 = vand.u32 %v1962, 2147483648
      %v1975 = vor.u32 1.1754944e-38, %v1974
      %v1976 = vsel %vm1973, %v1975, %v1971
      %v1977 = vmul.f32 %v1940, %v1976
      %v1978 = vadd.f32 %v1977, 1.0
      %v1979 = vmax.f32 %v1978, 0.0
      %v1980 = vmin.f32 %v1979, 1.0
      %1981 = vrot.lane.b32.xlu0 %v1526, 16
      %v1982 = vpop.permute.xlu0 %1981
      %v1984 = vsub.f32 %v1702, %v1982
      %1985 = vrot.lane.b32.xlu0 %v1757, 16
      %v1986 = vpop.permute.xlu0 %1985
      %v1988 = vmul.f32 %v1984, %v1986
      %1990 = vrot.lane.b32.xlu0 %v1988, 112
      %v1991 = vpop.permute.xlu0 %1990
      %v1993 = vsel %vm498, %v1991, 0.0
      %1994 = vadd.xlane.f32.xlu0 %v1993
      %v1995 = vpop.xlane.xlu0 %1994
      %v1996 = vmul.f32 %v1984, %v1984
      %1998 = vrot.lane.b32.xlu0 %v1996, 112
      %v1999 = vpop.permute.xlu0 %1998
      %v2001 = vsel %vm498, %v1999, 0.0
      %2002 = vadd.xlane.f32.xlu0 %v2001
      %v2003 = vpop.xlane.xlu0 %2002
      %v2004 = vrsqrt.pop %v2003
      %v2005 = vmul.f32 %v2004, %v2003
      %v2006 = vmul.f32 %v2005, %v2004
      %v2007 = vmul.f32 0.5, %v2006
      %v2008 = vsub.f32 1.5, %v2007
      %v2009 = vmul.f32 %v2004, %v2008
      %v2010 = vmul.f32 %v2003, %v2009
      %vm2011 = vcmp.eq.f32.partialorder %v2003, inf
      %v2012 = vsel %vm2011, %v2003, %v2010
      %vm2013 = vcmp.eq.f32.partialorder %v2003, 0.0
      %v2014 = vand.u32 %v2003, 2147483648
      %v2015 = vsel %vm2013, %v2014, %v2012
      %v2016 = vmul.f32 %v1773, %v2015
      %v2017 = vmax.f32 %v2016, 1e-08
      %v2018 = vrcp.pop %v2017
      %v2019 = vmul.f32 %v2017, %v2018
      %v2020 = vsub.f32 1.0, %v2019
      %v2021 = vmul.f32 %v2018, %v2020
      %v2022 = vadd.f32 %v2018, %v2021
      %vm2023 = vweird.f32 %v2017
      %vm2024 = vweird.f32 %v2018
      %vm2025 = vmor %vm2023, %vm2024
      %v2026 = vsel %vm2025, %v2018, %v2022
      %v2027 = vand.u32 2147483647, %v2017
      %vm2028 = vcmp.eq.f32.partialorder %v2027, 8.507059e+37
      %v2029 = vand.u32 %v2017, 2147483648
      %v2030 = vor.u32 1.1754944e-38, %v2029
      %v2031 = vsel %vm2028, %v2030, %v2026
      %v2032 = vmul.f32 %v1995, %v2031
      %v2033 = vadd.f32 %v2032, 1.0
      %v2034 = vmax.f32 %v2033, 0.0
      %v2035 = vmin.f32 %v2034, 1.0
      %2036 = vrot.lane.b32.xlu0 %v1526, 20
      %v2037 = vpop.permute.xlu0 %2036
      %v2039 = vsub.f32 %v1702, %v2037
      %2040 = vrot.lane.b32.xlu0 %v1757, 20
      %v2041 = vpop.permute.xlu0 %2040
      %v2043 = vmul.f32 %v2039, %v2041
      %2045 = vrot.lane.b32.xlu0 %v2043, 108
      %v2046 = vpop.permute.xlu0 %2045
      %v2048 = vsel %vm498, %v2046, 0.0
      %2049 = vadd.xlane.f32.xlu0 %v2048
      %v2050 = vpop.xlane.xlu0 %2049
      %v2051 = vmul.f32 %v2039, %v2039
      %2053 = vrot.lane.b32.xlu0 %v2051, 108
      %v2054 = vpop.permute.xlu0 %2053
      %v2056 = vsel %vm498, %v2054, 0.0
      %2057 = vadd.xlane.f32.xlu0 %v2056
      %v2058 = vpop.xlane.xlu0 %2057
      %v2059 = vrsqrt.pop %v2058
      %v2060 = vmul.f32 %v2059, %v2058
      %v2061 = vmul.f32 %v2060, %v2059
      %v2062 = vmul.f32 0.5, %v2061
      %v2063 = vsub.f32 1.5, %v2062
      %v2064 = vmul.f32 %v2059, %v2063
      %v2065 = vmul.f32 %v2058, %v2064
      %vm2066 = vcmp.eq.f32.partialorder %v2058, inf
      %v2067 = vsel %vm2066, %v2058, %v2065
      %vm2068 = vcmp.eq.f32.partialorder %v2058, 0.0
      %v2069 = vand.u32 %v2058, 2147483648
      %v2070 = vsel %vm2068, %v2069, %v2067
      %v2071 = vmul.f32 %v1773, %v2070
      %v2072 = vmax.f32 %v2071, 1e-08
      %v2073 = vrcp.pop %v2072
      %v2074 = vmul.f32 %v2072, %v2073
      %v2075 = vsub.f32 1.0, %v2074
      %v2076 = vmul.f32 %v2073, %v2075
      %v2077 = vadd.f32 %v2073, %v2076
      %vm2078 = vweird.f32 %v2072
      %vm2079 = vweird.f32 %v2073
      %vm2080 = vmor %vm2078, %vm2079
      %v2081 = vsel %vm2080, %v2073, %v2077
      %v2082 = vand.u32 2147483647, %v2072
      %vm2083 = vcmp.eq.f32.partialorder %v2082, 8.507059e+37
      %v2084 = vand.u32 %v2072, 2147483648
      %v2085 = vor.u32 1.1754944e-38, %v2084
      %v2086 = vsel %vm2083, %v2085, %v2081
      %v2087 = vmul.f32 %v2050, %v2086
      %v2088 = vadd.f32 %v2087, 1.0
      %v2089 = vmax.f32 %v2088, 0.0
      %v2090 = vmin.f32 %v2089, 1.0
      %2091 = vrot.lane.b32.xlu0 %v1526, 24
      %v2092 = vpop.permute.xlu0 %2091
      %v2094 = vsub.f32 %v1702, %v2092
      %2095 = vrot.lane.b32.xlu0 %v1757, 24
      %v2096 = vpop.permute.xlu0 %2095
      %v2098 = vmul.f32 %v2094, %v2096
      %2100 = vrot.lane.b32.xlu0 %v2098, 104
      %v2101 = vpop.permute.xlu0 %2100
      %v2103 = vsel %vm498, %v2101, 0.0
      %2104 = vadd.xlane.f32.xlu0 %v2103
      %v2105 = vpop.xlane.xlu0 %2104
      %v2106 = vmul.f32 %v2094, %v2094
      %2108 = vrot.lane.b32.xlu0 %v2106, 104
      %v2109 = vpop.permute.xlu0 %2108
      %v2111 = vsel %vm498, %v2109, 0.0
      %2112 = vadd.xlane.f32.xlu0 %v2111
      %v2113 = vpop.xlane.xlu0 %2112
      %v2114 = vrsqrt.pop %v2113
      %v2115 = vmul.f32 %v2114, %v2113
      %v2116 = vmul.f32 %v2115, %v2114
      %v2117 = vmul.f32 0.5, %v2116
      %v2118 = vsub.f32 1.5, %v2117
      %v2119 = vmul.f32 %v2114, %v2118
      %v2120 = vmul.f32 %v2113, %v2119
      %vm2121 = vcmp.eq.f32.partialorder %v2113, inf
      %v2122 = vsel %vm2121, %v2113, %v2120
      %vm2123 = vcmp.eq.f32.partialorder %v2113, 0.0
      %v2124 = vand.u32 %v2113, 2147483648
      %v2125 = vsel %vm2123, %v2124, %v2122
      %v2126 = vmul.f32 %v1773, %v2125
      %v2127 = vmax.f32 %v2126, 1e-08
      %v2128 = vrcp.pop %v2127
      %v2129 = vmul.f32 %v2127, %v2128
      %v2130 = vsub.f32 1.0, %v2129
      %v2131 = vmul.f32 %v2128, %v2130
      %v2132 = vadd.f32 %v2128, %v2131
      %vm2133 = vweird.f32 %v2127
      %vm2134 = vweird.f32 %v2128
      %vm2135 = vmor %vm2133, %vm2134
      %v2136 = vsel %vm2135, %v2128, %v2132
      %v2137 = vand.u32 2147483647, %v2127
      %vm2138 = vcmp.eq.f32.partialorder %v2137, 8.507059e+37
      %v2139 = vand.u32 %v2127, 2147483648
      %v2140 = vor.u32 1.1754944e-38, %v2139
      %v2141 = vsel %vm2138, %v2140, %v2136
      %v2142 = vmul.f32 %v2105, %v2141
      %v2143 = vadd.f32 %v2142, 1.0
      %v2144 = vmax.f32 %v2143, 0.0
      %v2145 = vmin.f32 %v2144, 1.0
      %2146 = vrot.lane.b32.xlu0 %v1526, 28
      %v2147 = vpop.permute.xlu0 %2146
      %v2149 = vsub.f32 %v1702, %v2147
      %2150 = vrot.lane.b32.xlu0 %v1757, 28
      %v2151 = vpop.permute.xlu0 %2150
      %v2153 = vmul.f32 %v2149, %v2151
      %2155 = vrot.lane.b32.xlu0 %v2153, 100
      %v2156 = vpop.permute.xlu0 %2155
      %v2158 = vsel %vm498, %v2156, 0.0
      %2159 = vadd.xlane.f32.xlu0 %v2158
      %v2160 = vpop.xlane.xlu0 %2159
      %v2161 = vmul.f32 %v2149, %v2149
      %2163 = vrot.lane.b32.xlu0 %v2161, 100
      %v2164 = vpop.permute.xlu0 %2163
      %v2166 = vsel %vm498, %v2164, 0.0
      %2167 = vadd.xlane.f32.xlu0 %v2166
      %v2168 = vpop.xlane.xlu0 %2167
      %v2169 = vrsqrt.pop %v2168
      %v2170 = vmul.f32 %v2169, %v2168
      %v2171 = vmul.f32 %v2170, %v2169
      %v2172 = vmul.f32 0.5, %v2171
      %v2173 = vsub.f32 1.5, %v2172
      %v2174 = vmul.f32 %v2169, %v2173
      %v2175 = vmul.f32 %v2168, %v2174
      %vm2176 = vcmp.eq.f32.partialorder %v2168, inf
      %v2177 = vsel %vm2176, %v2168, %v2175
      %vm2178 = vcmp.eq.f32.partialorder %v2168, 0.0
      %v2179 = vand.u32 %v2168, 2147483648
      %v2180 = vsel %vm2178, %v2179, %v2177
      %v2181 = vmul.f32 %v1773, %v2180
      %v2182 = vmax.f32 %v2181, 1e-08
      %v2183 = vrcp.pop %v2182
      %v2184 = vmul.f32 %v2182, %v2183
      %v2185 = vsub.f32 1.0, %v2184
      %v2186 = vmul.f32 %v2183, %v2185
      %v2187 = vadd.f32 %v2183, %v2186
      %vm2188 = vweird.f32 %v2182
      %vm2189 = vweird.f32 %v2183
      %vm2190 = vmor %vm2188, %vm2189
      %v2191 = vsel %vm2190, %v2183, %v2187
      %v2192 = vand.u32 2147483647, %v2182
      %vm2193 = vcmp.eq.f32.partialorder %v2192, 8.507059e+37
      %v2194 = vand.u32 %v2182, 2147483648
      %v2195 = vor.u32 1.1754944e-38, %v2194
      %v2196 = vsel %vm2193, %v2195, %v2191
      %v2197 = vmul.f32 %v2160, %v2196
      %v2198 = vadd.f32 %v2197, 1.0
      %v2199 = vmax.f32 %v2198, 0.0
      %v2200 = vmin.f32 %v2199, 1.0
      %v2201 = vsel %vm1389, %v1814, %v1870
      %v2202 = vsel %vm760, %v2201, %v1925
      %v2203 = vsel %vm1392, %v2202, %v1980
      %v2204 = vsel %vm498, %v2203, %v2035
      %v2205 = vsel %vm1395, %v2204, %v2090
      %v2206 = vsel %vm1397, %v2205, %v2145
      %v2207 = vsel %vm1399, %v2206, %v2200
      %v2208 = vmul.f32 %v1756, %v2207
      %v2209 = vsel %vm567, %v2208, -inf
      %2210 = vmax.xlane.f32.xlu0 %v2209
      %v2211 = vpop.xlane.xlu0 %2210
      %v2212 = vsub.f32 %v2208, %v2211
      %v2213 = vmul.f32 %v2212, 1.442695
      %v2214 = vpow.pop %v2213
      %v2215 = vsel %vm567, %v2214, 0.0
      %2216 = vadd.xlane.f32.xlu0 %v2215
      %v2217 = vpop.xlane.xlu0 %2216
      %v2218 = vrcp.pop %v2217
      %v2219 = vmul.f32 %v2217, %v2218
      %v2220 = vsub.f32 1.0, %v2219
      %v2221 = vmul.f32 %v2218, %v2220
      %v2222 = vadd.f32 %v2218, %v2221
      %vm2223 = vweird.f32 %v2217
      %vm2224 = vweird.f32 %v2218
      %vm2225 = vmor %vm2223, %vm2224
      %v2226 = vsel %vm2225, %v2218, %v2222
      %v2227 = vand.u32 2147483647, %v2217
      %vm2228 = vcmp.eq.f32.partialorder %v2227, 8.507059e+37
      %v2229 = vand.u32 %v2217, 2147483648
      %v2230 = vor.u32 1.1754944e-38, %v2229
      %v2231 = vsel %vm2228, %v2230, %v2226
      %v2232 = vmul.f32 %v2214, %v2231
      %v2233 = vsel %vm567, %v2232, -inf
      %2234 = vmax.xlane.f32.xlu0 %v2233
      %v2235 = vpop.xlane.xlu0 %2234
      %vm2236 = vcmp.eq.f32.partialorder %v2232, %v2235
      %v2237 = vsel %vm2236, %v465, 8
      %v2238 = vsel %vm567, %v2237, 2147483647
      %v2239 = vand.u32 %v2238, 65535
      %v2240 = vshra.s32 %v2238, 16
      %v2241 = vcvt.s32.f32 %v2239
      %v2242 = vcvt.s32.f32 %v2240
      %2243 = vmin.xlane.f32.xlu0 %v2242
      %v2244 = vpop.xlane.xlu0 %2243
      %vm2245 = vcmp.eq.f32.partialorder %v2242, %v2244
      %v2246 = vsel %vm2245, %v2241, inf
      %2247 = vmin.xlane.f32.xlu0 %v2246
      %v2248 = vpop.xlane.xlu0 %2247
      %v2249 = vcvt.f32.s32 %v2248
      %v2250 = vcvt.f32.s32 %v2244
      %v2251 = vshll.u32 %v2250, 16
      %v2252 = vadd.s32 %v2251, %v2249
      %vm2253 = vcmp.eq.s32.totalorder %v465, %v2252
      %v2254 = vsel %vm2253, 1, 0
      %v2255 = vcvt.s32.f32 %v2254
      %v2256 = vsub.f32 %v2255, %v2232
      %v2257 = vadd.f32 %v2256, %v2232
      %2259 = vset.pattern.permute.xlu0 0
      %2260 = vperm.xlu0 %2259, %v2257
      %v2261 = vpop.permute.xlu0 %2260
      %v2263 = vmul.f32 %v1702, %v2261
      %2264 = vset.pattern.permute.xlu0 1
      %2265 = vperm.xlu0 %2264, %v2257
      %v2266 = vpop.permute.xlu0 %2265
      %v2268 = vmul.f32 %v1702, %v2266
      %2270 = vrot.lane.b32.xlu0 %v2268, 124
      %v2271 = vpop.permute.xlu0 %2270
      %v2273 = vadd.f32 %v2263, %v2271
      %2274 = vset.pattern.permute.xlu0 2
      %2275 = vperm.xlu0 %2274, %v2257
      %v2276 = vpop.permute.xlu0 %2275
      %v2278 = vmul.f32 %v1702, %v2276
      %2280 = vrot.lane.b32.xlu0 %v2278, 120
      %v2281 = vpop.permute.xlu0 %2280
      %v2283 = vadd.f32 %v2273, %v2281
      %2284 = vset.pattern.permute.xlu0 3
      %2285 = vperm.xlu0 %2284, %v2257
      %v2286 = vpop.permute.xlu0 %2285
      %v2288 = vmul.f32 %v1702, %v2286
      %2290 = vrot.lane.b32.xlu0 %v2288, 116
      %v2291 = vpop.permute.xlu0 %2290
      %v2293 = vadd.f32 %v2283, %v2291
      %2294 = vset.pattern.permute.xlu0 4
      %2295 = vperm.xlu0 %2294, %v2257
      %v2296 = vpop.permute.xlu0 %2295
      %v2298 = vmul.f32 %v1702, %v2296
      %2300 = vrot.lane.b32.xlu0 %v2298, 112
      %v2301 = vpop.permute.xlu0 %2300
      %v2303 = vadd.f32 %v2293, %v2301
      %2304 = vset.pattern.permute.xlu0 5
      %2305 = vperm.xlu0 %2304, %v2257
      %v2306 = vpop.permute.xlu0 %2305
      %v2308 = vmul.f32 %v1702, %v2306
      %2310 = vrot.lane.b32.xlu0 %v2308, 108
      %v2311 = vpop.permute.xlu0 %2310
      %v2313 = vadd.f32 %v2303, %v2311
      %2314 = vset.pattern.permute.xlu0 6
      %2315 = vperm.xlu0 %2314, %v2257
      %v2316 = vpop.permute.xlu0 %2315
      %v2318 = vmul.f32 %v1702, %v2316
      %2320 = vrot.lane.b32.xlu0 %v2318, 104
      %v2321 = vpop.permute.xlu0 %2320
      %v2323 = vadd.f32 %v2313, %v2321
      %2324 = vset.pattern.permute.xlu0 7
      %2325 = vperm.xlu0 %2324, %v2257
      %v2326 = vpop.permute.xlu0 %2325
      %v2328 = vmul.f32 %v1702, %v2326
      %2330 = vrot.lane.b32.xlu0 %v2328, 100
      %v2331 = vpop.permute.xlu0 %2330
      %v2333 = vadd.f32 %v2323, %v2331
      %s2334 = scalar_lea.vmem %s447, 16
      %2335 = vst.msk [vmem:[%s2334] sm:$0xff] %vm498, %v2333
      %2337 = vrot.lane.b32.xlu0 %v2255, 32
      %v2338 = vpop.permute.xlu0 %2337
      %v2340 = vmul.f32 %v1702, %v2338
      %2342 = vrot.lane.b32.xlu0 %v2340, 96
      %v2343 = vpop.permute.xlu0 %2342
      %v2345 = vsel %vm567, %v2343, 0.0
      %2346 = vadd.xlane.f32.xlu0 %v2345
      %v2347 = vpop.xlane.xlu0 %2346
      %v2348 = vcvt.f32.s32.to.zero.pseudo %v2347
      %2349 = vmatpush.msra.mxu0 0.0
      %2350 = vmatpush.msra.mxu0 0.0
      %2351 = vmatpush.msra.mxu0 0.0
      %2352 = vmatpush.msra.mxu0 0.0
      %2353 = vmatpush.msra.mxu0 0.0
      %2354 = vmatpush.msra.mxu0 0.0
      %2355 = vmatpush.msra.mxu0 0.0
      %2356 = vmatpush.msra.mxu0 0.0
      %2357 = vmatpush.msra.mxu0 0.0
      %2358 = vmatpush.msra.mxu0 0.0
      %2359 = vmatpush.msra.mxu0 0.0
      %2360 = vmatpush.msra.mxu0 0.0
      %2361 = vmatpush.msra.mxu0 0.0
      %2362 = vmatpush.msra.mxu0 0.0
      %2363 = vmatpush.msra.mxu0 0.0
      %2364 = vmatpush.msra.mxu0 %v708
      %2365 = vmatmul.f32.gmra.mxu0 %v1705
      %v2366 = vpop.f32.mrf.mxu0
      %v2367 = vadd.f32 0.0, %v2366
      %2368 = vdwg.mxu0
      %v2370 = vsel %vm498, %v2333, 0
      %2372 = vmatpush.msra.mxu0 0.0
      %2373 = vmatpush.msra.mxu0 0.0
      %2374 = vmatpush.msra.mxu0 0.0
      %2375 = vmatpush.msra.mxu0 0.0
      %2376 = vmatpush.msra.mxu0 0.0
      %2377 = vmatpush.msra.mxu0 0.0
      %2378 = vmatpush.msra.mxu0 0.0
      %2379 = vmatpush.msra.mxu0 0.0
      %2380 = vmatpush.msra.mxu0 0.0
      %2381 = vmatpush.msra.mxu0 0.0
      %2382 = vmatpush.msra.mxu0 0.0
      %2383 = vmatpush.msra.mxu0 0.0
      %2384 = vmatpush.msra.mxu0 0.0
      %2385 = vmatpush.msra.mxu0 0.0
      %2386 = vmatpush.msra.mxu0 0.0
      %2387 = vmatpush.msra.mxu0 %v734
      %2388 = vmatmul.f32.gmra.mxu0 %v2370
      %v2389 = vpop.f32.mrf.mxu0
      %v2390 = vadd.f32 %v2367, %v2389
      %2391 = vdwg.mxu0
      %v2392 = vmul.f32 %v2390, %v756
      %v2393 = vadd.f32 %v2392, %v758
      %v2394 = vsel %vm760, %v2393, -inf
      %2395 = vmax.xlane.f32.xlu0 %v2394
      %v2396 = vpop.xlane.xlu0 %2395
      %v2397 = vsub.f32 %v2393, %v2396
      %v2398 = vmul.f32 %v2397, 1.442695
      %v2399 = vpow.pop %v2398
      %v2400 = vsel %vm760, %v2399, 0.0
      %2401 = vadd.xlane.f32.xlu0 %v2400
      %v2402 = vpop.xlane.xlu0 %2401
      %v2403 = vrcp.pop %v2402
      %v2404 = vmul.f32 %v2402, %v2403
      %v2405 = vsub.f32 1.0, %v2404
      %v2406 = vmul.f32 %v2403, %v2405
      %v2407 = vadd.f32 %v2403, %v2406
      %vm2408 = vweird.f32 %v2402
      %vm2409 = vweird.f32 %v2403
      %vm2410 = vmor %vm2408, %vm2409
      %v2411 = vsel %vm2410, %v2403, %v2407
      %v2412 = vand.u32 2147483647, %v2402
      %vm2413 = vcmp.eq.f32.partialorder %v2412, 8.507059e+37
      %v2414 = vand.u32 %v2402, 2147483648
      %v2415 = vor.u32 1.1754944e-38, %v2414
      %v2416 = vsel %vm2413, %v2415, %v2411
      %v2417 = vmul.f32 %v2399, %v2416
      %2418 = vmatpush.msra.mxu0 0.0
      %2419 = vmatpush.msra.mxu0 0.0
      %2420 = vmatpush.msra.mxu0 0.0
      %2421 = vmatpush.msra.mxu0 0.0
      %2422 = vmatpush.msra.mxu0 0.0
      %2423 = vmatpush.msra.mxu0 0.0
      %2424 = vmatpush.msra.mxu0 0.0
      %2425 = vmatpush.msra.mxu0 0.0
      %2426 = vmatpush.msra.mxu0 0.0
      %2427 = vmatpush.msra.mxu0 0.0
      %2428 = vmatpush.msra.mxu0 0.0
      %2429 = vmatpush.msra.mxu0 0.0
      %2430 = vmatpush.msra.mxu0 0.0
      %2431 = vmatpush.msra.mxu0 0.0
      %2432 = vmatpush.msra.mxu0 0.0
      %2433 = vmatpush.msra.mxu0 %v2417
      %2434 = vmatmul.f32.gmra.mxu0 %v786
      %v2435 = vpop.f32.mrf.mxu0
      %v2436 = vadd.f32 0.0, %v2435
      %2437 = vdwg.mxu0
      %2438 = vmatpush.msra.mxu0 0.0
      %2439 = vmatpush.msra.mxu0 0.0
      %2440 = vmatpush.msra.mxu0 0.0
      %2441 = vmatpush.msra.mxu0 0.0
      %2442 = vmatpush.msra.mxu0 0.0
      %2443 = vmatpush.msra.mxu0 0.0
      %2444 = vmatpush.msra.mxu0 0.0
      %2445 = vmatpush.msra.mxu0 0.0
      %2446 = vmatpush.msra.mxu0 0.0
      %2447 = vmatpush.msra.mxu0 0.0
      %2448 = vmatpush.msra.mxu0 0.0
      %2449 = vmatpush.msra.mxu0 0.0
      %2450 = vmatpush.msra.mxu0 0.0
      %2451 = vmatpush.msra.mxu0 0.0
      %2452 = vmatpush.msra.mxu0 0.0
      %2453 = vmatpush.msra.mxu0 %v2417
      %2454 = vmatmul.f32.gmra.mxu0 %v809
      %v2455 = vpop.f32.mrf.mxu0
      %v2456 = vadd.f32 0.0, %v2455
      %2457 = vdwg.mxu0
      %v2458 = vmul.f32 %v2436, %v462
      %v2459 = vmul.f32 %v2436, %v834
      %2461 = vrot.lane.b32.xlu0 %v2459, 127
      %v2462 = vpop.permute.xlu0 %2461
      %v2464 = vadd.f32 %v2458, %v2462
      %v2465 = vmul.f32 %v2456, %v844
      %v2466 = vmul.f32 %v2456, %v463
      %2468 = vrot.lane.b32.xlu0 %v2466, 127
      %v2469 = vpop.permute.xlu0 %2468
      %v2471 = vadd.f32 %v2465, %v2469
      %2473 = vset.pattern.permute.xlu0 0
      %2474 = vperm.xlu0 %2473, %v2464
      %v2475 = vpop.permute.xlu0 %2474
      %v2477 = vmul.f32 %v2333, %v2475
      %2479 = vset.pattern.permute.xlu0 0
      %2480 = vperm.xlu0 %2479, %v2471
      %v2481 = vpop.permute.xlu0 %2480
      %v2483 = vmul.f32 %v1677, %v2481
      %v2484 = vadd.f32 %v2477, %v2483
      %vm2485 = vcmp.eq.s32.totalorder %v2348, %v465
      %v2486 = vsel %vm2485, 1, 0
      %v2487 = vcvt.s32.f32 %v2486
      %v2489 = vsel %vm474, %v2487, 0
      %2491 = vmatpush.msra.mxu0 0.0
      %2492 = vmatpush.msra.mxu0 0.0
      %2493 = vmatpush.msra.mxu0 0.0
      %2494 = vmatpush.msra.mxu0 0.0
      %2495 = vmatpush.msra.mxu0 0.0
      %2496 = vmatpush.msra.mxu0 0.0
      %2497 = vmatpush.msra.mxu0 0.0
      %2498 = vmatpush.msra.mxu0 0.0
      %2499 = vmatpush.msra.mxu0 0.0
      %2500 = vmatpush.msra.mxu0 0.0
      %2501 = vmatpush.msra.mxu0 0.0
      %2502 = vmatpush.msra.mxu0 0.0
      %2503 = vmatpush.msra.mxu0 0.0
      %2504 = vmatpush.msra.mxu0 0.0
      %2505 = vmatpush.msra.mxu0 %v449
      %2506 = vmatpush.msra.mxu0 %v448
      %2507 = vmatmul.f32.gmra.mxu0 %v2489
      %v2508 = vpop.f32.mrf.mxu0
      %v2509 = vadd.f32 0.0, %v2508
      %2510 = vdwg.mxu0
      %v2512 = vsel %vm498, %v2484, 0
      %2514 = vmatpush.msra.mxu0 0.0
      %2515 = vmatpush.msra.mxu0 0.0
      %2516 = vmatpush.msra.mxu0 0.0
      %2517 = vmatpush.msra.mxu0 0.0
      %2518 = vmatpush.msra.mxu0 0.0
      %2519 = vmatpush.msra.mxu0 0.0
      %2520 = vmatpush.msra.mxu0 0.0
      %2521 = vmatpush.msra.mxu0 0.0
      %2522 = vmatpush.msra.mxu0 0.0
      %2523 = vmatpush.msra.mxu0 0.0
      %2524 = vmatpush.msra.mxu0 0.0
      %2525 = vmatpush.msra.mxu0 0.0
      %2526 = vmatpush.msra.mxu0 0.0
      %2527 = vmatpush.msra.mxu0 0.0
      %2528 = vmatpush.msra.mxu0 0.0
      %2529 = vmatpush.msra.mxu0 %v504
      %2530 = vmatmul.f32.gmra.mxu0 %v2512
      %v2531 = vpop.f32.mrf.mxu0
      %v2532 = vadd.f32 0.0, %v2531
      %2533 = vdwg.mxu0
      %2535 = vset.pattern.permute.xlu0 0
      %2536 = vperm.xlu0 %2535, %v2532
      %v2537 = vpop.permute.xlu0 %2536
      %v2540 = vsel %vm531, %v2509, 0
      %2542 = vmatpush.msra.mxu0 0.0
      %2543 = vmatpush.msra.mxu0 0.0
      %2544 = vmatpush.msra.mxu0 0.0
      %2545 = vmatpush.msra.mxu0 0.0
      %2546 = vmatpush.msra.mxu0 0.0
      %2547 = vmatpush.msra.mxu0 0.0
      %2548 = vmatpush.msra.mxu0 0.0
      %2549 = vmatpush.msra.mxu0 0.0
      %2550 = vmatpush.msra.mxu0 0.0
      %2551 = vmatpush.msra.mxu0 0.0
      %2552 = vmatpush.msra.mxu0 0.0
      %2553 = vmatpush.msra.mxu0 0.0
      %2554 = vmatpush.msra.mxu0 %v453
      %2555 = vmatpush.msra.mxu0 %v452
      %2556 = vmatpush.msra.mxu0 %v451
      %2557 = vmatpush.msra.mxu0 %v450
      %2558 = vmatmul.f32.gmra.mxu0 %v2540
      %v2559 = vpop.f32.mrf.mxu0
      %v2560 = vadd.f32 %v2537, %v2559
      %2561 = vdwg.mxu0
      %v2562 = vmul.f32 %v2560, %v559
      %v2563 = vadd.f32 %v2562, %v564
      %v2564 = vsub.f32 %v2333, %v2484
      %v2565 = vmul.f32 %v2564, %v2564
      %v2566 = vsel %vm498, %v2565, 0.0
      %2567 = vadd.xlane.f32.xlu0 %v2566
      %v2568 = vpop.xlane.xlu0 %2567
      %v2569 = vrsqrt.pop %v2568
      %v2570 = vmul.f32 %v2569, %v2568
      %v2571 = vmul.f32 %v2570, %v2569
      %v2572 = vmul.f32 0.5, %v2571
      %v2573 = vsub.f32 1.5, %v2572
      %v2574 = vmul.f32 %v2569, %v2573
      %v2575 = vmul.f32 %v2568, %v2574
      %vm2576 = vcmp.eq.f32.partialorder %v2568, inf
      %v2577 = vsel %vm2576, %v2568, %v2575
      %vm2578 = vcmp.eq.f32.partialorder %v2568, 0.0
      %v2579 = vand.u32 %v2568, 2147483648
      %v2580 = vsel %vm2578, %v2579, %v2577
      %v2581 = vsub.f32 %v2509, %v2333
      %v2582 = vmul.f32 %v2581, %v2564
      %v2583 = vsel %vm498, %v2582, 0.0
      %2584 = vadd.xlane.f32.xlu0 %v2583
      %v2585 = vpop.xlane.xlu0 %2584
      %v2586 = vmul.f32 %v2581, %v2581
      %v2587 = vsel %vm498, %v2586, 0.0
      %2588 = vadd.xlane.f32.xlu0 %v2587
      %v2589 = vpop.xlane.xlu0 %2588
      %v2590 = vrsqrt.pop %v2589
      %v2591 = vmul.f32 %v2590, %v2589
      %v2592 = vmul.f32 %v2591, %v2590
      %v2593 = vmul.f32 0.5, %v2592
      %v2594 = vsub.f32 1.5, %v2593
      %v2595 = vmul.f32 %v2590, %v2594
      %v2596 = vmul.f32 %v2589, %v2595
      %vm2597 = vcmp.eq.f32.partialorder %v2589, inf
      %v2598 = vsel %vm2597, %v2589, %v2596
      %vm2599 = vcmp.eq.f32.partialorder %v2589, 0.0
      %v2600 = vand.u32 %v2589, 2147483648
      %v2601 = vsel %vm2599, %v2600, %v2598
      %v2602 = vmul.f32 %v2580, %v2601
      %v2603 = vmax.f32 %v2602, 1e-08
      %v2604 = vrcp.pop %v2603
      %v2605 = vmul.f32 %v2603, %v2604
      %v2606 = vsub.f32 1.0, %v2605
      %v2607 = vmul.f32 %v2604, %v2606
      %v2608 = vadd.f32 %v2604, %v2607
      %vm2609 = vweird.f32 %v2603
      %vm2610 = vweird.f32 %v2604
      %vm2611 = vmor %vm2609, %vm2610
      %v2612 = vsel %vm2611, %v2604, %v2608
      %v2613 = vand.u32 2147483647, %v2603
      %vm2614 = vcmp.eq.f32.partialorder %v2613, 8.507059e+37
      %v2615 = vand.u32 %v2603, 2147483648
      %v2616 = vor.u32 1.1754944e-38, %v2615
      %v2617 = vsel %vm2614, %v2616, %v2612
      %v2618 = vmul.f32 %v2585, %v2617
      %v2619 = vadd.f32 %v2618, 1.0
      %v2620 = vmax.f32 %v2619, 0.0
      %v2621 = vmin.f32 %v2620, 1.0
      %2622 = vrot.lane.b32.xlu0 %v2333, 4
      %v2623 = vpop.permute.xlu0 %2622
      %v2625 = vsub.f32 %v2509, %v2623
      %2627 = vrot.lane.b32.xlu0 %v2564, 4
      %v2628 = vpop.permute.xlu0 %2627
      %v2630 = vmul.f32 %v2625, %v2628
      %2632 = vrot.lane.b32.xlu0 %v2630, 124
      %v2633 = vpop.permute.xlu0 %2632
      %v2635 = vsel %vm498, %v2633, 0.0
      %2636 = vadd.xlane.f32.xlu0 %v2635
      %v2637 = vpop.xlane.xlu0 %2636
      %v2638 = vmul.f32 %v2625, %v2625
      %2640 = vrot.lane.b32.xlu0 %v2638, 124
      %v2641 = vpop.permute.xlu0 %2640
      %v2643 = vsel %vm498, %v2641, 0.0
      %2644 = vadd.xlane.f32.xlu0 %v2643
      %v2645 = vpop.xlane.xlu0 %2644
      %v2646 = vrsqrt.pop %v2645
      %v2647 = vmul.f32 %v2646, %v2645
      %v2648 = vmul.f32 %v2647, %v2646
      %v2649 = vmul.f32 0.5, %v2648
      %v2650 = vsub.f32 1.5, %v2649
      %v2651 = vmul.f32 %v2646, %v2650
      %v2652 = vmul.f32 %v2645, %v2651
      %vm2653 = vcmp.eq.f32.partialorder %v2645, inf
      %v2654 = vsel %vm2653, %v2645, %v2652
      %vm2655 = vcmp.eq.f32.partialorder %v2645, 0.0
      %v2656 = vand.u32 %v2645, 2147483648
      %v2657 = vsel %vm2655, %v2656, %v2654
      %v2658 = vmul.f32 %v2580, %v2657
      %v2659 = vmax.f32 %v2658, 1e-08
      %v2660 = vrcp.pop %v2659
      %v2661 = vmul.f32 %v2659, %v2660
      %v2662 = vsub.f32 1.0, %v2661
      %v2663 = vmul.f32 %v2660, %v2662
      %v2664 = vadd.f32 %v2660, %v2663
      %vm2665 = vweird.f32 %v2659
      %vm2666 = vweird.f32 %v2660
      %vm2667 = vmor %vm2665, %vm2666
      %v2668 = vsel %vm2667, %v2660, %v2664
      %v2669 = vand.u32 2147483647, %v2659
      %vm2670 = vcmp.eq.f32.partialorder %v2669, 8.507059e+37
      %v2671 = vand.u32 %v2659, 2147483648
      %v2672 = vor.u32 1.1754944e-38, %v2671
      %v2673 = vsel %vm2670, %v2672, %v2668
      %v2674 = vmul.f32 %v2637, %v2673
      %v2675 = vadd.f32 %v2674, 1.0
      %v2676 = vmax.f32 %v2675, 0.0
      %v2677 = vmin.f32 %v2676, 1.0
      %2678 = vrot.lane.b32.xlu0 %v2333, 8
      %v2679 = vpop.permute.xlu0 %2678
      %v2681 = vsub.f32 %v2509, %v2679
      %2682 = vrot.lane.b32.xlu0 %v2564, 8
      %v2683 = vpop.permute.xlu0 %2682
      %v2685 = vmul.f32 %v2681, %v2683
      %2687 = vrot.lane.b32.xlu0 %v2685, 120
      %v2688 = vpop.permute.xlu0 %2687
      %v2690 = vsel %vm498, %v2688, 0.0
      %2691 = vadd.xlane.f32.xlu0 %v2690
      %v2692 = vpop.xlane.xlu0 %2691
      %v2693 = vmul.f32 %v2681, %v2681
      %2695 = vrot.lane.b32.xlu0 %v2693, 120
      %v2696 = vpop.permute.xlu0 %2695
      %v2698 = vsel %vm498, %v2696, 0.0
      %2699 = vadd.xlane.f32.xlu0 %v2698
      %v2700 = vpop.xlane.xlu0 %2699
      %v2701 = vrsqrt.pop %v2700
      %v2702 = vmul.f32 %v2701, %v2700
      %v2703 = vmul.f32 %v2702, %v2701
      %v2704 = vmul.f32 0.5, %v2703
      %v2705 = vsub.f32 1.5, %v2704
      %v2706 = vmul.f32 %v2701, %v2705
      %v2707 = vmul.f32 %v2700, %v2706
      %vm2708 = vcmp.eq.f32.partialorder %v2700, inf
      %v2709 = vsel %vm2708, %v2700, %v2707
      %vm2710 = vcmp.eq.f32.partialorder %v2700, 0.0
      %v2711 = vand.u32 %v2700, 2147483648
      %v2712 = vsel %vm2710, %v2711, %v2709
      %v2713 = vmul.f32 %v2580, %v2712
      %v2714 = vmax.f32 %v2713, 1e-08
      %v2715 = vrcp.pop %v2714
      %v2716 = vmul.f32 %v2714, %v2715
      %v2717 = vsub.f32 1.0, %v2716
      %v2718 = vmul.f32 %v2715, %v2717
      %v2719 = vadd.f32 %v2715, %v2718
      %vm2720 = vweird.f32 %v2714
      %vm2721 = vweird.f32 %v2715
      %vm2722 = vmor %vm2720, %vm2721
      %v2723 = vsel %vm2722, %v2715, %v2719
      %v2724 = vand.u32 2147483647, %v2714
      %vm2725 = vcmp.eq.f32.partialorder %v2724, 8.507059e+37
      %v2726 = vand.u32 %v2714, 2147483648
      %v2727 = vor.u32 1.1754944e-38, %v2726
      %v2728 = vsel %vm2725, %v2727, %v2723
      %v2729 = vmul.f32 %v2692, %v2728
      %v2730 = vadd.f32 %v2729, 1.0
      %v2731 = vmax.f32 %v2730, 0.0
      %v2732 = vmin.f32 %v2731, 1.0
      %2733 = vrot.lane.b32.xlu0 %v2333, 12
      %v2734 = vpop.permute.xlu0 %2733
      %v2736 = vsub.f32 %v2509, %v2734
      %2737 = vrot.lane.b32.xlu0 %v2564, 12
      %v2738 = vpop.permute.xlu0 %2737
      %v2740 = vmul.f32 %v2736, %v2738
      %2742 = vrot.lane.b32.xlu0 %v2740, 116
      %v2743 = vpop.permute.xlu0 %2742
      %v2745 = vsel %vm498, %v2743, 0.0
      %2746 = vadd.xlane.f32.xlu0 %v2745
      %v2747 = vpop.xlane.xlu0 %2746
      %v2748 = vmul.f32 %v2736, %v2736
      %2750 = vrot.lane.b32.xlu0 %v2748, 116
      %v2751 = vpop.permute.xlu0 %2750
      %v2753 = vsel %vm498, %v2751, 0.0
      %2754 = vadd.xlane.f32.xlu0 %v2753
      %v2755 = vpop.xlane.xlu0 %2754
      %v2756 = vrsqrt.pop %v2755
      %v2757 = vmul.f32 %v2756, %v2755
      %v2758 = vmul.f32 %v2757, %v2756
      %v2759 = vmul.f32 0.5, %v2758
      %v2760 = vsub.f32 1.5, %v2759
      %v2761 = vmul.f32 %v2756, %v2760
      %v2762 = vmul.f32 %v2755, %v2761
      %vm2763 = vcmp.eq.f32.partialorder %v2755, inf
      %v2764 = vsel %vm2763, %v2755, %v2762
      %vm2765 = vcmp.eq.f32.partialorder %v2755, 0.0
      %v2766 = vand.u32 %v2755, 2147483648
      %v2767 = vsel %vm2765, %v2766, %v2764
      %v2768 = vmul.f32 %v2580, %v2767
      %v2769 = vmax.f32 %v2768, 1e-08
      %v2770 = vrcp.pop %v2769
      %v2771 = vmul.f32 %v2769, %v2770
      %v2772 = vsub.f32 1.0, %v2771
      %v2773 = vmul.f32 %v2770, %v2772
      %v2774 = vadd.f32 %v2770, %v2773
      %vm2775 = vweird.f32 %v2769
      %vm2776 = vweird.f32 %v2770
      %vm2777 = vmor %vm2775, %vm2776
      %v2778 = vsel %vm2777, %v2770, %v2774
      %v2779 = vand.u32 2147483647, %v2769
      %vm2780 = vcmp.eq.f32.partialorder %v2779, 8.507059e+37
      %v2781 = vand.u32 %v2769, 2147483648
      %v2782 = vor.u32 1.1754944e-38, %v2781
      %v2783 = vsel %vm2780, %v2782, %v2778
      %v2784 = vmul.f32 %v2747, %v2783
      %v2785 = vadd.f32 %v2784, 1.0
      %v2786 = vmax.f32 %v2785, 0.0
      %v2787 = vmin.f32 %v2786, 1.0
      %2788 = vrot.lane.b32.xlu0 %v2333, 16
      %v2789 = vpop.permute.xlu0 %2788
      %v2791 = vsub.f32 %v2509, %v2789
      %2792 = vrot.lane.b32.xlu0 %v2564, 16
      %v2793 = vpop.permute.xlu0 %2792
      %v2795 = vmul.f32 %v2791, %v2793
      %2797 = vrot.lane.b32.xlu0 %v2795, 112
      %v2798 = vpop.permute.xlu0 %2797
      %v2800 = vsel %vm498, %v2798, 0.0
      %2801 = vadd.xlane.f32.xlu0 %v2800
      %v2802 = vpop.xlane.xlu0 %2801
      %v2803 = vmul.f32 %v2791, %v2791
      %2805 = vrot.lane.b32.xlu0 %v2803, 112
      %v2806 = vpop.permute.xlu0 %2805
      %v2808 = vsel %vm498, %v2806, 0.0
      %2809 = vadd.xlane.f32.xlu0 %v2808
      %v2810 = vpop.xlane.xlu0 %2809
      %v2811 = vrsqrt.pop %v2810
      %v2812 = vmul.f32 %v2811, %v2810
      %v2813 = vmul.f32 %v2812, %v2811
      %v2814 = vmul.f32 0.5, %v2813
      %v2815 = vsub.f32 1.5, %v2814
      %v2816 = vmul.f32 %v2811, %v2815
      %v2817 = vmul.f32 %v2810, %v2816
      %vm2818 = vcmp.eq.f32.partialorder %v2810, inf
      %v2819 = vsel %vm2818, %v2810, %v2817
      %vm2820 = vcmp.eq.f32.partialorder %v2810, 0.0
      %v2821 = vand.u32 %v2810, 2147483648
      %v2822 = vsel %vm2820, %v2821, %v2819
      %v2823 = vmul.f32 %v2580, %v2822
      %v2824 = vmax.f32 %v2823, 1e-08
      %v2825 = vrcp.pop %v2824
      %v2826 = vmul.f32 %v2824, %v2825
      %v2827 = vsub.f32 1.0, %v2826
      %v2828 = vmul.f32 %v2825, %v2827
      %v2829 = vadd.f32 %v2825, %v2828
      %vm2830 = vweird.f32 %v2824
      %vm2831 = vweird.f32 %v2825
      %vm2832 = vmor %vm2830, %vm2831
      %v2833 = vsel %vm2832, %v2825, %v2829
      %v2834 = vand.u32 2147483647, %v2824
      %vm2835 = vcmp.eq.f32.partialorder %v2834, 8.507059e+37
      %v2836 = vand.u32 %v2824, 2147483648
      %v2837 = vor.u32 1.1754944e-38, %v2836
      %v2838 = vsel %vm2835, %v2837, %v2833
      %v2839 = vmul.f32 %v2802, %v2838
      %v2840 = vadd.f32 %v2839, 1.0
      %v2841 = vmax.f32 %v2840, 0.0
      %v2842 = vmin.f32 %v2841, 1.0
      %2843 = vrot.lane.b32.xlu0 %v2333, 20
      %v2844 = vpop.permute.xlu0 %2843
      %v2846 = vsub.f32 %v2509, %v2844
      %2847 = vrot.lane.b32.xlu0 %v2564, 20
      %v2848 = vpop.permute.xlu0 %2847
      %v2850 = vmul.f32 %v2846, %v2848
      %2852 = vrot.lane.b32.xlu0 %v2850, 108
      %v2853 = vpop.permute.xlu0 %2852
      %v2855 = vsel %vm498, %v2853, 0.0
      %2856 = vadd.xlane.f32.xlu0 %v2855
      %v2857 = vpop.xlane.xlu0 %2856
      %v2858 = vmul.f32 %v2846, %v2846
      %2860 = vrot.lane.b32.xlu0 %v2858, 108
      %v2861 = vpop.permute.xlu0 %2860
      %v2863 = vsel %vm498, %v2861, 0.0
      %2864 = vadd.xlane.f32.xlu0 %v2863
      %v2865 = vpop.xlane.xlu0 %2864
      %v2866 = vrsqrt.pop %v2865
      %v2867 = vmul.f32 %v2866, %v2865
      %v2868 = vmul.f32 %v2867, %v2866
      %v2869 = vmul.f32 0.5, %v2868
      %v2870 = vsub.f32 1.5, %v2869
      %v2871 = vmul.f32 %v2866, %v2870
      %v2872 = vmul.f32 %v2865, %v2871
      %vm2873 = vcmp.eq.f32.partialorder %v2865, inf
      %v2874 = vsel %vm2873, %v2865, %v2872
      %vm2875 = vcmp.eq.f32.partialorder %v2865, 0.0
      %v2876 = vand.u32 %v2865, 2147483648
      %v2877 = vsel %vm2875, %v2876, %v2874
      %v2878 = vmul.f32 %v2580, %v2877
      %v2879 = vmax.f32 %v2878, 1e-08
      %v2880 = vrcp.pop %v2879
      %v2881 = vmul.f32 %v2879, %v2880
      %v2882 = vsub.f32 1.0, %v2881
      %v2883 = vmul.f32 %v2880, %v2882
      %v2884 = vadd.f32 %v2880, %v2883
      %vm2885 = vweird.f32 %v2879
      %vm2886 = vweird.f32 %v2880
      %vm2887 = vmor %vm2885, %vm2886
      %v2888 = vsel %vm2887, %v2880, %v2884
      %v2889 = vand.u32 2147483647, %v2879
      %vm2890 = vcmp.eq.f32.partialorder %v2889, 8.507059e+37
      %v2891 = vand.u32 %v2879, 2147483648
      %v2892 = vor.u32 1.1754944e-38, %v2891
      %v2893 = vsel %vm2890, %v2892, %v2888
      %v2894 = vmul.f32 %v2857, %v2893
      %v2895 = vadd.f32 %v2894, 1.0
      %v2896 = vmax.f32 %v2895, 0.0
      %v2897 = vmin.f32 %v2896, 1.0
      %2898 = vrot.lane.b32.xlu0 %v2333, 24
      %v2899 = vpop.permute.xlu0 %2898
      %v2901 = vsub.f32 %v2509, %v2899
      %2902 = vrot.lane.b32.xlu0 %v2564, 24
      %v2903 = vpop.permute.xlu0 %2902
      %v2905 = vmul.f32 %v2901, %v2903
      %2907 = vrot.lane.b32.xlu0 %v2905, 104
      %v2908 = vpop.permute.xlu0 %2907
      %v2910 = vsel %vm498, %v2908, 0.0
      %2911 = vadd.xlane.f32.xlu0 %v2910
      %v2912 = vpop.xlane.xlu0 %2911
      %v2913 = vmul.f32 %v2901, %v2901
      %2915 = vrot.lane.b32.xlu0 %v2913, 104
      %v2916 = vpop.permute.xlu0 %2915
      %v2918 = vsel %vm498, %v2916, 0.0
      %2919 = vadd.xlane.f32.xlu0 %v2918
      %v2920 = vpop.xlane.xlu0 %2919
      %v2921 = vrsqrt.pop %v2920
      %v2922 = vmul.f32 %v2921, %v2920
      %v2923 = vmul.f32 %v2922, %v2921
      %v2924 = vmul.f32 0.5, %v2923
      %v2925 = vsub.f32 1.5, %v2924
      %v2926 = vmul.f32 %v2921, %v2925
      %v2927 = vmul.f32 %v2920, %v2926
      %vm2928 = vcmp.eq.f32.partialorder %v2920, inf
      %v2929 = vsel %vm2928, %v2920, %v2927
      %vm2930 = vcmp.eq.f32.partialorder %v2920, 0.0
      %v2931 = vand.u32 %v2920, 2147483648
      %v2932 = vsel %vm2930, %v2931, %v2929
      %v2933 = vmul.f32 %v2580, %v2932
      %v2934 = vmax.f32 %v2933, 1e-08
      %v2935 = vrcp.pop %v2934
      %v2936 = vmul.f32 %v2934, %v2935
      %v2937 = vsub.f32 1.0, %v2936
      %v2938 = vmul.f32 %v2935, %v2937
      %v2939 = vadd.f32 %v2935, %v2938
      %vm2940 = vweird.f32 %v2934
      %vm2941 = vweird.f32 %v2935
      %vm2942 = vmor %vm2940, %vm2941
      %v2943 = vsel %vm2942, %v2935, %v2939
      %v2944 = vand.u32 2147483647, %v2934
      %vm2945 = vcmp.eq.f32.partialorder %v2944, 8.507059e+37
      %v2946 = vand.u32 %v2934, 2147483648
      %v2947 = vor.u32 1.1754944e-38, %v2946
      %v2948 = vsel %vm2945, %v2947, %v2943
      %v2949 = vmul.f32 %v2912, %v2948
      %v2950 = vadd.f32 %v2949, 1.0
      %v2951 = vmax.f32 %v2950, 0.0
      %v2952 = vmin.f32 %v2951, 1.0
      %2953 = vrot.lane.b32.xlu0 %v2333, 28
      %v2954 = vpop.permute.xlu0 %2953
      %v2956 = vsub.f32 %v2509, %v2954
      %2957 = vrot.lane.b32.xlu0 %v2564, 28
      %v2958 = vpop.permute.xlu0 %2957
      %v2960 = vmul.f32 %v2956, %v2958
      %2962 = vrot.lane.b32.xlu0 %v2960, 100
      %v2963 = vpop.permute.xlu0 %2962
      %v2965 = vsel %vm498, %v2963, 0.0
      %2966 = vadd.xlane.f32.xlu0 %v2965
      %v2967 = vpop.xlane.xlu0 %2966
      %v2968 = vmul.f32 %v2956, %v2956
      %2970 = vrot.lane.b32.xlu0 %v2968, 100
      %v2971 = vpop.permute.xlu0 %2970
      %v2973 = vsel %vm498, %v2971, 0.0
      %2974 = vadd.xlane.f32.xlu0 %v2973
      %v2975 = vpop.xlane.xlu0 %2974
      %v2976 = vrsqrt.pop %v2975
      %v2977 = vmul.f32 %v2976, %v2975
      %v2978 = vmul.f32 %v2977, %v2976
      %v2979 = vmul.f32 0.5, %v2978
      %v2980 = vsub.f32 1.5, %v2979
      %v2981 = vmul.f32 %v2976, %v2980
      %v2982 = vmul.f32 %v2975, %v2981
      %vm2983 = vcmp.eq.f32.partialorder %v2975, inf
      %v2984 = vsel %vm2983, %v2975, %v2982
      %vm2985 = vcmp.eq.f32.partialorder %v2975, 0.0
      %v2986 = vand.u32 %v2975, 2147483648
      %v2987 = vsel %vm2985, %v2986, %v2984
      %v2988 = vmul.f32 %v2580, %v2987
      %v2989 = vmax.f32 %v2988, 1e-08
      %v2990 = vrcp.pop %v2989
      %v2991 = vmul.f32 %v2989, %v2990
      %v2992 = vsub.f32 1.0, %v2991
      %v2993 = vmul.f32 %v2990, %v2992
      %v2994 = vadd.f32 %v2990, %v2993
      %vm2995 = vweird.f32 %v2989
      %vm2996 = vweird.f32 %v2990
      %vm2997 = vmor %vm2995, %vm2996
      %v2998 = vsel %vm2997, %v2990, %v2994
      %v2999 = vand.u32 2147483647, %v2989
      %vm3000 = vcmp.eq.f32.partialorder %v2999, 8.507059e+37
      %v3001 = vand.u32 %v2989, 2147483648
      %v3002 = vor.u32 1.1754944e-38, %v3001
      %v3003 = vsel %vm3000, %v3002, %v2998
      %v3004 = vmul.f32 %v2967, %v3003
      %v3005 = vadd.f32 %v3004, 1.0
      %v3006 = vmax.f32 %v3005, 0.0
      %v3007 = vmin.f32 %v3006, 1.0
      %v3008 = vsel %vm1389, %v2621, %v2677
      %v3009 = vsel %vm760, %v3008, %v2732
      %v3010 = vsel %vm1392, %v3009, %v2787
      %v3011 = vsel %vm498, %v3010, %v2842
      %v3012 = vsel %vm1395, %v3011, %v2897
      %v3013 = vsel %vm1397, %v3012, %v2952
      %v3014 = vsel %vm1399, %v3013, %v3007
      %v3015 = vmul.f32 %v2563, %v3014
      %v3016 = vsel %vm567, %v3015, -inf
      %3017 = vmax.xlane.f32.xlu0 %v3016
      %v3018 = vpop.xlane.xlu0 %3017
      %v3019 = vsub.f32 %v3015, %v3018
      %v3020 = vmul.f32 %v3019, 1.442695
      %v3021 = vpow.pop %v3020
      %v3022 = vsel %vm567, %v3021, 0.0
      %3023 = vadd.xlane.f32.xlu0 %v3022
      %v3024 = vpop.xlane.xlu0 %3023
      %v3025 = vrcp.pop %v3024
      %v3026 = vmul.f32 %v3024, %v3025
      %v3027 = vsub.f32 1.0, %v3026
      %v3028 = vmul.f32 %v3025, %v3027
      %v3029 = vadd.f32 %v3025, %v3028
      %vm3030 = vweird.f32 %v3024
      %vm3031 = vweird.f32 %v3025
      %vm3032 = vmor %vm3030, %vm3031
      %v3033 = vsel %vm3032, %v3025, %v3029
      %v3034 = vand.u32 2147483647, %v3024
      %vm3035 = vcmp.eq.f32.partialorder %v3034, 8.507059e+37
      %v3036 = vand.u32 %v3024, 2147483648
      %v3037 = vor.u32 1.1754944e-38, %v3036
      %v3038 = vsel %vm3035, %v3037, %v3033
      %v3039 = vmul.f32 %v3021, %v3038
      %v3040 = vsel %vm567, %v3039, -inf
      %3041 = vmax.xlane.f32.xlu0 %v3040
      %v3042 = vpop.xlane.xlu0 %3041
      %vm3043 = vcmp.eq.f32.partialorder %v3039, %v3042
      %v3044 = vsel %vm3043, %v465, 8
      %v3045 = vsel %vm567, %v3044, 2147483647
      %v3046 = vand.u32 %v3045, 65535
      %v3047 = vshra.s32 %v3045, 16
      %v3048 = vcvt.s32.f32 %v3046
      %v3049 = vcvt.s32.f32 %v3047
      %3050 = vmin.xlane.f32.xlu0 %v3049
      %v3051 = vpop.xlane.xlu0 %3050
      %vm3052 = vcmp.eq.f32.partialorder %v3049, %v3051
      %v3053 = vsel %vm3052, %v3048, inf
      %3054 = vmin.xlane.f32.xlu0 %v3053
      %v3055 = vpop.xlane.xlu0 %3054
      %v3056 = vcvt.f32.s32 %v3055
      %v3057 = vcvt.f32.s32 %v3051
      %v3058 = vshll.u32 %v3057, 16
      %v3059 = vadd.s32 %v3058, %v3056
      %vm3060 = vcmp.eq.s32.totalorder %v465, %v3059
      %v3061 = vsel %vm3060, 1, 0
      %v3062 = vcvt.s32.f32 %v3061
      %v3063 = vsub.f32 %v3062, %v3039
      %v3064 = vadd.f32 %v3063, %v3039
      %3066 = vset.pattern.permute.xlu0 0
      %3067 = vperm.xlu0 %3066, %v3064
      %v3068 = vpop.permute.xlu0 %3067
      %v3070 = vmul.f32 %v2509, %v3068
      %3071 = vset.pattern.permute.xlu0 1
      %3072 = vperm.xlu0 %3071, %v3064
      %v3073 = vpop.permute.xlu0 %3072
      %v3075 = vmul.f32 %v2509, %v3073
      %3077 = vrot.lane.b32.xlu0 %v3075, 124
      %v3078 = vpop.permute.xlu0 %3077
      %v3080 = vadd.f32 %v3070, %v3078
      %3081 = vset.pattern.permute.xlu0 2
      %3082 = vperm.xlu0 %3081, %v3064
      %v3083 = vpop.permute.xlu0 %3082
      %v3085 = vmul.f32 %v2509, %v3083
      %3087 = vrot.lane.b32.xlu0 %v3085, 120
      %v3088 = vpop.permute.xlu0 %3087
      %v3090 = vadd.f32 %v3080, %v3088
      %3091 = vset.pattern.permute.xlu0 3
      %3092 = vperm.xlu0 %3091, %v3064
      %v3093 = vpop.permute.xlu0 %3092
      %v3095 = vmul.f32 %v2509, %v3093
      %3097 = vrot.lane.b32.xlu0 %v3095, 116
      %v3098 = vpop.permute.xlu0 %3097
      %v3100 = vadd.f32 %v3090, %v3098
      %3101 = vset.pattern.permute.xlu0 4
      %3102 = vperm.xlu0 %3101, %v3064
      %v3103 = vpop.permute.xlu0 %3102
      %v3105 = vmul.f32 %v2509, %v3103
      %3107 = vrot.lane.b32.xlu0 %v3105, 112
      %v3108 = vpop.permute.xlu0 %3107
      %v3110 = vadd.f32 %v3100, %v3108
      %3111 = vset.pattern.permute.xlu0 5
      %3112 = vperm.xlu0 %3111, %v3064
      %v3113 = vpop.permute.xlu0 %3112
      %v3115 = vmul.f32 %v2509, %v3113
      %3117 = vrot.lane.b32.xlu0 %v3115, 108
      %v3118 = vpop.permute.xlu0 %3117
      %v3120 = vadd.f32 %v3110, %v3118
      %3121 = vset.pattern.permute.xlu0 6
      %3122 = vperm.xlu0 %3121, %v3064
      %v3123 = vpop.permute.xlu0 %3122
      %v3125 = vmul.f32 %v2509, %v3123
      %3127 = vrot.lane.b32.xlu0 %v3125, 104
      %v3128 = vpop.permute.xlu0 %3127
      %v3130 = vadd.f32 %v3120, %v3128
      %3131 = vset.pattern.permute.xlu0 7
      %3132 = vperm.xlu0 %3131, %v3064
      %v3133 = vpop.permute.xlu0 %3132
      %v3135 = vmul.f32 %v2509, %v3133
      %3137 = vrot.lane.b32.xlu0 %v3135, 100
      %v3138 = vpop.permute.xlu0 %3137
      %v3140 = vadd.f32 %v3130, %v3138
      %s3141 = scalar_lea.vmem %s447, 24
      %3142 = vst.msk [vmem:[%s3141] sm:$0xff] %vm498, %v3140
      %p3143 = scmp.lt.s32.totalorder %s23, 1
      %s3144 = scalar_select %p3143, %s23, 1
      %s3145 = smul.addr %s3144, 4
      %s3146 = smul.addr %s3145, 8
      %s3147 = scalar_lea.vmem %s12, %s3146
      // Predicated region
      $region69: #{tpu_custom_call.1} parent=67 // pred_check
        %p3148 = pneg %p308
      $region70: #{tpu_custom_call.1} parent=67 // pred_check_branch
        %3150 = sbr.rel (%p3148) target = $region72
      $region71: #{tpu_custom_call.1} parent=67 // pred_region
        _
      $region72: #{tpu_custom_call.1} parent=67 // pred_fallthru
        _
    $region68: #{tpu_custom_call.1} parent=5 // pred_fallthru
      _
    %p3151 = scmp.le.s32.totalorder 2, %s18
    // Predicated region
    $region73: #{tpu_custom_call.1} parent=5 // pred_check
      %p3152 = pneg %p3151
    $region74: #{tpu_custom_call.1} parent=5 // pred_check_branch
      %3154 = sbr.rel (%p3152) target = $region76
    $region75: #{tpu_custom_call.1} parent=5 // pred_region
      %s3155 = ssub.s32 %s18, 2
      // Predicated region
      $region77: #{tpu_custom_call.1} parent=75 // pred_check
        %p3156 = pneg %p314
      $region78: #{tpu_custom_call.1} parent=75 // pred_check_branch
        %3158 = sbr.rel (%p3156) target = $region80
      $region79: #{tpu_custom_call.1} parent=75 // pred_region
        %p3159 = scmp.lt.s32.totalorder %s24, 1
        %s3160 = scalar_select %p3159, %s24, 1
        %s3161 = smul.addr %s3160, 4
        %s3162 = smul.addr %s3161, 8
        %s3163 = scalar_lea.vmem %s12, %s3162
      $region80: #{tpu_custom_call.1} parent=75 // pred_fallthru
        _
    $region76: #{tpu_custom_call.1} parent=5 // pred_fallthru
      _
  $region6: #{tpu_custom_call.1} parent=0 // loop_footer
    %s22 = sadd.s32 1, %s18
  $region7: #{tpu_custom_call.1} parent=0 // loop_footer_branch
    %17 = sbr.rel target = $region3
  $region8: #{tpu_custom_call.1} parent=0 // loop_exit
    _

</llo_original>
